<compile_context>
chip_gen: v6e
topology: v6e:2x2x1
jax: 0.10.0
libtpu: 0.0.40
codegen_flags: <defaults>
</compile_context>

<pallas_src>
import functools

import jax
import jax.numpy as jnp
from jax.experimental import pallas as pl
from jax.experimental.pallas import tpu as pltpu


# --------------------------------------------------------------------------
# Fused RCAB kernel: conv1 + ReLU -> conv2 -> CA -> channel scale + residual
# One batch element per grid step; intermediates stay in VMEM.
# --------------------------------------------------------------------------
def rcab_kernel(x_ref, wc1_ref, bc1_ref, wc2_ref, bc2_ref,
                wd1_ref, bd1_ref, wd2_ref, bd2_ref, o_ref,
                xpad_ref, rpad_ref, *, H, W, C, K, dilation):
    # x_ref : (1, H, W, C)                 input tile (f32 or bf16)
    # wc*   : (K*K*C, C)  im2col conv weights;  bc*: (1, C) f32 biases
    # wd1   : (Cr, C) = w_ca1^T;  bd1: (Cr, 1);  wd2: (Cr, C);  bd2: (1, C)
    # o_ref : (1, H, W, C)
    # xpad_ref / rpad_ref: (Hp, Wp, C) f32 VMEM scratch (padded activations)
    pad = dilation * (K // 2)

    # ---- in-kernel "same" padding (no jnp.pad / extra HBM round trip) ----
    # Zero the whole scratch each step (cheap VMEM memset) so the halo is 0
    # regardless of how the 'parallel' batch axis is split across TensorCores.
    xpad_ref[...] = jnp.zeros_like(xpad_ref)
    rpad_ref[...] = jnp.zeros_like(rpad_ref)

    x = x_ref[0]                                             # (H, W, C)
    xpad_ref[pad:pad + H, pad:pad + W, :] = x.astype(jnp.float32)

    def conv_im2col(src_ref, w_ref, b_ref):
        # Single im2col matmul: contraction depth K*K*C (=288) instead of 9
        # separate depth-C (=32) matmuls.
        src = src_ref[...]                                   # (Hp, Wp, C) f32
        cols = []
        for kh in range(K):                                  # static unroll
            for kw in range(K):
                p = src[kh * dilation:kh * dilation + H,
                        kw * dilation:kw * dilation + W, :]  # (H, W, C)
                cols.append(p.reshape(H * W, C))
        pmat = jnp.concatenate(cols, axis=-1)                # (H*W, K*K*C)
        acc = jnp.dot(pmat.astype(w_ref.dtype), w_ref[...],
                      preferred_element_type=jnp.float32)    # (H*W, C) f32
        return acc + b_ref[...].astype(jnp.float32)

    # conv1 + ReLU (result stays in VMEM)
    r = jnp.maximum(conv_im2col(xpad_ref, wc1_ref, bc1_ref), 0.0)
    rpad_ref[pad:pad + H, pad:pad + W, :] = r.reshape(H, W, C)
    # conv2
    r = conv_im2col(rpad_ref, wc2_ref, bc2_ref)              # (H*W, C) f32

    # ---- channel attention on VPU/XLU (avoid M=1 MXU matmuls) ----
    y = jnp.sum(r, axis=0, keepdims=True) * (1.0 / (H * W))              # (1, C)
    h = jnp.maximum(
        jnp.sum(wd1_ref[...] * y, axis=-1, keepdims=True) + bd1_ref[...],
        0.0)                                                              # (Cr, 1)
    a = jax.nn.sigmoid(
        jnp.sum(wd2_ref[...] * h, axis=0, keepdims=True) + bd2_ref[...])  # (1, C)

    # ---- channel rescale + residual add, single store ----
    out = r * a + x.astype(jnp.float32).reshape(H * W, C)
    o_ref[...] = out.reshape(1, H, W, C).astype(o_ref.dtype)


def rcab_forward(x, params, *, dilation):
    """x: (N, H, W, C) NHWC (f32 or bf16). One fused pallas_call per RCAB."""
    N, H, W, C = x.shape
    K = params["w_conv1"].shape[0]
    Cr = params["w_ca1"].shape[-1]
    pad = dilation * (K // 2)
    Hp, Wp = H + 2 * pad, W + 2 * pad
    dt = x.dtype   # bf16 inputs/weights halve HBM bytes & use bf16 MXU path

    # im2col weight matrices: (K, K, Cin, Cout) -> (K*K*Cin, Cout)
    wc1 = params["w_conv1"].reshape(K * K * C, C).astype(dt)
    wc2 = params["w_conv2"].reshape(K * K * C, C).astype(dt)
    bc1 = params["b_conv1"].reshape(1, C).astype(jnp.float32)
    bc2 = params["b_conv2"].reshape(1, C).astype(jnp.float32)
    # CA weights stay f32 (tiny; elementwise/VPU path kept f32 for v5e too)
    wd1 = params["w_ca1"].T.astype(jnp.float32)              # (Cr, C)
    bd1 = params["b_ca1"].reshape(Cr, 1).astype(jnp.float32)
    wd2 = params["w_ca2"].astype(jnp.float32)                # (Cr, C)
    bd2 = params["b_ca2"].reshape(1, C).astype(jnp.float32)

    kern = functools.partial(rcab_kernel, H=H, W=W, C=C, K=K,
                             dilation=dilation)

    # TODO(synk): for production image sizes, tile H with a dilation*(K//2)
    # row halo (grid=(N, H_tiles)) so blocks fit v7x's 64 MiB VMEM and the
    # DMA pipeline gets >2 steps per TensorCore.
    return pl.pallas_call(
        kern,
        out_shape=jax.ShapeDtypeStruct((N, H, W, C), dt),
        grid=(N,),
        in_specs=[
            pl.BlockSpec((1, H, W, C), lambda n: (n, 0, 0, 0)),   # x
            pl.BlockSpec((K * K * C, C), lambda n: (0, 0)),       # wc1
            pl.BlockSpec((1, C), lambda n: (0, 0)),               # bc1
            pl.BlockSpec((K * K * C, C), lambda n: (0, 0)),       # wc2
            pl.BlockSpec((1, C), lambda n: (0, 0)),               # bc2
            pl.BlockSpec((Cr, C), lambda n: (0, 0)),              # wd1
            pl.BlockSpec((Cr, 1), lambda n: (0, 0)),              # bd1
            pl.BlockSpec((Cr, C), lambda n: (0, 0)),              # wd2
            pl.BlockSpec((1, C), lambda n: (0, 0)),               # bd2
        ],
        out_specs=pl.BlockSpec((1, H, W, C), lambda n: (n, 0, 0, 0)),
        scratch_shapes=[pltpu.VMEM((Hp, Wp, C), jnp.float32),
                        pltpu.VMEM((Hp, Wp, C), jnp.float32)],
        compiler_params=pltpu.CompilerParams(
            dimension_semantics=("parallel",)),
    )(x, wc1, bc1, wc2, bc2, wd1, bd1, wd2, bd2)


# --------------------------------------------------------------------------
# Pure-JAX reference and parameter init
# --------------------------------------------------------------------------
def rcab_reference(x, params, *, dilation):
    def conv(inp, w, b):
        K = w.shape[0]
        pad = dilation * (K // 2)
        out = jax.lax.conv_general_dilated(
            inp, w, window_strides=(1, 1),
            padding=[(pad, pad), (pad, pad)],
            rhs_dilation=(dilation, dilation),
            dimension_numbers=("NHWC", "HWIO", "NHWC"))
        return out + b.reshape(1, 1, 1, -1)

    r = jax.nn.relu(conv(x, params["w_conv1"], params["b_conv1"]))
    r = conv(r, params["w_conv2"], params["b_conv2"])
    y = jnp.mean(r, axis=(1, 2))                                    # (N, C)
    h = jax.nn.relu(y @ params["w_ca1"] + params["b_ca1"])
    a = jax.nn.sigmoid(h @ params["w_ca2"] + params["b_ca2"])
    return r * a[:, None, None, :] + x


def init_params(key, n_feat, kernel_size, reduction):
    c_red = n_feat // reduction
    ks = jax.random.split(key, 8)

    def u(k, shape, fan_in):
        bound = 1.0 / jnp.sqrt(fan_in)
        return jax.random.uniform(k, shape, jnp.float32, -bound, bound)

    fan_conv = n_feat * kernel_size * kernel_size
    return {
        # conv weights stored HWIO: (K, K, Cin, Cout)
        "w_conv1": u(ks[0], (kernel_size, kernel_size, n_feat, n_feat), fan_conv),
        "b_conv1": u(ks[1], (n_feat,), fan_conv),
        "w_conv2": u(ks[2], (kernel_size, kernel_size, n_feat, n_feat), fan_conv),
        "b_conv2": u(ks[3], (n_feat,), fan_conv),
        # 1x1 convs of CALayer as dense matrices: (Cin, Cout)
        "w_ca1": u(ks[4], (n_feat, c_red), n_feat),
        "b_ca1": u(ks[5], (c_red,), n_feat),
        "w_ca2": u(ks[6], (c_red, n_feat), c_red),
        "b_ca2": u(ks[7], (n_feat,), c_red),
    }


if __name__ == "__main__":
    # Module hyperparameters (small, consistent with RCAB.__init__)
    N, n_feat, H, W = 2, 32, 16, 16
    kernel_size, reduction, dilation = 3, 8, 2

    key = jax.random.PRNGKey(0)
    kx, kp = jax.random.split(key)
    # PyTorch input is NCHW; kernel layout is NHWC (documented above).
    x = jax.random.normal(kx, (N, H, W, n_feat), jnp.float32)
    params = init_params(kp, n_feat, kernel_size, reduction)

    # f32 path: strict check vs pure-JAX reference
    out = jax.block_until_ready(rcab_forward(x, params, dilation=dilation))
    ref = rcab_reference(x, params, dilation=dilation)
    assert out.shape == ref.shape
    assert jnp.allclose(out, ref, atol=1e-4, rtol=1e-4), (
        f"max err {jnp.max(jnp.abs(out - ref))}")

    # bf16 activation/weight path (v6e/v7x bandwidth + bf16 MXU); f32 accumulate.
    out_bf16 = jax.block_until_ready(
        rcab_forward(x.astype(jnp.bfloat16), params, dilation=dilation))
    err_bf16 = jnp.max(jnp.abs(out_bf16.astype(jnp.float32) - ref))
    assert err_bf16 < 0.5, f"bf16 max err {err_bf16}"

    print("KERNEL_OK")
</pallas_src>

<mosaic_0001>
module attributes {stable_mosaic.version = 11 : i64} {
  func.func @rcab_kernel(%arg0: i32, %arg1: memref<1x16x16x32xf32, #tpu.memory_space<vmem>>, %arg2: memref<288x32xf32, #tpu.memory_space<vmem>>, %arg3: memref<1x32xf32, #tpu.memory_space<vmem>>, %arg4: memref<288x32xf32, #tpu.memory_space<vmem>>, %arg5: memref<1x32xf32, #tpu.memory_space<vmem>>, %arg6: memref<4x32xf32, #tpu.memory_space<vmem>>, %arg7: memref<4x1xf32, #tpu.memory_space<vmem>>, %arg8: memref<4x32xf32, #tpu.memory_space<vmem>>, %arg9: memref<1x32xf32, #tpu.memory_space<vmem>>, %arg10: memref<1x16x16x32xf32, #tpu.memory_space<vmem>>, %arg11: memref<20x20x32xf32, #tpu.memory_space<vmem>>, %arg12: memref<20x20x32xf32, #tpu.memory_space<vmem>>) attributes {dimension_semantics = [#tpu.dimension_semantics<parallel>], iteration_bounds = array<i64: 2>, scalar_prefetch = 0 : i64, scratch_operands = 2 : i64, tpu.core_type = #tpu.core_type<tc>, window_params = [{transform_indices = @transform_0, window_bounds = array<i64: 1, 16, 16, 32>}, {pipeline_mode = #tpu.pipeline_mode<synchronous>, transform_indices = @transform_1, window_bounds = array<i64: 288, 32>}, {pipeline_mode = #tpu.pipeline_mode<synchronous>, transform_indices = @transform_2, window_bounds = array<i64: 1, 32>}, {pipeline_mode = #tpu.pipeline_mode<synchronous>, transform_indices = @transform_3, window_bounds = array<i64: 288, 32>}, {pipeline_mode = #tpu.pipeline_mode<synchronous>, transform_indices = @transform_4, window_bounds = array<i64: 1, 32>}, {pipeline_mode = #tpu.pipeline_mode<synchronous>, transform_indices = @transform_5, window_bounds = array<i64: 4, 32>}, {pipeline_mode = #tpu.pipeline_mode<synchronous>, transform_indices = @transform_6, window_bounds = array<i64: 4, 1>}, {pipeline_mode = #tpu.pipeline_mode<synchronous>, transform_indices = @transform_7, window_bounds = array<i64: 4, 32>}, {pipeline_mode = #tpu.pipeline_mode<synchronous>, transform_indices = @transform_8, window_bounds = array<i64: 1, 32>}, {transform_indices = @transform_9, window_bounds = array<i64: 1, 16, 16, 32>}]} {
    %cst = arith.constant 0.000000e+00 : f32
    %0 = vector.broadcast %cst : f32 to vector<20x20x32xf32>
    %c0 = arith.constant 0 : index
    %c0_0 = arith.constant 0 : index
    %c0_1 = arith.constant 0 : index
    %1 = vector.load %arg11[%c0, %c0_0, %c0_1] : memref<20x20x32xf32, #tpu.memory_space<vmem>>, vector<20x20x32xf32>
    tpu.vector_store %arg11[%c0, %c0_0, %c0_1], %0 {strides = array<i32>} : memref<20x20x32xf32, #tpu.memory_space<vmem>>, vector<20x20x32xf32>,
    %cst_2 = arith.constant 0.000000e+00 : f32
    %2 = vector.broadcast %cst_2 : f32 to vector<20x20x32xf32>
    %c0_3 = arith.constant 0 : index
    %c0_4 = arith.constant 0 : index
    %c0_5 = arith.constant 0 : index
    %3 = vector.load %arg12[%c0_3, %c0_4, %c0_5] : memref<20x20x32xf32, #tpu.memory_space<vmem>>, vector<20x20x32xf32>
    tpu.vector_store %arg12[%c0_3, %c0_4, %c0_5], %2 {strides = array<i32>} : memref<20x20x32xf32, #tpu.memory_space<vmem>>, vector<20x20x32xf32>,
    %c0_6 = arith.constant 0 : index
    %c0_7 = arith.constant 0 : index
    %c0_8 = arith.constant 0 : index
    %c0_9 = arith.constant 0 : index
    %4 = vector.load %arg1[%c0_6, %c0_7, %c0_8, %c0_9] : memref<1x16x16x32xf32, #tpu.memory_space<vmem>>, vector<1x16x16x32xf32>
    %5 = vector.shape_cast %4 : vector<1x16x16x32xf32> to vector<16x16x32xf32>
    %c2 = arith.constant 2 : index
    %c2_10 = arith.constant 2 : index
    %c0_11 = arith.constant 0 : index
    %6 = vector.load %arg11[%c2, %c2_10, %c0_11] : memref<20x20x32xf32, #tpu.memory_space<vmem>>, vector<16x16x32xf32>
    tpu.vector_store %arg11[%c2, %c2_10, %c0_11], %5 {strides = array<i32>} : memref<20x20x32xf32, #tpu.memory_space<vmem>>, vector<16x16x32xf32>,
    %c0_12 = arith.constant 0 : index
    %c0_13 = arith.constant 0 : index
    %c0_14 = arith.constant 0 : index
    %7 = vector.load %arg11[%c0_12, %c0_13, %c0_14] : memref<20x20x32xf32, #tpu.memory_space<vmem>>, vector<20x20x32xf32>
    %8 = vector.extract_strided_slice %7 {offsets = [0, 0, 0], sizes = [16, 16, 32], strides = [1, 1, 1]} : vector<20x20x32xf32> to vector<16x16x32xf32>
    %9 = vector.shape_cast %8 : vector<16x16x32xf32> to vector<256x32xf32>
    %10 = vector.extract_strided_slice %7 {offsets = [0, 2, 0], sizes = [16, 16, 32], strides = [1, 1, 1]} : vector<20x20x32xf32> to vector<16x16x32xf32>
    %11 = vector.shape_cast %10 : vector<16x16x32xf32> to vector<256x32xf32>
    %12 = vector.extract_strided_slice %7 {offsets = [0, 4, 0], sizes = [16, 16, 32], strides = [1, 1, 1]} : vector<20x20x32xf32> to vector<16x16x32xf32>
    %13 = vector.shape_cast %12 : vector<16x16x32xf32> to vector<256x32xf32>
    %14 = vector.extract_strided_slice %7 {offsets = [2, 0, 0], sizes = [16, 16, 32], strides = [1, 1, 1]} : vector<20x20x32xf32> to vector<16x16x32xf32>
    %15 = vector.shape_cast %14 : vector<16x16x32xf32> to vector<256x32xf32>
    %16 = vector.extract_strided_slice %7 {offsets = [2, 2, 0], sizes = [16, 16, 32], strides = [1, 1, 1]} : vector<20x20x32xf32> to vector<16x16x32xf32>
    %17 = vector.shape_cast %16 : vector<16x16x32xf32> to vector<256x32xf32>
    %18 = vector.extract_strided_slice %7 {offsets = [2, 4, 0], sizes = [16, 16, 32], strides = [1, 1, 1]} : vector<20x20x32xf32> to vector<16x16x32xf32>
    %19 = vector.shape_cast %18 : vector<16x16x32xf32> to vector<256x32xf32>
    %20 = vector.extract_strided_slice %7 {offsets = [4, 0, 0], sizes = [16, 16, 32], strides = [1, 1, 1]} : vector<20x20x32xf32> to vector<16x16x32xf32>
    %21 = vector.shape_cast %20 : vector<16x16x32xf32> to vector<256x32xf32>
    %22 = vector.extract_strided_slice %7 {offsets = [4, 2, 0], sizes = [16, 16, 32], strides = [1, 1, 1]} : vector<20x20x32xf32> to vector<16x16x32xf32>
    %23 = vector.shape_cast %22 : vector<16x16x32xf32> to vector<256x32xf32>
    %24 = vector.extract_strided_slice %7 {offsets = [4, 4, 0], sizes = [16, 16, 32], strides = [1, 1, 1]} : vector<20x20x32xf32> to vector<16x16x32xf32>
    %25 = vector.shape_cast %24 : vector<16x16x32xf32> to vector<256x32xf32>
    %26 = tpu.concatenate %9, %11, %13, %15, %17, %19, %21, %23, %25 in 1 : vector<256x32xf32>, vector<256x32xf32>, vector<256x32xf32>, vector<256x32xf32>, vector<256x32xf32>, vector<256x32xf32>, vector<256x32xf32>, vector<256x32xf32>, vector<256x32xf32> -> vector<256x288xf32>
    %c0_15 = arith.constant 0 : index
    %c0_16 = arith.constant 0 : index
    %27 = vector.load %arg2[%c0_15, %c0_16] : memref<288x32xf32, #tpu.memory_space<vmem>>, vector<288x32xf32>
    %cst_17 = arith.constant dense<0.000000e+00> : vector<256x32xf32>
    %28 = tpu.matmul %26, %27, %cst_17 {dimension_numbers = #tpu.dot_dimension_numbers<[1], [0], [0], [1], [0, 0, 1, 1], [], []>} : vector<256x288xf32>, vector<288x32xf32>, vector<256x32xf32> -> vector<256x32xf32>
    %c0_18 = arith.constant 0 : index
    %c0_19 = arith.constant 0 : index
    %29 = vector.load %arg3[%c0_18, %c0_19] : memref<1x32xf32, #tpu.memory_space<vmem>>, vector<1x32xf32>
    %30 = vector.broadcast %29 : vector<1x32xf32> to vector<256x32xf32>
    %31 = arith.addf %28, %30 : vector<256x32xf32>
    %cst_20 = arith.constant 0.000000e+00 : f32
    %32 = vector.broadcast %cst_20 : f32 to vector<256x32xf32>
    %33 = arith.maximumf %31, %32 : vector<256x32xf32>
    %34 = vector.shape_cast %33 : vector<256x32xf32> to vector<16x16x32xf32>
    %c2_21 = arith.constant 2 : index
    %c2_22 = arith.constant 2 : index
    %c0_23 = arith.constant 0 : index
    %35 = vector.load %arg12[%c2_21, %c2_22, %c0_23] : memref<20x20x32xf32, #tpu.memory_space<vmem>>, vector<16x16x32xf32>
    tpu.vector_store %arg12[%c2_21, %c2_22, %c0_23], %34 {strides = array<i32>} : memref<20x20x32xf32, #tpu.memory_space<vmem>>, vector<16x16x32xf32>,
    %c0_24 = arith.constant 0 : index
    %c0_25 = arith.constant 0 : index
    %c0_26 = arith.constant 0 : index
    %36 = vector.load %arg12[%c0_24, %c0_25, %c0_26] : memref<20x20x32xf32, #tpu.memory_space<vmem>>, vector<20x20x32xf32>
    %37 = vector.extract_strided_slice %36 {offsets = [0, 0, 0], sizes = [16, 16, 32], strides = [1, 1, 1]} : vector<20x20x32xf32> to vector<16x16x32xf32>
    %38 = vector.shape_cast %37 : vector<16x16x32xf32> to vector<256x32xf32>
    %39 = vector.extract_strided_slice %36 {offsets = [0, 2, 0], sizes = [16, 16, 32], strides = [1, 1, 1]} : vector<20x20x32xf32> to vector<16x16x32xf32>
    %40 = vector.shape_cast %39 : vector<16x16x32xf32> to vector<256x32xf32>
    %41 = vector.extract_strided_slice %36 {offsets = [0, 4, 0], sizes = [16, 16, 32], strides = [1, 1, 1]} : vector<20x20x32xf32> to vector<16x16x32xf32>
    %42 = vector.shape_cast %41 : vector<16x16x32xf32> to vector<256x32xf32>
    %43 = vector.extract_strided_slice %36 {offsets = [2, 0, 0], sizes = [16, 16, 32], strides = [1, 1, 1]} : vector<20x20x32xf32> to vector<16x16x32xf32>
    %44 = vector.shape_cast %43 : vector<16x16x32xf32> to vector<256x32xf32>
    %45 = vector.extract_strided_slice %36 {offsets = [2, 2, 0], sizes = [16, 16, 32], strides = [1, 1, 1]} : vector<20x20x32xf32> to vector<16x16x32xf32>
    %46 = vector.shape_cast %45 : vector<16x16x32xf32> to vector<256x32xf32>
    %47 = vector.extract_strided_slice %36 {offsets = [2, 4, 0], sizes = [16, 16, 32], strides = [1, 1, 1]} : vector<20x20x32xf32> to vector<16x16x32xf32>
    %48 = vector.shape_cast %47 : vector<16x16x32xf32> to vector<256x32xf32>
    %49 = vector.extract_strided_slice %36 {offsets = [4, 0, 0], sizes = [16, 16, 32], strides = [1, 1, 1]} : vector<20x20x32xf32> to vector<16x16x32xf32>
    %50 = vector.shape_cast %49 : vector<16x16x32xf32> to vector<256x32xf32>
    %51 = vector.extract_strided_slice %36 {offsets = [4, 2, 0], sizes = [16, 16, 32], strides = [1, 1, 1]} : vector<20x20x32xf32> to vector<16x16x32xf32>
    %52 = vector.shape_cast %51 : vector<16x16x32xf32> to vector<256x32xf32>
    %53 = vector.extract_strided_slice %36 {offsets = [4, 4, 0], sizes = [16, 16, 32], strides = [1, 1, 1]} : vector<20x20x32xf32> to vector<16x16x32xf32>
    %54 = vector.shape_cast %53 : vector<16x16x32xf32> to vector<256x32xf32>
    %55 = tpu.concatenate %38, %40, %42, %44, %46, %48, %50, %52, %54 in 1 : vector<256x32xf32>, vector<256x32xf32>, vector<256x32xf32>, vector<256x32xf32>, vector<256x32xf32>, vector<256x32xf32>, vector<256x32xf32>, vector<256x32xf32>, vector<256x32xf32> -> vector<256x288xf32>
    %c0_27 = arith.constant 0 : index
    %c0_28 = arith.constant 0 : index
    %56 = vector.load %arg4[%c0_27, %c0_28] : memref<288x32xf32, #tpu.memory_space<vmem>>, vector<288x32xf32>
    %cst_29 = arith.constant dense<0.000000e+00> : vector<256x32xf32>
    %57 = tpu.matmul %55, %56, %cst_29 {dimension_numbers = #tpu.dot_dimension_numbers<[1], [0], [0], [1], [0, 0, 1, 1], [], []>} : vector<256x288xf32>, vector<288x32xf32>, vector<256x32xf32> -> vector<256x32xf32>
    %c0_30 = arith.constant 0 : index
    %c0_31 = arith.constant 0 : index
    %58 = vector.load %arg5[%c0_30, %c0_31] : memref<1x32xf32, #tpu.memory_space<vmem>>, vector<1x32xf32>
    %59 = vector.broadcast %58 : vector<1x32xf32> to vector<256x32xf32>
    %60 = arith.addf %57, %59 : vector<256x32xf32>
    %cst_32 = arith.constant dense<0.000000e+00> : vector<32xf32>
    %61 = vector.multi_reduction <add>, %60, %cst_32 [0] : vector<256x32xf32> to vector<32xf32>
    %62 = vector.shape_cast %61 : vector<32xf32> to vector<1x32xf32>
    %cst_33 = arith.constant 3.906250e-03 : f32
    %63 = vector.broadcast %cst_33 : f32 to vector<1x32xf32>
    %64 = arith.mulf %62, %63 : vector<1x32xf32>
    %c0_34 = arith.constant 0 : index
    %c0_35 = arith.constant 0 : index
    %65 = vector.load %arg6[%c0_34, %c0_35] : memref<4x32xf32, #tpu.memory_space<vmem>>, vector<4x32xf32>
    %66 = vector.broadcast %64 : vector<1x32xf32> to vector<4x32xf32>
    %67 = arith.mulf %65, %66 : vector<4x32xf32>
    %cst_36 = arith.constant dense<0.000000e+00> : vector<4xf32>
    %68 = vector.multi_reduction <add>, %67, %cst_36 [1] : vector<4x32xf32> to vector<4xf32>
    %69 = vector.shape_cast %68 : vector<4xf32> to vector<4x1xf32>
    %c0_37 = arith.constant 0 : index
    %c0_38 = arith.constant 0 : index
    %70 = vector.load %arg7[%c0_37, %c0_38] : memref<4x1xf32, #tpu.memory_space<vmem>>, vector<4x1xf32>
    %71 = arith.addf %69, %70 : vector<4x1xf32>
    %cst_39 = arith.constant 0.000000e+00 : f32
    %72 = vector.broadcast %cst_39 : f32 to vector<4x1xf32>
    %73 = arith.maximumf %71, %72 : vector<4x1xf32>
    %c0_40 = arith.constant 0 : index
    %c0_41 = arith.constant 0 : index
    %74 = vector.load %arg8[%c0_40, %c0_41] : memref<4x32xf32, #tpu.memory_space<vmem>>, vector<4x32xf32>
    %75 = vector.broadcast %73 : vector<4x1xf32> to vector<4x32xf32>
    %76 = arith.mulf %74, %75 : vector<4x32xf32>
    %cst_42 = arith.constant dense<0.000000e+00> : vector<32xf32>
    %77 = vector.multi_reduction <add>, %76, %cst_42 [0] : vector<4x32xf32> to vector<32xf32>
    %78 = vector.shape_cast %77 : vector<32xf32> to vector<1x32xf32>
    %c0_43 = arith.constant 0 : index
    %c0_44 = arith.constant 0 : index
    %79 = vector.load %arg9[%c0_43, %c0_44] : memref<1x32xf32, #tpu.memory_space<vmem>>, vector<1x32xf32>
    %80 = arith.addf %78, %79 : vector<1x32xf32>
    %81 = arith.negf %80 : vector<1x32xf32>
    %82 = math.exp %81 : vector<1x32xf32>
    %cst_45 = arith.constant 1.000000e+00 : f32
    %83 = vector.broadcast %cst_45 : f32 to vector<1x32xf32>
    %84 = arith.addf %83, %82 : vector<1x32xf32>
    %85 = arith.divf %83, %84 : vector<1x32xf32>
    %86 = vector.broadcast %85 : vector<1x32xf32> to vector<256x32xf32>
    %87 = arith.mulf %60, %86 : vector<256x32xf32>
    %88 = vector.shape_cast %5 : vector<16x16x32xf32> to vector<256x32xf32>
    %89 = arith.addf %87, %88 : vector<256x32xf32>
    %90 = vector.shape_cast %89 : vector<256x32xf32> to vector<1x16x16x32xf32>
    %c0_46 = arith.constant 0 : index
    %c0_47 = arith.constant 0 : index
    %c0_48 = arith.constant 0 : index
    %c0_49 = arith.constant 0 : index
    %91 = vector.load %arg10[%c0_46, %c0_47, %c0_48, %c0_49] : memref<1x16x16x32xf32, #tpu.memory_space<vmem>>, vector<1x16x16x32xf32>
    tpu.vector_store %arg10[%c0_46, %c0_47, %c0_48, %c0_49], %90 {strides = array<i32>} : memref<1x16x16x32xf32, #tpu.memory_space<vmem>>, vector<1x16x16x32xf32>,
    return
  }
  func.func @transform_0(%arg0: i32) -> (i32, i32, i32, i32) {
    %c0_i32 = arith.constant 0 : i32
    %c0_i32_0 = arith.constant 0 : i32
    %c0_i32_1 = arith.constant 0 : i32
    %c0_i32_2 = arith.constant 0 : i32
    return %arg0, %c0_i32, %c0_i32_0, %c0_i32_1 : i32, i32, i32, i32
  }
  func.func @transform_1(%arg0: i32) -> (i32, i32) {
    %c0_i32 = arith.constant 0 : i32
    %c0_i32_0 = arith.constant 0 : i32
    %c0_i32_1 = arith.constant 0 : i32
    return %c0_i32, %c0_i32_0 : i32, i32
  }
  func.func @transform_2(%arg0: i32) -> (i32, i32) {
    %c0_i32 = arith.constant 0 : i32
    %c0_i32_0 = arith.constant 0 : i32
    %c0_i32_1 = arith.constant 0 : i32
    return %c0_i32, %c0_i32_0 : i32, i32
  }
  func.func @transform_3(%arg0: i32) -> (i32, i32) {
    %c0_i32 = arith.constant 0 : i32
    %c0_i32_0 = arith.constant 0 : i32
    %c0_i32_1 = arith.constant 0 : i32
    return %c0_i32, %c0_i32_0 : i32, i32
  }
  func.func @transform_4(%arg0: i32) -> (i32, i32) {
    %c0_i32 = arith.constant 0 : i32
    %c0_i32_0 = arith.constant 0 : i32
    %c0_i32_1 = arith.constant 0 : i32
    return %c0_i32, %c0_i32_0 : i32, i32
  }
  func.func @transform_5(%arg0: i32) -> (i32, i32) {
    %c0_i32 = arith.constant 0 : i32
    %c0_i32_0 = arith.constant 0 : i32
    %c0_i32_1 = arith.constant 0 : i32
    return %c0_i32, %c0_i32_0 : i32, i32
  }
  func.func @transform_6(%arg0: i32) -> (i32, i32) {
    %c0_i32 = arith.constant 0 : i32
    %c0_i32_0 = arith.constant 0 : i32
    %c0_i32_1 = arith.constant 0 : i32
    return %c0_i32, %c0_i32_0 : i32, i32
  }
  func.func @transform_7(%arg0: i32) -> (i32, i32) {
    %c0_i32 = arith.constant 0 : i32
    %c0_i32_0 = arith.constant 0 : i32
    %c0_i32_1 = arith.constant 0 : i32
    return %c0_i32, %c0_i32_0 : i32, i32
  }
  func.func @transform_8(%arg0: i32) -> (i32, i32) {
    %c0_i32 = arith.constant 0 : i32
    %c0_i32_0 = arith.constant 0 : i32
    %c0_i32_1 = arith.constant 0 : i32
    return %c0_i32, %c0_i32_0 : i32, i32
  }
  func.func @transform_9(%arg0: i32) -> (i32, i32, i32, i32) {
    %c0_i32 = arith.constant 0 : i32
    %c0_i32_0 = arith.constant 0 : i32
    %c0_i32_1 = arith.constant 0 : i32
    %c0_i32_2 = arith.constant 0 : i32
    return %arg0, %c0_i32, %c0_i32_0, %c0_i32_1 : i32, i32, i32, i32
  }
}

</mosaic_0001>

<llo_original>
// kernel: tpu_custom_call.1
$region0: #{tpu_custom_call.1}
  #allocation0 [shape = 'u32[]', space=smem, size = 0x4, offset = 0x4, fixed_abs, tag = 'smem constant byte address 0x4 - core index']
  #allocation1 [shape = 'u32[144,128]{1,0:T(1,128)}', space=vmem, size = 0x12000, scoped, tag = 'internal scratch']
  #allocation2 [shape = 'f32[20,20,32]{2,1,0:T(8,128)}', space=vmem, size = 0x3c000, scoped, tag = 'scratch operand']
  #allocation3 [shape = 'f32[20,20,32]{2,1,0:T(8,128)}', space=vmem, size = 0x3c000, scoped, tag = 'scratch operand']
  %s0 = inlined_call_operand.vmem [shape: f32[2,16,16,32], index: 0, kind: input, shape index: {}]
  %s1 = inlined_call_operand.vmem [shape: f32[288,32], index: 1, kind: input, shape index: {}]
  %s2 = inlined_call_operand.vmem [shape: f32[1,32], index: 2, kind: input, shape index: {}]
  %s3 = inlined_call_operand.vmem [shape: f32[288,32], index: 3, kind: input, shape index: {}]
  %s4 = inlined_call_operand.vmem [shape: f32[1,32], index: 4, kind: input, shape index: {}]
  %s5 = inlined_call_operand.vmem [shape: f32[4,32], index: 5, kind: input, shape index: {}]
  %s6 = inlined_call_operand.vmem [shape: f32[4,1], index: 6, kind: input, shape index: {}]
  %s7 = inlined_call_operand.vmem [shape: f32[4,32], index: 7, kind: input, shape index: {}]
  %s8 = inlined_call_operand.vmem [shape: f32[1,32], index: 8, kind: input, shape index: {}]
  %s9 = inlined_call_operand.hbm [shape: f32[2,16,16,32], index: 9, kind: output, shape index: {}]
  %s10 = sld [smem:[#allocation0]]
  $region69: #{tpu_custom_call.1} parent=0
    _
  %s12 = ssub.s32 1, %s10
  %s13 = scalar_select 0, %s12, %s10
  $region1: #{tpu_custom_call.1} parent=0
    #allocation4 [shape = 'u8[262144]{0}', space=vmem, size = 0x40000, scoped, tag = 'output window, operand 0']
    #allocation5 [shape = 's32[2]{0}', space=sflag, size = 0x8, scoped, tag = 'scoped memory for tpu_custom_call.1']
    %14 = vsyncpa [#allocation5], 0
    %s15 = scalar_lea.sflag [#allocation5], 1
    %16 = vsyncpa %s15, 0
    loop: start=0, step=1, limit=4
    $region2: #{tpu_custom_call.1} parent=1 // loop_pre_header
      _
    $region3: #{tpu_custom_call.1} parent=1 // loop_header
      %s18 = sphi 0, %s22
      %p19 = scmp.ge.s32.totalorder %s18, 4
      %s28 = sphi 0, %s30
      %s31 = sphi 0, %s28
      %s32 = sphi 0, %s31
      %s48 = sphi 0, %s32
      %s52 = sphi 0, %s52
      %s54 = sphi 0, %s52
      %s55 = sphi 0, %s54
      %s69 = sphi 0, %s55
      %s73 = sphi 0, %s73
      %s75 = sphi 0, %s73
      %s76 = sphi 0, %s75
      %s90 = sphi 0, %s76
      %s94 = sphi 0, %s94
      %s96 = sphi 0, %s94
      %s97 = sphi 0, %s96
      %s111 = sphi 0, %s97
      %s115 = sphi 0, %s115
      %s117 = sphi 0, %s115
      %s118 = sphi 0, %s117
      %s132 = sphi 0, %s118
      %s136 = sphi 0, %s136
      %s138 = sphi 0, %s136
      %s139 = sphi 0, %s138
      %s153 = sphi 0, %s139
      %s157 = sphi 0, %s157
      %s159 = sphi 0, %s157
      %s160 = sphi 0, %s159
      %s174 = sphi 0, %s160
      %s178 = sphi 0, %s178
      %s180 = sphi 0, %s178
      %s181 = sphi 0, %s180
      %s195 = sphi 0, %s181
      %s199 = sphi 0, %s199
      %s201 = sphi 0, %s199
      %s202 = sphi 0, %s201
      %s216 = sphi 0, %s202
      %s222 = sphi 0, %s224
      %s225 = sphi 0, %s222
      %s226 = sphi 0, %s225
      %s242 = sphi 0, %s226
    $region4: #{tpu_custom_call.1} parent=1 // loop_header_branch
      %21 = sbr.rel (%p19) target = $region8
    $region5: #{tpu_custom_call.1} parent=1 // loop_body
      %s23 = ssub.s32 %s18, 1
      %s24 = ssub.s32 %s18, 2
      %s25 = sadd.s32 %s18, 1
      %s26 = ssub.s32 %s18, %s25
      %p27 = scmp.eq.s32.totalorder %s26, 0
      %s29 = sadd.s32 %s28, 1
      %s30 = scalar_select %p27, %s28, %s29
      %p33 = pneg %p27
      %p34 = scmp.eq.s32.totalorder %s18, 1
      %p35 = por %p33, %p34
      %p36 = scmp.ne.s32.totalorder %s28, %s31
      %p37 = scmp.eq.s32.totalorder %s18, 0
      %p38 = por %p36, %p37
      %p39 = scmp.ne.s32.totalorder %s28, %s31
      %p40 = scmp.eq.s32.totalorder %s23, 1
      %p41 = por %p39, %p40
      %p42 = scmp.ne.s32.totalorder %s31, %s32
      %p43 = scmp.eq.s32.totalorder %s23, 0
      %p44 = por %p42, %p43
      %p45 = scmp.ne.s32.totalorder %s31, %s32
      %p46 = scmp.eq.s32.totalorder %s24, 1
      %p47 = por %p45, %p46
      %p49 = scmp.ne.s32.totalorder %s32, %s48
      %p50 = scmp.eq.s32.totalorder %s24, 0
      %p51 = por %p49, %p50
      %s53 = sadd.s32 %s52, 1
      %p56 = scmp.eq.s32.totalorder %s18, 1
      %p57 = scmp.ne.s32.totalorder %s52, %s54
      %p58 = scmp.eq.s32.totalorder %s18, 0
      %p59 = por %p57, %p58
      %p60 = scmp.ne.s32.totalorder %s52, %s54
      %p61 = scmp.eq.s32.totalorder %s23, 1
      %p62 = por %p60, %p61
      %p63 = scmp.ne.s32.totalorder %s54, %s55
      %p64 = scmp.eq.s32.totalorder %s23, 0
      %p65 = por %p63, %p64
      %p66 = scmp.ne.s32.totalorder %s54, %s55
      %p67 = scmp.eq.s32.totalorder %s24, 1
      %p68 = por %p66, %p67
      %p70 = scmp.ne.s32.totalorder %s55, %s69
      %p71 = scmp.eq.s32.totalorder %s24, 0
      %p72 = por %p70, %p71
      %s74 = sadd.s32 %s73, 1
      %p77 = scmp.eq.s32.totalorder %s18, 1
      %p78 = scmp.ne.s32.totalorder %s73, %s75
      %p79 = scmp.eq.s32.totalorder %s18, 0
      %p80 = por %p78, %p79
      %p81 = scmp.ne.s32.totalorder %s73, %s75
      %p82 = scmp.eq.s32.totalorder %s23, 1
      %p83 = por %p81, %p82
      %p84 = scmp.ne.s32.totalorder %s75, %s76
      %p85 = scmp.eq.s32.totalorder %s23, 0
      %p86 = por %p84, %p85
      %p87 = scmp.ne.s32.totalorder %s75, %s76
      %p88 = scmp.eq.s32.totalorder %s24, 1
      %p89 = por %p87, %p88
      %p91 = scmp.ne.s32.totalorder %s76, %s90
      %p92 = scmp.eq.s32.totalorder %s24, 0
      %p93 = por %p91, %p92
      %s95 = sadd.s32 %s94, 1
      %p98 = scmp.eq.s32.totalorder %s18, 1
      %p99 = scmp.ne.s32.totalorder %s94, %s96
      %p100 = scmp.eq.s32.totalorder %s18, 0
      %p101 = por %p99, %p100
      %p102 = scmp.ne.s32.totalorder %s94, %s96
      %p103 = scmp.eq.s32.totalorder %s23, 1
      %p104 = por %p102, %p103
      %p105 = scmp.ne.s32.totalorder %s96, %s97
      %p106 = scmp.eq.s32.totalorder %s23, 0
      %p107 = por %p105, %p106
      %p108 = scmp.ne.s32.totalorder %s96, %s97
      %p109 = scmp.eq.s32.totalorder %s24, 1
      %p110 = por %p108, %p109
      %p112 = scmp.ne.s32.totalorder %s97, %s111
      %p113 = scmp.eq.s32.totalorder %s24, 0
      %p114 = por %p112, %p113
      %s116 = sadd.s32 %s115, 1
      %p119 = scmp.eq.s32.totalorder %s18, 1
      %p120 = scmp.ne.s32.totalorder %s115, %s117
      %p121 = scmp.eq.s32.totalorder %s18, 0
      %p122 = por %p120, %p121
      %p123 = scmp.ne.s32.totalorder %s115, %s117
      %p124 = scmp.eq.s32.totalorder %s23, 1
      %p125 = por %p123, %p124
      %p126 = scmp.ne.s32.totalorder %s117, %s118
      %p127 = scmp.eq.s32.totalorder %s23, 0
      %p128 = por %p126, %p127
      %p129 = scmp.ne.s32.totalorder %s117, %s118
      %p130 = scmp.eq.s32.totalorder %s24, 1
      %p131 = por %p129, %p130
      %p133 = scmp.ne.s32.totalorder %s118, %s132
      %p134 = scmp.eq.s32.totalorder %s24, 0
      %p135 = por %p133, %p134
      %s137 = sadd.s32 %s136, 1
      %p140 = scmp.eq.s32.totalorder %s18, 1
      %p141 = scmp.ne.s32.totalorder %s136, %s138
      %p142 = scmp.eq.s32.totalorder %s18, 0
      %p143 = por %p141, %p142
      %p144 = scmp.ne.s32.totalorder %s136, %s138
      %p145 = scmp.eq.s32.totalorder %s23, 1
      %p146 = por %p144, %p145
      %p147 = scmp.ne.s32.totalorder %s138, %s139
      %p148 = scmp.eq.s32.totalorder %s23, 0
      %p149 = por %p147, %p148
      %p150 = scmp.ne.s32.totalorder %s138, %s139
      %p151 = scmp.eq.s32.totalorder %s24, 1
      %p152 = por %p150, %p151
      %p154 = scmp.ne.s32.totalorder %s139, %s153
      %p155 = scmp.eq.s32.totalorder %s24, 0
      %p156 = por %p154, %p155
      %s158 = sadd.s32 %s157, 1
      %p161 = scmp.eq.s32.totalorder %s18, 1
      %p162 = scmp.ne.s32.totalorder %s157, %s159
      %p163 = scmp.eq.s32.totalorder %s18, 0
      %p164 = por %p162, %p163
      %p165 = scmp.ne.s32.totalorder %s157, %s159
      %p166 = scmp.eq.s32.totalorder %s23, 1
      %p167 = por %p165, %p166
      %p168 = scmp.ne.s32.totalorder %s159, %s160
      %p169 = scmp.eq.s32.totalorder %s23, 0
      %p170 = por %p168, %p169
      %p171 = scmp.ne.s32.totalorder %s159, %s160
      %p172 = scmp.eq.s32.totalorder %s24, 1
      %p173 = por %p171, %p172
      %p175 = scmp.ne.s32.totalorder %s160, %s174
      %p176 = scmp.eq.s32.totalorder %s24, 0
      %p177 = por %p175, %p176
      %s179 = sadd.s32 %s178, 1
      %p182 = scmp.eq.s32.totalorder %s18, 1
      %p183 = scmp.ne.s32.totalorder %s178, %s180
      %p184 = scmp.eq.s32.totalorder %s18, 0
      %p185 = por %p183, %p184
      %p186 = scmp.ne.s32.totalorder %s178, %s180
      %p187 = scmp.eq.s32.totalorder %s23, 1
      %p188 = por %p186, %p187
      %p189 = scmp.ne.s32.totalorder %s180, %s181
      %p190 = scmp.eq.s32.totalorder %s23, 0
      %p191 = por %p189, %p190
      %p192 = scmp.ne.s32.totalorder %s180, %s181
      %p193 = scmp.eq.s32.totalorder %s24, 1
      %p194 = por %p192, %p193
      %p196 = scmp.ne.s32.totalorder %s181, %s195
      %p197 = scmp.eq.s32.totalorder %s24, 0
      %p198 = por %p196, %p197
      %s200 = sadd.s32 %s199, 1
      %p203 = scmp.eq.s32.totalorder %s18, 1
      %p204 = scmp.ne.s32.totalorder %s199, %s201
      %p205 = scmp.eq.s32.totalorder %s18, 0
      %p206 = por %p204, %p205
      %p207 = scmp.ne.s32.totalorder %s199, %s201
      %p208 = scmp.eq.s32.totalorder %s23, 1
      %p209 = por %p207, %p208
      %p210 = scmp.ne.s32.totalorder %s201, %s202
      %p211 = scmp.eq.s32.totalorder %s23, 0
      %p212 = por %p210, %p211
      %p213 = scmp.ne.s32.totalorder %s201, %s202
      %p214 = scmp.eq.s32.totalorder %s24, 1
      %p215 = por %p213, %p214
      %p217 = scmp.ne.s32.totalorder %s202, %s216
      %p218 = scmp.eq.s32.totalorder %s24, 0
      %p219 = por %p217, %p218
      %s220 = ssub.s32 %s18, %s25
      %p221 = scmp.eq.s32.totalorder %s220, 0
      %s223 = sadd.s32 %s222, 1
      %s224 = scalar_select %p221, %s222, %s223
      %p227 = pneg %p221
      %p228 = scmp.eq.s32.totalorder %s18, 1
      %p229 = por %p227, %p228
      %p230 = scmp.ne.s32.totalorder %s222, %s225
      %p231 = scmp.eq.s32.totalorder %s18, 0
      %p232 = por %p230, %p231
      %p233 = scmp.ne.s32.totalorder %s222, %s225
      %p234 = scmp.eq.s32.totalorder %s23, 1
      %p235 = por %p233, %p234
      %p236 = scmp.ne.s32.totalorder %s225, %s226
      %p237 = scmp.eq.s32.totalorder %s23, 0
      %p238 = por %p236, %p237
      %p239 = scmp.ne.s32.totalorder %s225, %s226
      %p240 = scmp.eq.s32.totalorder %s24, 1
      %p241 = por %p239, %p240
      %p243 = scmp.ne.s32.totalorder %s226, %s242
      %p244 = scmp.eq.s32.totalorder %s24, 0
      %p245 = por %p243, %p244
      %p246 = scmp.le.s32.totalorder 1, %s18
      %p247 = scmp.lt.s32.totalorder %s18, 3
      %p248 = pnand %p246, %p247
      %p249 = pneg %p248
      // Predicated region
      $region9: #{tpu_custom_call.1} parent=5 // pred_check
        _
      $region10: #{tpu_custom_call.1} parent=5 // pred_check_branch
        %251 = sbr.rel (%p248) target = $region12
      $region11: #{tpu_custom_call.1} parent=5 // pred_region
        %s252 = ssub.s32 %s18, 1
        // Predicated region
        $region13: #{tpu_custom_call.1} parent=11 // pred_check
          %p253 = pneg %p65
        $region14: #{tpu_custom_call.1} parent=11 // pred_check_branch
          %255 = sbr.rel (%p253) target = $region16
        $region15: #{tpu_custom_call.1} parent=11 // pred_region
          _
        $region16: #{tpu_custom_call.1} parent=11 // pred_fallthru
          _
        // Predicated region
        $region17: #{tpu_custom_call.1} parent=11 // pred_check
          %p256 = pneg %p86
        $region18: #{tpu_custom_call.1} parent=11 // pred_check_branch
          %258 = sbr.rel (%p256) target = $region20
        $region19: #{tpu_custom_call.1} parent=11 // pred_region
          _
        $region20: #{tpu_custom_call.1} parent=11 // pred_fallthru
          _
        // Predicated region
        $region21: #{tpu_custom_call.1} parent=11 // pred_check
          %p259 = pneg %p107
        $region22: #{tpu_custom_call.1} parent=11 // pred_check_branch
          %261 = sbr.rel (%p259) target = $region24
        $region23: #{tpu_custom_call.1} parent=11 // pred_region
          _
        $region24: #{tpu_custom_call.1} parent=11 // pred_fallthru
          _
        // Predicated region
        $region25: #{tpu_custom_call.1} parent=11 // pred_check
          %p262 = pneg %p128
        $region26: #{tpu_custom_call.1} parent=11 // pred_check_branch
          %264 = sbr.rel (%p262) target = $region28
        $region27: #{tpu_custom_call.1} parent=11 // pred_region
          _
        $region28: #{tpu_custom_call.1} parent=11 // pred_fallthru
          _
        // Predicated region
        $region29: #{tpu_custom_call.1} parent=11 // pred_check
          %p265 = pneg %p149
        $region30: #{tpu_custom_call.1} parent=11 // pred_check_branch
          %267 = sbr.rel (%p265) target = $region32
        $region31: #{tpu_custom_call.1} parent=11 // pred_region
          _
        $region32: #{tpu_custom_call.1} parent=11 // pred_fallthru
          _
        // Predicated region
        $region33: #{tpu_custom_call.1} parent=11 // pred_check
          %p268 = pneg %p170
        $region34: #{tpu_custom_call.1} parent=11 // pred_check_branch
          %270 = sbr.rel (%p268) target = $region36
        $region35: #{tpu_custom_call.1} parent=11 // pred_region
          _
        $region36: #{tpu_custom_call.1} parent=11 // pred_fallthru
          _
        // Predicated region
        $region37: #{tpu_custom_call.1} parent=11 // pred_check
          %p271 = pneg %p191
        $region38: #{tpu_custom_call.1} parent=11 // pred_check_branch
          %273 = sbr.rel (%p271) target = $region40
        $region39: #{tpu_custom_call.1} parent=11 // pred_region
          _
        $region40: #{tpu_custom_call.1} parent=11 // pred_fallthru
          _
        // Predicated region
        $region41: #{tpu_custom_call.1} parent=11 // pred_check
          %p274 = pneg %p212
        $region42: #{tpu_custom_call.1} parent=11 // pred_check_branch
          %276 = sbr.rel (%p274) target = $region44
        $region43: #{tpu_custom_call.1} parent=11 // pred_region
          _
        $region44: #{tpu_custom_call.1} parent=11 // pred_fallthru
          _
      $region12: #{tpu_custom_call.1} parent=5 // pred_fallthru
        _
      %p277 = scmp.lt.s32.totalorder %s18, 2
      // Predicated region
      $region45: #{tpu_custom_call.1} parent=5 // pred_check
        %p278 = pneg %p277
      $region46: #{tpu_custom_call.1} parent=5 // pred_check_branch
        %280 = sbr.rel (%p278) target = $region48
      $region47: #{tpu_custom_call.1} parent=5 // pred_region
        // Predicated region
        $region49: #{tpu_custom_call.1} parent=47 // pred_check
          %p281 = pneg %p38
        $region50: #{tpu_custom_call.1} parent=47 // pred_check_branch
          %283 = sbr.rel (%p281) target = $region52
        $region51: #{tpu_custom_call.1} parent=47 // pred_region
          %p284 = scmp.lt.s32.totalorder %s18, 1
          %s285 = scalar_select %p284, %s18, 1
          %s286 = smul.addr %s285, 32
          %s287 = smul.addr %s286, 8
          %s288 = scalar_lea.vmem %s0, %s287
        $region52: #{tpu_custom_call.1} parent=47 // pred_fallthru
          _
      $region48: #{tpu_custom_call.1} parent=5 // pred_fallthru
        _
      %p289 = scmp.le.s32.totalorder 1, %s18
      %p290 = scmp.lt.s32.totalorder %s18, 3
      %p291 = pnand %p289, %p290
      %p292 = pneg %p291
      // Predicated region
      $region53: #{tpu_custom_call.1} parent=5 // pred_check
        _
      $region54: #{tpu_custom_call.1} parent=5 // pred_check_branch
        %294 = sbr.rel (%p291) target = $region56
      $region55: #{tpu_custom_call.1} parent=5 // pred_region
        %s295 = ssub.s32 %s18, 1
        %p296 = scmp.lt.s32.totalorder %s23, 1
        %s297 = scalar_select %p296, %s23, 1
        %s298 = smul.addr %s297, 32
        %s299 = smul.addr %s298, 8
        %s300 = scalar_lea.vmem %s0, %s299
        %p301 = pneg %p44
        %p302 = pneg %p41
        %p303 = pneg %p65
        %p304 = pneg %p62
        %p305 = pneg %p86
        %p306 = pneg %p83
        %p307 = pneg %p107
        %p308 = pneg %p104
        %p309 = pneg %p128
        %p310 = pneg %p125
        %p311 = pneg %p149
        %p312 = pneg %p146
        %p313 = pneg %p170
        %p314 = pneg %p167
        %p315 = pneg %p191
        %p316 = pneg %p188
        %p317 = pneg %p212
        %p318 = pneg %p209
        %p319 = pneg %p238
        %p320 = pneg %p235
        %s321 = sand.u32 %s225, 1
        %s322 = scalar_lea.sflag [#allocation5], %s321
        %s323 = sand.u32 %s225, 1
        %s324 = smul.addr %s323, 256
        %s325 = scalar_lea.vmem [#allocation4], %s324
        %p326 = scmp.lt.s32.totalorder %s23, 1
        %s327 = scalar_select %p326, %s23, 1
        %s328 = smul.addr %s327, 32
        %s329 = smul.addr %s328, 8
        %s330 = scalar_lea.vmem %s0, %s329
        %vm331 = vcmask 261120
        %332 = vst.msk [vmem:[#allocation2] sm:$0xff] %vm331, 0.0
        %333 = vst.msk [vmem:[#allocation2 + $0x8] sm:$0xff] %vm331, 0.0
        %vm334 = vcmask 257024
        %335 = vst.msk [vmem:[#allocation2 + $0x10] sm:$0xf] %vm334, 0.0
        %336 = vst.msk [vmem:[#allocation2 + $0x18] sm:$0xff] %vm331, 0.0
        %337 = vst.msk [vmem:[#allocation2 + $0x20] sm:$0xff] %vm331, 0.0
        %338 = vst.msk [vmem:[#allocation2 + $0x28] sm:$0xf] %vm334, 0.0
        %339 = vst.msk [vmem:[#allocation2 + $0x30] sm:$0xff] %vm331, 0.0
        %340 = vst.msk [vmem:[#allocation2 + $0x38] sm:$0xff] %vm331, 0.0
        %341 = vst.msk [vmem:[#allocation2 + $0x40] sm:$0xf] %vm334, 0.0
        %342 = vst.msk [vmem:[#allocation2 + $0x48] sm:$0xff] %vm331, 0.0
        %343 = vst.msk [vmem:[#allocation2 + $0x50] sm:$0xff] %vm331, 0.0
        %344 = vst.msk [vmem:[#allocation2 + $0x58] sm:$0xf] %vm334, 0.0
        %345 = vst.msk [vmem:[#allocation2 + $0x60] sm:$0xff] %vm331, 0.0
        %346 = vst.msk [vmem:[#allocation2 + $0x68] sm:$0xff] %vm331, 0.0
        %347 = vst.msk [vmem:[#allocation2 + $0x70] sm:$0xf] %vm334, 0.0
        %348 = vst.msk [vmem:[#allocation2 + $0x78] sm:$0xff] %vm331, 0.0
        %349 = vst.msk [vmem:[#allocation2 + $0x80] sm:$0xff] %vm331, 0.0
        %350 = vst.msk [vmem:[#allocation2 + $0x88] sm:$0xf] %vm334, 0.0
        %351 = vst.msk [vmem:[#allocation2 + $0x90] sm:$0xff] %vm331, 0.0
        %352 = vst.msk [vmem:[#allocation2 + $0x98] sm:$0xff] %vm331, 0.0
        %353 = vst.msk [vmem:[#allocation2 + $0xa0] sm:$0xf] %vm334, 0.0
        %354 = vst.msk [vmem:[#allocation2 + $0xa8] sm:$0xff] %vm331, 0.0
        %355 = vst.msk [vmem:[#allocation2 + $0xb0] sm:$0xff] %vm331, 0.0
        %356 = vst.msk [vmem:[#allocation2 + $0xb8] sm:$0xf] %vm334, 0.0
        %357 = vst.msk [vmem:[#allocation2 + $0xc0] sm:$0xff] %vm331, 0.0
        %358 = vst.msk [vmem:[#allocation2 + $0xc8] sm:$0xff] %vm331, 0.0
        %359 = vst.msk [vmem:[#allocation2 + $0xd0] sm:$0xf] %vm334, 0.0
        %360 = vst.msk [vmem:[#allocation2 + $0xd8] sm:$0xff] %vm331, 0.0
        %361 = vst.msk [vmem:[#allocation2 + $0xe0] sm:$0xff] %vm331, 0.0
        %362 = vst.msk [vmem:[#allocation2 + $0xe8] sm:$0xf] %vm334, 0.0
        %363 = vst.msk [vmem:[#allocation2 + $0xf0] sm:$0xff] %vm331, 0.0
        %364 = vst.msk [vmem:[#allocation2 + $0xf8] sm:$0xff] %vm331, 0.0
        %365 = vst.msk [vmem:[#allocation2 + $0x100] sm:$0xf] %vm334, 0.0
        %366 = vst.msk [vmem:[#allocation2 + $0x108] sm:$0xff] %vm331, 0.0
        %367 = vst.msk [vmem:[#allocation2 + $0x110] sm:$0xff] %vm331, 0.0
        %368 = vst.msk [vmem:[#allocation2 + $0x118] sm:$0xf] %vm334, 0.0
        %369 = vst.msk [vmem:[#allocation2 + $0x120] sm:$0xff] %vm331, 0.0
        %370 = vst.msk [vmem:[#allocation2 + $0x128] sm:$0xff] %vm331, 0.0
        %371 = vst.msk [vmem:[#allocation2 + $0x130] sm:$0xf] %vm334, 0.0
        %372 = vst.msk [vmem:[#allocation2 + $0x138] sm:$0xff] %vm331, 0.0
        %373 = vst.msk [vmem:[#allocation2 + $0x140] sm:$0xff] %vm331, 0.0
        %374 = vst.msk [vmem:[#allocation2 + $0x148] sm:$0xf] %vm334, 0.0
        %375 = vst.msk [vmem:[#allocation2 + $0x150] sm:$0xff] %vm331, 0.0
        %376 = vst.msk [vmem:[#allocation2 + $0x158] sm:$0xff] %vm331, 0.0
        %377 = vst.msk [vmem:[#allocation2 + $0x160] sm:$0xf] %vm334, 0.0
        %378 = vst.msk [vmem:[#allocation2 + $0x168] sm:$0xff] %vm331, 0.0
        %379 = vst.msk [vmem:[#allocation2 + $0x170] sm:$0xff] %vm331, 0.0
        %380 = vst.msk [vmem:[#allocation2 + $0x178] sm:$0xf] %vm334, 0.0
        %381 = vst.msk [vmem:[#allocation2 + $0x180] sm:$0xff] %vm331, 0.0
        %382 = vst.msk [vmem:[#allocation2 + $0x188] sm:$0xff] %vm331, 0.0
        %383 = vst.msk [vmem:[#allocation2 + $0x190] sm:$0xf] %vm334, 0.0
        %384 = vst.msk [vmem:[#allocation2 + $0x198] sm:$0xff] %vm331, 0.0
        %385 = vst.msk [vmem:[#allocation2 + $0x1a0] sm:$0xff] %vm331, 0.0
        %386 = vst.msk [vmem:[#allocation2 + $0x1a8] sm:$0xf] %vm334, 0.0
        %387 = vst.msk [vmem:[#allocation2 + $0x1b0] sm:$0xff] %vm331, 0.0
        %388 = vst.msk [vmem:[#allocation2 + $0x1b8] sm:$0xff] %vm331, 0.0
        %389 = vst.msk [vmem:[#allocation2 + $0x1c0] sm:$0xf] %vm334, 0.0
        %390 = vst.msk [vmem:[#allocation2 + $0x1c8] sm:$0xff] %vm331, 0.0
        %391 = vst.msk [vmem:[#allocation2 + $0x1d0] sm:$0xff] %vm331, 0.0
        %392 = vst.msk [vmem:[#allocation2 + $0x1d8] sm:$0xf] %vm334, 0.0
        %393 = vst.msk [vmem:[#allocation3] sm:$0xff] %vm331, 0.0
        %394 = vst.msk [vmem:[#allocation3 + $0x8] sm:$0xff] %vm331, 0.0
        %395 = vst.msk [vmem:[#allocation3 + $0x10] sm:$0xf] %vm334, 0.0
        %396 = vst.msk [vmem:[#allocation3 + $0x18] sm:$0xff] %vm331, 0.0
        %397 = vst.msk [vmem:[#allocation3 + $0x20] sm:$0xff] %vm331, 0.0
        %398 = vst.msk [vmem:[#allocation3 + $0x28] sm:$0xf] %vm334, 0.0
        %399 = vst.msk [vmem:[#allocation3 + $0x30] sm:$0xff] %vm331, 0.0
        %400 = vst.msk [vmem:[#allocation3 + $0x38] sm:$0xff] %vm331, 0.0
        %401 = vst.msk [vmem:[#allocation3 + $0x40] sm:$0xf] %vm334, 0.0
        %402 = vst.msk [vmem:[#allocation3 + $0x48] sm:$0xff] %vm331, 0.0
        %403 = vst.msk [vmem:[#allocation3 + $0x50] sm:$0xff] %vm331, 0.0
        %404 = vst.msk [vmem:[#allocation3 + $0x58] sm:$0xf] %vm334, 0.0
        %405 = vst.msk [vmem:[#allocation3 + $0x60] sm:$0xff] %vm331, 0.0
        %406 = vst.msk [vmem:[#allocation3 + $0x68] sm:$0xff] %vm331, 0.0
        %407 = vst.msk [vmem:[#allocation3 + $0x70] sm:$0xf] %vm334, 0.0
        %408 = vst.msk [vmem:[#allocation3 + $0x78] sm:$0xff] %vm331, 0.0
        %409 = vst.msk [vmem:[#allocation3 + $0x80] sm:$0xff] %vm331, 0.0
        %410 = vst.msk [vmem:[#allocation3 + $0x88] sm:$0xf] %vm334, 0.0
        %411 = vst.msk [vmem:[#allocation3 + $0x90] sm:$0xff] %vm331, 0.0
        %412 = vst.msk [vmem:[#allocation3 + $0x98] sm:$0xff] %vm331, 0.0
        %413 = vst.msk [vmem:[#allocation3 + $0xa0] sm:$0xf] %vm334, 0.0
        %414 = vst.msk [vmem:[#allocation3 + $0xa8] sm:$0xff] %vm331, 0.0
        %415 = vst.msk [vmem:[#allocation3 + $0xb0] sm:$0xff] %vm331, 0.0
        %416 = vst.msk [vmem:[#allocation3 + $0xb8] sm:$0xf] %vm334, 0.0
        %417 = vst.msk [vmem:[#allocation3 + $0xc0] sm:$0xff] %vm331, 0.0
        %418 = vst.msk [vmem:[#allocation3 + $0xc8] sm:$0xff] %vm331, 0.0
        %419 = vst.msk [vmem:[#allocation3 + $0xd0] sm:$0xf] %vm334, 0.0
        %420 = vst.msk [vmem:[#allocation3 + $0xd8] sm:$0xff] %vm331, 0.0
        %421 = vst.msk [vmem:[#allocation3 + $0xe0] sm:$0xff] %vm331, 0.0
        %422 = vst.msk [vmem:[#allocation3 + $0xe8] sm:$0xf] %vm334, 0.0
        %423 = vst.msk [vmem:[#allocation3 + $0xf0] sm:$0xff] %vm331, 0.0
        %424 = vst.msk [vmem:[#allocation3 + $0xf8] sm:$0xff] %vm331, 0.0
        %425 = vst.msk [vmem:[#allocation3 + $0x100] sm:$0xf] %vm334, 0.0
        %426 = vst.msk [vmem:[#allocation3 + $0x108] sm:$0xff] %vm331, 0.0
        %427 = vst.msk [vmem:[#allocation3 + $0x110] sm:$0xff] %vm331, 0.0
        %428 = vst.msk [vmem:[#allocation3 + $0x118] sm:$0xf] %vm334, 0.0
        %429 = vst.msk [vmem:[#allocation3 + $0x120] sm:$0xff] %vm331, 0.0
        %430 = vst.msk [vmem:[#allocation3 + $0x128] sm:$0xff] %vm331, 0.0
        %431 = vst.msk [vmem:[#allocation3 + $0x130] sm:$0xf] %vm334, 0.0
        %432 = vst.msk [vmem:[#allocation3 + $0x138] sm:$0xff] %vm331, 0.0
        %433 = vst.msk [vmem:[#allocation3 + $0x140] sm:$0xff] %vm331, 0.0
        %434 = vst.msk [vmem:[#allocation3 + $0x148] sm:$0xf] %vm334, 0.0
        %435 = vst.msk [vmem:[#allocation3 + $0x150] sm:$0xff] %vm331, 0.0
        %436 = vst.msk [vmem:[#allocation3 + $0x158] sm:$0xff] %vm331, 0.0
        %437 = vst.msk [vmem:[#allocation3 + $0x160] sm:$0xf] %vm334, 0.0
        %438 = vst.msk [vmem:[#allocation3 + $0x168] sm:$0xff] %vm331, 0.0
        %439 = vst.msk [vmem:[#allocation3 + $0x170] sm:$0xff] %vm331, 0.0
        %440 = vst.msk [vmem:[#allocation3 + $0x178] sm:$0xf] %vm334, 0.0
        %441 = vst.msk [vmem:[#allocation3 + $0x180] sm:$0xff] %vm331, 0.0
        %442 = vst.msk [vmem:[#allocation3 + $0x188] sm:$0xff] %vm331, 0.0
        %443 = vst.msk [vmem:[#allocation3 + $0x190] sm:$0xf] %vm334, 0.0
        %444 = vst.msk [vmem:[#allocation3 + $0x198] sm:$0xff] %vm331, 0.0
        %445 = vst.msk [vmem:[#allocation3 + $0x1a0] sm:$0xff] %vm331, 0.0
        %446 = vst.msk [vmem:[#allocation3 + $0x1a8] sm:$0xf] %vm334, 0.0
        %447 = vst.msk [vmem:[#allocation3 + $0x1b0] sm:$0xff] %vm331, 0.0
        %448 = vst.msk [vmem:[#allocation3 + $0x1b8] sm:$0xff] %vm331, 0.0
        %449 = vst.msk [vmem:[#allocation3 + $0x1c0] sm:$0xf] %vm334, 0.0
        %450 = vst.msk [vmem:[#allocation3 + $0x1c8] sm:$0xff] %vm331, 0.0
        %451 = vst.msk [vmem:[#allocation3 + $0x1d0] sm:$0xff] %vm331, 0.0
        %452 = vst.msk [vmem:[#allocation3 + $0x1d8] sm:$0xf] %vm334, 0.0
        %v453 = vld [vmem:[%s330] sm:$0xff]
        %v454 = vld [vmem:[%s330 + $0x8] sm:$0xff]
        %v455 = vld [vmem:[%s330 + $0x10] sm:$0xff]
        %v456 = vld [vmem:[%s330 + $0x18] sm:$0xff]
        %v457 = vld [vmem:[%s330 + $0x20] sm:$0xff]
        %v458 = vld [vmem:[%s330 + $0x28] sm:$0xff]
        %v459 = vld [vmem:[%s330 + $0x30] sm:$0xff]
        %v460 = vld [vmem:[%s330 + $0x38] sm:$0xff]
        %v461 = vld [vmem:[%s330 + $0x40] sm:$0xff]
        %v462 = vld [vmem:[%s330 + $0x48] sm:$0xff]
        %v463 = vld [vmem:[%s330 + $0x50] sm:$0xff]
        %v464 = vld [vmem:[%s330 + $0x58] sm:$0xff]
        %v465 = vld [vmem:[%s330 + $0x60] sm:$0xff]
        %v466 = vld [vmem:[%s330 + $0x68] sm:$0xff]
        %v467 = vld [vmem:[%s330 + $0x70] sm:$0xff]
        %v468 = vld [vmem:[%s330 + $0x78] sm:$0xff]
        %v469 = vld [vmem:[%s330 + $0x80] sm:$0xff]
        %v470 = vld [vmem:[%s330 + $0x88] sm:$0xff]
        %v471 = vld [vmem:[%s330 + $0x90] sm:$0xff]
        %v472 = vld [vmem:[%s330 + $0x98] sm:$0xff]
        %v473 = vld [vmem:[%s330 + $0xa0] sm:$0xff]
        %v474 = vld [vmem:[%s330 + $0xa8] sm:$0xff]
        %v475 = vld [vmem:[%s330 + $0xb0] sm:$0xff]
        %v476 = vld [vmem:[%s330 + $0xb8] sm:$0xff]
        %v477 = vld [vmem:[%s330 + $0xc0] sm:$0xff]
        %v478 = vld [vmem:[%s330 + $0xc8] sm:$0xff]
        %v479 = vld [vmem:[%s330 + $0xd0] sm:$0xff]
        %v480 = vld [vmem:[%s330 + $0xd8] sm:$0xff]
        %v481 = vld [vmem:[%s330 + $0xe0] sm:$0xff]
        %v482 = vld [vmem:[%s330 + $0xe8] sm:$0xff]
        %v483 = vld [vmem:[%s330 + $0xf0] sm:$0xff]
        %v484 = vld [vmem:[%s330 + $0xf8] sm:$0xff]
        %s485 = scalar_lea.vmem [#allocation2], 48
        %486 = vst.msk [vmem:[%s485 + $0x2] sm:$0xff] %vm331, %v453
        %487 = vst.msk [vmem:[%s485 + $0xa] sm:$0xff] %vm331, %v454
        %488 = vst.msk [vmem:[%s485 + $0x1a] sm:$0xff] %vm331, %v455
        %489 = vst.msk [vmem:[%s485 + $0x22] sm:$0xff] %vm331, %v456
        %490 = vst.msk [vmem:[%s485 + $0x32] sm:$0xff] %vm331, %v457
        %491 = vst.msk [vmem:[%s485 + $0x3a] sm:$0xff] %vm331, %v458
        %492 = vst.msk [vmem:[%s485 + $0x4a] sm:$0xff] %vm331, %v459
        %493 = vst.msk [vmem:[%s485 + $0x52] sm:$0xff] %vm331, %v460
        %494 = vst.msk [vmem:[%s485 + $0x62] sm:$0xff] %vm331, %v461
        %495 = vst.msk [vmem:[%s485 + $0x6a] sm:$0xff] %vm331, %v462
        %496 = vst.msk [vmem:[%s485 + $0x7a] sm:$0xff] %vm331, %v463
        %497 = vst.msk [vmem:[%s485 + $0x82] sm:$0xff] %vm331, %v464
        %498 = vst.msk [vmem:[%s485 + $0x92] sm:$0xff] %vm331, %v465
        %499 = vst.msk [vmem:[%s485 + $0x9a] sm:$0xff] %vm331, %v466
        %500 = vst.msk [vmem:[%s485 + $0xaa] sm:$0xff] %vm331, %v467
        %501 = vst.msk [vmem:[%s485 + $0xb2] sm:$0xff] %vm331, %v468
        %502 = vst.msk [vmem:[%s485 + $0xc2] sm:$0xff] %vm331, %v469
        %503 = vst.msk [vmem:[%s485 + $0xca] sm:$0xff] %vm331, %v470
        %504 = vst.msk [vmem:[%s485 + $0xda] sm:$0xff] %vm331, %v471
        %505 = vst.msk [vmem:[%s485 + $0xe2] sm:$0xff] %vm331, %v472
        %506 = vst.msk [vmem:[%s485 + $0xf2] sm:$0xff] %vm331, %v473
        %507 = vst.msk [vmem:[%s485 + $0xfa] sm:$0xff] %vm331, %v474
        %508 = vst.msk [vmem:[%s485 + $0x10a] sm:$0xff] %vm331, %v475
        %509 = vst.msk [vmem:[%s485 + $0x112] sm:$0xff] %vm331, %v476
        %510 = vst.msk [vmem:[%s485 + $0x122] sm:$0xff] %vm331, %v477
        %511 = vst.msk [vmem:[%s485 + $0x12a] sm:$0xff] %vm331, %v478
        %512 = vst.msk [vmem:[%s485 + $0x13a] sm:$0xff] %vm331, %v479
        %513 = vst.msk [vmem:[%s485 + $0x142] sm:$0xff] %vm331, %v480
        %514 = vst.msk [vmem:[%s485 + $0x152] sm:$0xff] %vm331, %v481
        %515 = vst.msk [vmem:[%s485 + $0x15a] sm:$0xff] %vm331, %v482
        %516 = vst.msk [vmem:[%s485 + $0x16a] sm:$0xff] %vm331, %v483
        %517 = vst.msk [vmem:[%s485 + $0x172] sm:$0xff] %vm331, %v484
        %v518 = vld [vmem:[#allocation2] sm:$0xff]
        %v519 = vld [vmem:[#allocation2 + $0x8] sm:$0xff]
        %v520 = vld [vmem:[#allocation2 + $0x10] sm:$0xf]
        %v521 = vld [vmem:[#allocation2 + $0x18] sm:$0xff]
        %v522 = vld [vmem:[#allocation2 + $0x20] sm:$0xff]
        %v523 = vld [vmem:[#allocation2 + $0x28] sm:$0xf]
        %v524 = vld [vmem:[#allocation2 + $0x30] sm:$0xff]
        %v525 = vld [vmem:[#allocation2 + $0x38] sm:$0xff]
        %v526 = vld [vmem:[#allocation2 + $0x40] sm:$0xf]
        %v527 = vld [vmem:[#allocation2 + $0x48] sm:$0xff]
        %v528 = vld [vmem:[#allocation2 + $0x50] sm:$0xff]
        %v529 = vld [vmem:[#allocation2 + $0x58] sm:$0xf]
        %v530 = vld [vmem:[#allocation2 + $0x60] sm:$0xff]
        %v531 = vld [vmem:[#allocation2 + $0x68] sm:$0xff]
        %v532 = vld [vmem:[#allocation2 + $0x70] sm:$0xf]
        %v533 = vld [vmem:[#allocation2 + $0x78] sm:$0xff]
        %v534 = vld [vmem:[#allocation2 + $0x80] sm:$0xff]
        %v535 = vld [vmem:[#allocation2 + $0x88] sm:$0xf]
        %v536 = vld [vmem:[#allocation2 + $0x90] sm:$0xff]
        %v537 = vld [vmem:[#allocation2 + $0x98] sm:$0xff]
        %v538 = vld [vmem:[#allocation2 + $0xa0] sm:$0xf]
        %v539 = vld [vmem:[#allocation2 + $0xa8] sm:$0xff]
        %v540 = vld [vmem:[#allocation2 + $0xb0] sm:$0xff]
        %v541 = vld [vmem:[#allocation2 + $0xb8] sm:$0xf]
        %v542 = vld [vmem:[#allocation2 + $0xc0] sm:$0xff]
        %v543 = vld [vmem:[#allocation2 + $0xc8] sm:$0xff]
        %v544 = vld [vmem:[#allocation2 + $0xd0] sm:$0xf]
        %v545 = vld [vmem:[#allocation2 + $0xd8] sm:$0xff]
        %v546 = vld [vmem:[#allocation2 + $0xe0] sm:$0xff]
        %v547 = vld [vmem:[#allocation2 + $0xe8] sm:$0xf]
        %v548 = vld [vmem:[#allocation2 + $0xf0] sm:$0xff]
        %v549 = vld [vmem:[#allocation2 + $0xf8] sm:$0xff]
        %v550 = vld [vmem:[#allocation2 + $0x100] sm:$0xf]
        %v551 = vld [vmem:[#allocation2 + $0x108] sm:$0xff]
        %v552 = vld [vmem:[#allocation2 + $0x110] sm:$0xff]
        %v553 = vld [vmem:[#allocation2 + $0x118] sm:$0xf]
        %v554 = vld [vmem:[#allocation2 + $0x120] sm:$0xff]
        %v555 = vld [vmem:[#allocation2 + $0x128] sm:$0xff]
        %v556 = vld [vmem:[#allocation2 + $0x130] sm:$0xf]
        %v557 = vld [vmem:[#allocation2 + $0x138] sm:$0xff]
        %v558 = vld [vmem:[#allocation2 + $0x140] sm:$0xff]
        %v559 = vld [vmem:[#allocation2 + $0x148] sm:$0xf]
        %v560 = vld [vmem:[#allocation2 + $0x150] sm:$0xff]
        %v561 = vld [vmem:[#allocation2 + $0x158] sm:$0xff]
        %v562 = vld [vmem:[#allocation2 + $0x160] sm:$0xf]
        %v563 = vld [vmem:[#allocation2 + $0x168] sm:$0xff]
        %v564 = vld [vmem:[#allocation2 + $0x170] sm:$0xff]
        %v565 = vld [vmem:[#allocation2 + $0x178] sm:$0xf]
        %v566 = vld [vmem:[#allocation2 + $0x180] sm:$0xff]
        %v567 = vld [vmem:[#allocation2 + $0x188] sm:$0xff]
        %v568 = vld [vmem:[#allocation2 + $0x190] sm:$0xf]
        %v569 = vld [vmem:[#allocation2 + $0x198] sm:$0xff]
        %v570 = vld [vmem:[#allocation2 + $0x1a0] sm:$0xff]
        %v571 = vld [vmem:[#allocation2 + $0x1a8] sm:$0xf]
        %v572 = vld [vmem:[#allocation2 + $0x1b0] sm:$0xff]
        %v573 = vld [vmem:[#allocation2 + $0x1b8] sm:$0xff]
        %v574 = vld [vmem:[#allocation2 + $0x1c0] sm:$0xf]
        %v575 = vld [vmem:[#allocation2 + $0x1c8] sm:$0xff]
        %v576 = vld [vmem:[#allocation2 + $0x1d0] sm:$0xff]
        %v577 = vld [vmem:[#allocation2 + $0x1d8] sm:$0xf]
        %vm626 = vcmask 1045504
        %v627 = vrot.slane %v518, 2
        %v628 = vrot.slane %v519, 2
        %v629 = vsel %vm626, %v627, %v628
        %v630 = vrot.slane %v520, 2
        %v631 = vsel %vm626, %v628, %v630
        %v632 = vrot.slane %v521, 2
        %v633 = vrot.slane %v522, 2
        %v634 = vsel %vm626, %v632, %v633
        %v635 = vrot.slane %v523, 2
        %v636 = vsel %vm626, %v633, %v635
        %v637 = vrot.slane %v524, 2
        %v638 = vrot.slane %v525, 2
        %v639 = vsel %vm626, %v637, %v638
        %v640 = vrot.slane %v526, 2
        %v641 = vsel %vm626, %v638, %v640
        %v642 = vrot.slane %v527, 2
        %v643 = vrot.slane %v528, 2
        %v644 = vsel %vm626, %v642, %v643
        %v645 = vrot.slane %v529, 2
        %v646 = vsel %vm626, %v643, %v645
        %v647 = vrot.slane %v530, 2
        %v648 = vrot.slane %v531, 2
        %v649 = vsel %vm626, %v647, %v648
        %v650 = vrot.slane %v532, 2
        %v651 = vsel %vm626, %v648, %v650
        %v652 = vrot.slane %v533, 2
        %v653 = vrot.slane %v534, 2
        %v654 = vsel %vm626, %v652, %v653
        %v655 = vrot.slane %v535, 2
        %v656 = vsel %vm626, %v653, %v655
        %v657 = vrot.slane %v536, 2
        %v658 = vrot.slane %v537, 2
        %v659 = vsel %vm626, %v657, %v658
        %v660 = vrot.slane %v538, 2
        %v661 = vsel %vm626, %v658, %v660
        %v662 = vrot.slane %v539, 2
        %v663 = vrot.slane %v540, 2
        %v664 = vsel %vm626, %v662, %v663
        %v665 = vrot.slane %v541, 2
        %v666 = vsel %vm626, %v663, %v665
        %v667 = vrot.slane %v542, 2
        %v668 = vrot.slane %v543, 2
        %v669 = vsel %vm626, %v667, %v668
        %v670 = vrot.slane %v544, 2
        %v671 = vsel %vm626, %v668, %v670
        %v672 = vrot.slane %v545, 2
        %v673 = vrot.slane %v546, 2
        %v674 = vsel %vm626, %v672, %v673
        %v675 = vrot.slane %v547, 2
        %v676 = vsel %vm626, %v673, %v675
        %v677 = vrot.slane %v548, 2
        %v678 = vrot.slane %v549, 2
        %v679 = vsel %vm626, %v677, %v678
        %v680 = vrot.slane %v550, 2
        %v681 = vsel %vm626, %v678, %v680
        %v682 = vrot.slane %v551, 2
        %v683 = vrot.slane %v552, 2
        %v684 = vsel %vm626, %v682, %v683
        %v685 = vrot.slane %v553, 2
        %v686 = vsel %vm626, %v683, %v685
        %v687 = vrot.slane %v554, 2
        %v688 = vrot.slane %v555, 2
        %v689 = vsel %vm626, %v687, %v688
        %v690 = vrot.slane %v556, 2
        %v691 = vsel %vm626, %v688, %v690
        %v692 = vrot.slane %v557, 2
        %v693 = vrot.slane %v558, 2
        %v694 = vsel %vm626, %v692, %v693
        %v695 = vrot.slane %v559, 2
        %v696 = vsel %vm626, %v693, %v695
        %v697 = vrot.slane %v560, 2
        %v698 = vrot.slane %v561, 2
        %v699 = vsel %vm626, %v697, %v698
        %v700 = vrot.slane %v562, 2
        %v701 = vsel %vm626, %v698, %v700
        %v702 = vrot.slane %v563, 2
        %v703 = vrot.slane %v564, 2
        %v704 = vsel %vm626, %v702, %v703
        %v705 = vrot.slane %v565, 2
        %v706 = vsel %vm626, %v703, %v705
        %vm707 = vcmask 1043456
        %v708 = vrot.slane %v518, 4
        %v709 = vrot.slane %v519, 4
        %v710 = vsel %vm707, %v708, %v709
        %v711 = vrot.slane %v520, 4
        %v712 = vsel %vm707, %v709, %v711
        %v713 = vrot.slane %v521, 4
        %v714 = vrot.slane %v522, 4
        %v715 = vsel %vm707, %v713, %v714
        %v716 = vrot.slane %v523, 4
        %v717 = vsel %vm707, %v714, %v716
        %v718 = vrot.slane %v524, 4
        %v719 = vrot.slane %v525, 4
        %v720 = vsel %vm707, %v718, %v719
        %v721 = vrot.slane %v526, 4
        %v722 = vsel %vm707, %v719, %v721
        %v723 = vrot.slane %v527, 4
        %v724 = vrot.slane %v528, 4
        %v725 = vsel %vm707, %v723, %v724
        %v726 = vrot.slane %v529, 4
        %v727 = vsel %vm707, %v724, %v726
        %v728 = vrot.slane %v530, 4
        %v729 = vrot.slane %v531, 4
        %v730 = vsel %vm707, %v728, %v729
        %v731 = vrot.slane %v532, 4
        %v732 = vsel %vm707, %v729, %v731
        %v733 = vrot.slane %v533, 4
        %v734 = vrot.slane %v534, 4
        %v735 = vsel %vm707, %v733, %v734
        %v736 = vrot.slane %v535, 4
        %v737 = vsel %vm707, %v734, %v736
        %v738 = vrot.slane %v536, 4
        %v739 = vrot.slane %v537, 4
        %v740 = vsel %vm707, %v738, %v739
        %v741 = vrot.slane %v538, 4
        %v742 = vsel %vm707, %v739, %v741
        %v743 = vrot.slane %v539, 4
        %v744 = vrot.slane %v540, 4
        %v745 = vsel %vm707, %v743, %v744
        %v746 = vrot.slane %v541, 4
        %v747 = vsel %vm707, %v744, %v746
        %v748 = vrot.slane %v542, 4
        %v749 = vrot.slane %v543, 4
        %v750 = vsel %vm707, %v748, %v749
        %v751 = vrot.slane %v544, 4
        %v752 = vsel %vm707, %v749, %v751
        %v753 = vrot.slane %v545, 4
        %v754 = vrot.slane %v546, 4
        %v755 = vsel %vm707, %v753, %v754
        %v756 = vrot.slane %v547, 4
        %v757 = vsel %vm707, %v754, %v756
        %v758 = vrot.slane %v548, 4
        %v759 = vrot.slane %v549, 4
        %v760 = vsel %vm707, %v758, %v759
        %v761 = vrot.slane %v550, 4
        %v762 = vsel %vm707, %v759, %v761
        %v763 = vrot.slane %v551, 4
        %v764 = vrot.slane %v552, 4
        %v765 = vsel %vm707, %v763, %v764
        %v766 = vrot.slane %v553, 4
        %v767 = vsel %vm707, %v764, %v766
        %v768 = vrot.slane %v554, 4
        %v769 = vrot.slane %v555, 4
        %v770 = vsel %vm707, %v768, %v769
        %v771 = vrot.slane %v556, 4
        %v772 = vsel %vm707, %v769, %v771
        %v773 = vrot.slane %v557, 4
        %v774 = vrot.slane %v558, 4
        %v775 = vsel %vm707, %v773, %v774
        %v776 = vrot.slane %v559, 4
        %v777 = vsel %vm707, %v774, %v776
        %v778 = vrot.slane %v560, 4
        %v779 = vrot.slane %v561, 4
        %v780 = vsel %vm707, %v778, %v779
        %v781 = vrot.slane %v562, 4
        %v782 = vsel %vm707, %v779, %v781
        %v783 = vrot.slane %v563, 4
        %v784 = vrot.slane %v564, 4
        %v785 = vsel %vm707, %v783, %v784
        %v786 = vrot.slane %v565, 4
        %v787 = vsel %vm707, %v784, %v786
        %v794 = vrot.slane %v566, 2
        %v795 = vrot.slane %v567, 2
        %v796 = vsel %vm626, %v794, %v795
        %v797 = vrot.slane %v568, 2
        %v798 = vsel %vm626, %v795, %v797
        %v799 = vrot.slane %v569, 2
        %v800 = vrot.slane %v570, 2
        %v801 = vsel %vm626, %v799, %v800
        %v802 = vrot.slane %v571, 2
        %v803 = vsel %vm626, %v800, %v802
        %v836 = vrot.slane %v566, 4
        %v837 = vrot.slane %v567, 4
        %v838 = vsel %vm707, %v836, %v837
        %v839 = vrot.slane %v568, 4
        %v840 = vsel %vm707, %v837, %v839
        %v841 = vrot.slane %v569, 4
        %v842 = vrot.slane %v570, 4
        %v843 = vsel %vm707, %v841, %v842
        %v844 = vrot.slane %v571, 4
        %v845 = vsel %vm707, %v842, %v844
        %v852 = vrot.slane %v572, 2
        %v853 = vrot.slane %v573, 2
        %v854 = vsel %vm626, %v852, %v853
        %v855 = vrot.slane %v574, 2
        %v856 = vsel %vm626, %v853, %v855
        %v857 = vrot.slane %v575, 2
        %v858 = vrot.slane %v576, 2
        %v859 = vsel %vm626, %v857, %v858
        %v860 = vrot.slane %v577, 2
        %v861 = vsel %vm626, %v858, %v860
        %v862 = vrot.slane %v572, 4
        %v863 = vrot.slane %v573, 4
        %v864 = vsel %vm707, %v862, %v863
        %v865 = vrot.slane %v574, 4
        %v866 = vsel %vm707, %v863, %v865
        %v867 = vrot.slane %v575, 4
        %v868 = vrot.slane %v576, 4
        %v869 = vsel %vm707, %v867, %v868
        %v870 = vrot.slane %v577, 4
        %v871 = vsel %vm707, %v868, %v870
        %872 = vrot.lane.b32.xlu0 %v629, 32
        %v873 = vpop.permute.xlu0 %872
        %874 = vrot.lane.b32.xlu0 %v631, 32
        %v875 = vpop.permute.xlu0 %874
        %876 = vrot.lane.b32.xlu0 %v634, 32
        %v877 = vpop.permute.xlu0 %876
        %878 = vrot.lane.b32.xlu0 %v636, 32
        %v879 = vpop.permute.xlu0 %878
        %880 = vrot.lane.b32.xlu0 %v639, 32
        %v881 = vpop.permute.xlu0 %880
        %882 = vrot.lane.b32.xlu0 %v641, 32
        %v883 = vpop.permute.xlu0 %882
        %884 = vrot.lane.b32.xlu0 %v644, 32
        %v885 = vpop.permute.xlu0 %884
        %886 = vrot.lane.b32.xlu0 %v646, 32
        %v887 = vpop.permute.xlu0 %886
        %888 = vrot.lane.b32.xlu0 %v649, 32
        %v889 = vpop.permute.xlu0 %888
        %890 = vrot.lane.b32.xlu0 %v651, 32
        %v891 = vpop.permute.xlu0 %890
        %892 = vrot.lane.b32.xlu0 %v654, 32
        %v893 = vpop.permute.xlu0 %892
        %894 = vrot.lane.b32.xlu0 %v656, 32
        %v895 = vpop.permute.xlu0 %894
        %896 = vrot.lane.b32.xlu0 %v659, 32
        %v897 = vpop.permute.xlu0 %896
        %898 = vrot.lane.b32.xlu0 %v661, 32
        %v899 = vpop.permute.xlu0 %898
        %900 = vrot.lane.b32.xlu0 %v664, 32
        %v901 = vpop.permute.xlu0 %900
        %902 = vrot.lane.b32.xlu0 %v666, 32
        %v903 = vpop.permute.xlu0 %902
        %904 = vrot.lane.b32.xlu0 %v669, 32
        %v905 = vpop.permute.xlu0 %904
        %906 = vrot.lane.b32.xlu0 %v671, 32
        %v907 = vpop.permute.xlu0 %906
        %908 = vrot.lane.b32.xlu0 %v674, 32
        %v909 = vpop.permute.xlu0 %908
        %910 = vrot.lane.b32.xlu0 %v676, 32
        %v911 = vpop.permute.xlu0 %910
        %912 = vrot.lane.b32.xlu0 %v679, 32
        %v913 = vpop.permute.xlu0 %912
        %914 = vrot.lane.b32.xlu0 %v681, 32
        %v915 = vpop.permute.xlu0 %914
        %916 = vrot.lane.b32.xlu0 %v684, 32
        %v917 = vpop.permute.xlu0 %916
        %918 = vrot.lane.b32.xlu0 %v686, 32
        %v919 = vpop.permute.xlu0 %918
        %920 = vrot.lane.b32.xlu0 %v689, 32
        %v921 = vpop.permute.xlu0 %920
        %922 = vrot.lane.b32.xlu0 %v691, 32
        %v923 = vpop.permute.xlu0 %922
        %924 = vrot.lane.b32.xlu0 %v694, 32
        %v925 = vpop.permute.xlu0 %924
        %926 = vrot.lane.b32.xlu0 %v696, 32
        %v927 = vpop.permute.xlu0 %926
        %928 = vrot.lane.b32.xlu0 %v699, 32
        %v929 = vpop.permute.xlu0 %928
        %930 = vrot.lane.b32.xlu0 %v701, 32
        %v931 = vpop.permute.xlu0 %930
        %932 = vrot.lane.b32.xlu0 %v704, 32
        %v933 = vpop.permute.xlu0 %932
        %934 = vrot.lane.b32.xlu0 %v706, 32
        %v935 = vpop.permute.xlu0 %934
        %968 = vrot.lane.b32.xlu0 %v710, 64
        %v969 = vpop.permute.xlu0 %968
        %970 = vrot.lane.b32.xlu0 %v712, 64
        %v971 = vpop.permute.xlu0 %970
        %972 = vrot.lane.b32.xlu0 %v715, 64
        %v973 = vpop.permute.xlu0 %972
        %974 = vrot.lane.b32.xlu0 %v717, 64
        %v975 = vpop.permute.xlu0 %974
        %976 = vrot.lane.b32.xlu0 %v720, 64
        %v977 = vpop.permute.xlu0 %976
        %978 = vrot.lane.b32.xlu0 %v722, 64
        %v979 = vpop.permute.xlu0 %978
        %980 = vrot.lane.b32.xlu0 %v725, 64
        %v981 = vpop.permute.xlu0 %980
        %982 = vrot.lane.b32.xlu0 %v727, 64
        %v983 = vpop.permute.xlu0 %982
        %984 = vrot.lane.b32.xlu0 %v730, 64
        %v985 = vpop.permute.xlu0 %984
        %986 = vrot.lane.b32.xlu0 %v732, 64
        %v987 = vpop.permute.xlu0 %986
        %988 = vrot.lane.b32.xlu0 %v735, 64
        %v989 = vpop.permute.xlu0 %988
        %990 = vrot.lane.b32.xlu0 %v737, 64
        %v991 = vpop.permute.xlu0 %990
        %992 = vrot.lane.b32.xlu0 %v740, 64
        %v993 = vpop.permute.xlu0 %992
        %994 = vrot.lane.b32.xlu0 %v742, 64
        %v995 = vpop.permute.xlu0 %994
        %996 = vrot.lane.b32.xlu0 %v745, 64
        %v997 = vpop.permute.xlu0 %996
        %998 = vrot.lane.b32.xlu0 %v747, 64
        %v999 = vpop.permute.xlu0 %998
        %1000 = vrot.lane.b32.xlu0 %v750, 64
        %v1001 = vpop.permute.xlu0 %1000
        %1002 = vrot.lane.b32.xlu0 %v752, 64
        %v1003 = vpop.permute.xlu0 %1002
        %1004 = vrot.lane.b32.xlu0 %v755, 64
        %v1005 = vpop.permute.xlu0 %1004
        %1006 = vrot.lane.b32.xlu0 %v757, 64
        %v1007 = vpop.permute.xlu0 %1006
        %1008 = vrot.lane.b32.xlu0 %v760, 64
        %v1009 = vpop.permute.xlu0 %1008
        %1010 = vrot.lane.b32.xlu0 %v762, 64
        %v1011 = vpop.permute.xlu0 %1010
        %1012 = vrot.lane.b32.xlu0 %v765, 64
        %v1013 = vpop.permute.xlu0 %1012
        %1014 = vrot.lane.b32.xlu0 %v767, 64
        %v1015 = vpop.permute.xlu0 %1014
        %1016 = vrot.lane.b32.xlu0 %v770, 64
        %v1017 = vpop.permute.xlu0 %1016
        %1018 = vrot.lane.b32.xlu0 %v772, 64
        %v1019 = vpop.permute.xlu0 %1018
        %1020 = vrot.lane.b32.xlu0 %v775, 64
        %v1021 = vpop.permute.xlu0 %1020
        %1022 = vrot.lane.b32.xlu0 %v777, 64
        %v1023 = vpop.permute.xlu0 %1022
        %1024 = vrot.lane.b32.xlu0 %v780, 64
        %v1025 = vpop.permute.xlu0 %1024
        %1026 = vrot.lane.b32.xlu0 %v782, 64
        %v1027 = vpop.permute.xlu0 %1026
        %1028 = vrot.lane.b32.xlu0 %v785, 64
        %v1029 = vpop.permute.xlu0 %1028
        %1030 = vrot.lane.b32.xlu0 %v787, 64
        %v1031 = vpop.permute.xlu0 %1030
        %1064 = vrot.lane.b32.xlu0 %v524, 96
        %v1065 = vpop.permute.xlu0 %1064
        %1066 = vrot.lane.b32.xlu0 %v525, 96
        %v1067 = vpop.permute.xlu0 %1066
        %1068 = vrot.lane.b32.xlu0 %v527, 96
        %v1069 = vpop.permute.xlu0 %1068
        %1070 = vrot.lane.b32.xlu0 %v528, 96
        %v1071 = vpop.permute.xlu0 %1070
        %1072 = vrot.lane.b32.xlu0 %v530, 96
        %v1073 = vpop.permute.xlu0 %1072
        %1074 = vrot.lane.b32.xlu0 %v531, 96
        %v1075 = vpop.permute.xlu0 %1074
        %1076 = vrot.lane.b32.xlu0 %v533, 96
        %v1077 = vpop.permute.xlu0 %1076
        %1078 = vrot.lane.b32.xlu0 %v534, 96
        %v1079 = vpop.permute.xlu0 %1078
        %1080 = vrot.lane.b32.xlu0 %v536, 96
        %v1081 = vpop.permute.xlu0 %1080
        %1082 = vrot.lane.b32.xlu0 %v537, 96
        %v1083 = vpop.permute.xlu0 %1082
        %1084 = vrot.lane.b32.xlu0 %v539, 96
        %v1085 = vpop.permute.xlu0 %1084
        %1086 = vrot.lane.b32.xlu0 %v540, 96
        %v1087 = vpop.permute.xlu0 %1086
        %1088 = vrot.lane.b32.xlu0 %v542, 96
        %v1089 = vpop.permute.xlu0 %1088
        %1090 = vrot.lane.b32.xlu0 %v543, 96
        %v1091 = vpop.permute.xlu0 %1090
        %1092 = vrot.lane.b32.xlu0 %v545, 96
        %v1093 = vpop.permute.xlu0 %1092
        %1094 = vrot.lane.b32.xlu0 %v546, 96
        %v1095 = vpop.permute.xlu0 %1094
        %1096 = vrot.lane.b32.xlu0 %v548, 96
        %v1097 = vpop.permute.xlu0 %1096
        %1098 = vrot.lane.b32.xlu0 %v549, 96
        %v1099 = vpop.permute.xlu0 %1098
        %1100 = vrot.lane.b32.xlu0 %v551, 96
        %v1101 = vpop.permute.xlu0 %1100
        %1102 = vrot.lane.b32.xlu0 %v552, 96
        %v1103 = vpop.permute.xlu0 %1102
        %1104 = vrot.lane.b32.xlu0 %v554, 96
        %v1105 = vpop.permute.xlu0 %1104
        %1106 = vrot.lane.b32.xlu0 %v555, 96
        %v1107 = vpop.permute.xlu0 %1106
        %1108 = vrot.lane.b32.xlu0 %v557, 96
        %v1109 = vpop.permute.xlu0 %1108
        %1110 = vrot.lane.b32.xlu0 %v558, 96
        %v1111 = vpop.permute.xlu0 %1110
        %1112 = vrot.lane.b32.xlu0 %v560, 96
        %v1113 = vpop.permute.xlu0 %1112
        %1114 = vrot.lane.b32.xlu0 %v561, 96
        %v1115 = vpop.permute.xlu0 %1114
        %1116 = vrot.lane.b32.xlu0 %v563, 96
        %v1117 = vpop.permute.xlu0 %1116
        %1118 = vrot.lane.b32.xlu0 %v564, 96
        %v1119 = vpop.permute.xlu0 %1118
        %1120 = vrot.lane.b32.xlu0 %v566, 96
        %v1121 = vpop.permute.xlu0 %1120
        %1122 = vrot.lane.b32.xlu0 %v567, 96
        %v1123 = vpop.permute.xlu0 %1122
        %1124 = vrot.lane.b32.xlu0 %v569, 96
        %v1125 = vpop.permute.xlu0 %1124
        %1126 = vrot.lane.b32.xlu0 %v570, 96
        %v1127 = vpop.permute.xlu0 %1126
        %1160 = vrot.lane.b32.xlu0 %v720, 32
        %v1161 = vpop.permute.xlu0 %1160
        %1162 = vrot.lane.b32.xlu0 %v722, 32
        %v1163 = vpop.permute.xlu0 %1162
        %1164 = vrot.lane.b32.xlu0 %v725, 32
        %v1165 = vpop.permute.xlu0 %1164
        %1166 = vrot.lane.b32.xlu0 %v727, 32
        %v1167 = vpop.permute.xlu0 %1166
        %1168 = vrot.lane.b32.xlu0 %v730, 32
        %v1169 = vpop.permute.xlu0 %1168
        %1170 = vrot.lane.b32.xlu0 %v732, 32
        %v1171 = vpop.permute.xlu0 %1170
        %1172 = vrot.lane.b32.xlu0 %v735, 32
        %v1173 = vpop.permute.xlu0 %1172
        %1174 = vrot.lane.b32.xlu0 %v737, 32
        %v1175 = vpop.permute.xlu0 %1174
        %1176 = vrot.lane.b32.xlu0 %v740, 32
        %v1177 = vpop.permute.xlu0 %1176
        %1178 = vrot.lane.b32.xlu0 %v742, 32
        %v1179 = vpop.permute.xlu0 %1178
        %1180 = vrot.lane.b32.xlu0 %v745, 32
        %v1181 = vpop.permute.xlu0 %1180
        %1182 = vrot.lane.b32.xlu0 %v747, 32
        %v1183 = vpop.permute.xlu0 %1182
        %1184 = vrot.lane.b32.xlu0 %v750, 32
        %v1185 = vpop.permute.xlu0 %1184
        %1186 = vrot.lane.b32.xlu0 %v752, 32
        %v1187 = vpop.permute.xlu0 %1186
        %1188 = vrot.lane.b32.xlu0 %v755, 32
        %v1189 = vpop.permute.xlu0 %1188
        %1190 = vrot.lane.b32.xlu0 %v757, 32
        %v1191 = vpop.permute.xlu0 %1190
        %1192 = vrot.lane.b32.xlu0 %v760, 32
        %v1193 = vpop.permute.xlu0 %1192
        %1194 = vrot.lane.b32.xlu0 %v762, 32
        %v1195 = vpop.permute.xlu0 %1194
        %1196 = vrot.lane.b32.xlu0 %v765, 32
        %v1197 = vpop.permute.xlu0 %1196
        %1198 = vrot.lane.b32.xlu0 %v767, 32
        %v1199 = vpop.permute.xlu0 %1198
        %1200 = vrot.lane.b32.xlu0 %v770, 32
        %v1201 = vpop.permute.xlu0 %1200
        %1202 = vrot.lane.b32.xlu0 %v772, 32
        %v1203 = vpop.permute.xlu0 %1202
        %1204 = vrot.lane.b32.xlu0 %v775, 32
        %v1205 = vpop.permute.xlu0 %1204
        %1206 = vrot.lane.b32.xlu0 %v777, 32
        %v1207 = vpop.permute.xlu0 %1206
        %1208 = vrot.lane.b32.xlu0 %v780, 32
        %v1209 = vpop.permute.xlu0 %1208
        %1210 = vrot.lane.b32.xlu0 %v782, 32
        %v1211 = vpop.permute.xlu0 %1210
        %1212 = vrot.lane.b32.xlu0 %v785, 32
        %v1213 = vpop.permute.xlu0 %1212
        %1214 = vrot.lane.b32.xlu0 %v787, 32
        %v1215 = vpop.permute.xlu0 %1214
        %1216 = vrot.lane.b32.xlu0 %v838, 32
        %v1217 = vpop.permute.xlu0 %1216
        %1218 = vrot.lane.b32.xlu0 %v840, 32
        %v1219 = vpop.permute.xlu0 %1218
        %1220 = vrot.lane.b32.xlu0 %v843, 32
        %v1221 = vpop.permute.xlu0 %1220
        %1222 = vrot.lane.b32.xlu0 %v845, 32
        %v1223 = vpop.permute.xlu0 %1222
        %1256 = vrot.lane.b32.xlu0 %v530, 64
        %v1257 = vpop.permute.xlu0 %1256
        %1258 = vrot.lane.b32.xlu0 %v531, 64
        %v1259 = vpop.permute.xlu0 %1258
        %1260 = vrot.lane.b32.xlu0 %v533, 64
        %v1261 = vpop.permute.xlu0 %1260
        %1262 = vrot.lane.b32.xlu0 %v534, 64
        %v1263 = vpop.permute.xlu0 %1262
        %1264 = vrot.lane.b32.xlu0 %v536, 64
        %v1265 = vpop.permute.xlu0 %1264
        %1266 = vrot.lane.b32.xlu0 %v537, 64
        %v1267 = vpop.permute.xlu0 %1266
        %1268 = vrot.lane.b32.xlu0 %v539, 64
        %v1269 = vpop.permute.xlu0 %1268
        %1270 = vrot.lane.b32.xlu0 %v540, 64
        %v1271 = vpop.permute.xlu0 %1270
        %1272 = vrot.lane.b32.xlu0 %v542, 64
        %v1273 = vpop.permute.xlu0 %1272
        %1274 = vrot.lane.b32.xlu0 %v543, 64
        %v1275 = vpop.permute.xlu0 %1274
        %1276 = vrot.lane.b32.xlu0 %v545, 64
        %v1277 = vpop.permute.xlu0 %1276
        %1278 = vrot.lane.b32.xlu0 %v546, 64
        %v1279 = vpop.permute.xlu0 %1278
        %1280 = vrot.lane.b32.xlu0 %v548, 64
        %v1281 = vpop.permute.xlu0 %1280
        %1282 = vrot.lane.b32.xlu0 %v549, 64
        %v1283 = vpop.permute.xlu0 %1282
        %1284 = vrot.lane.b32.xlu0 %v551, 64
        %v1285 = vpop.permute.xlu0 %1284
        %1286 = vrot.lane.b32.xlu0 %v552, 64
        %v1287 = vpop.permute.xlu0 %1286
        %1288 = vrot.lane.b32.xlu0 %v554, 64
        %v1289 = vpop.permute.xlu0 %1288
        %1290 = vrot.lane.b32.xlu0 %v555, 64
        %v1291 = vpop.permute.xlu0 %1290
        %1292 = vrot.lane.b32.xlu0 %v557, 64
        %v1293 = vpop.permute.xlu0 %1292
        %1294 = vrot.lane.b32.xlu0 %v558, 64
        %v1295 = vpop.permute.xlu0 %1294
        %1296 = vrot.lane.b32.xlu0 %v560, 64
        %v1297 = vpop.permute.xlu0 %1296
        %1298 = vrot.lane.b32.xlu0 %v561, 64
        %v1299 = vpop.permute.xlu0 %1298
        %1300 = vrot.lane.b32.xlu0 %v563, 64
        %v1301 = vpop.permute.xlu0 %1300
        %1302 = vrot.lane.b32.xlu0 %v564, 64
        %v1303 = vpop.permute.xlu0 %1302
        %1304 = vrot.lane.b32.xlu0 %v566, 64
        %v1305 = vpop.permute.xlu0 %1304
        %1306 = vrot.lane.b32.xlu0 %v567, 64
        %v1307 = vpop.permute.xlu0 %1306
        %1308 = vrot.lane.b32.xlu0 %v569, 64
        %v1309 = vpop.permute.xlu0 %1308
        %1310 = vrot.lane.b32.xlu0 %v570, 64
        %v1311 = vpop.permute.xlu0 %1310
        %1312 = vrot.lane.b32.xlu0 %v572, 64
        %v1313 = vpop.permute.xlu0 %1312
        %1314 = vrot.lane.b32.xlu0 %v573, 64
        %v1315 = vpop.permute.xlu0 %1314
        %1316 = vrot.lane.b32.xlu0 %v575, 64
        %v1317 = vpop.permute.xlu0 %1316
        %1318 = vrot.lane.b32.xlu0 %v576, 64
        %v1319 = vpop.permute.xlu0 %1318
        %1352 = vrot.lane.b32.xlu0 %v649, 96
        %v1353 = vpop.permute.xlu0 %1352
        %1354 = vrot.lane.b32.xlu0 %v651, 96
        %v1355 = vpop.permute.xlu0 %1354
        %1356 = vrot.lane.b32.xlu0 %v654, 96
        %v1357 = vpop.permute.xlu0 %1356
        %1358 = vrot.lane.b32.xlu0 %v656, 96
        %v1359 = vpop.permute.xlu0 %1358
        %1360 = vrot.lane.b32.xlu0 %v659, 96
        %v1361 = vpop.permute.xlu0 %1360
        %1362 = vrot.lane.b32.xlu0 %v661, 96
        %v1363 = vpop.permute.xlu0 %1362
        %1364 = vrot.lane.b32.xlu0 %v664, 96
        %v1365 = vpop.permute.xlu0 %1364
        %1366 = vrot.lane.b32.xlu0 %v666, 96
        %v1367 = vpop.permute.xlu0 %1366
        %1368 = vrot.lane.b32.xlu0 %v669, 96
        %v1369 = vpop.permute.xlu0 %1368
        %1370 = vrot.lane.b32.xlu0 %v671, 96
        %v1371 = vpop.permute.xlu0 %1370
        %1372 = vrot.lane.b32.xlu0 %v674, 96
        %v1373 = vpop.permute.xlu0 %1372
        %1374 = vrot.lane.b32.xlu0 %v676, 96
        %v1375 = vpop.permute.xlu0 %1374
        %1376 = vrot.lane.b32.xlu0 %v679, 96
        %v1377 = vpop.permute.xlu0 %1376
        %1378 = vrot.lane.b32.xlu0 %v681, 96
        %v1379 = vpop.permute.xlu0 %1378
        %1380 = vrot.lane.b32.xlu0 %v684, 96
        %v1381 = vpop.permute.xlu0 %1380
        %1382 = vrot.lane.b32.xlu0 %v686, 96
        %v1383 = vpop.permute.xlu0 %1382
        %1384 = vrot.lane.b32.xlu0 %v689, 96
        %v1385 = vpop.permute.xlu0 %1384
        %1386 = vrot.lane.b32.xlu0 %v691, 96
        %v1387 = vpop.permute.xlu0 %1386
        %1388 = vrot.lane.b32.xlu0 %v694, 96
        %v1389 = vpop.permute.xlu0 %1388
        %1390 = vrot.lane.b32.xlu0 %v696, 96
        %v1391 = vpop.permute.xlu0 %1390
        %1392 = vrot.lane.b32.xlu0 %v699, 96
        %v1393 = vpop.permute.xlu0 %1392
        %1394 = vrot.lane.b32.xlu0 %v701, 96
        %v1395 = vpop.permute.xlu0 %1394
        %1396 = vrot.lane.b32.xlu0 %v704, 96
        %v1397 = vpop.permute.xlu0 %1396
        %1398 = vrot.lane.b32.xlu0 %v706, 96
        %v1399 = vpop.permute.xlu0 %1398
        %1400 = vrot.lane.b32.xlu0 %v796, 96
        %v1401 = vpop.permute.xlu0 %1400
        %1402 = vrot.lane.b32.xlu0 %v798, 96
        %v1403 = vpop.permute.xlu0 %1402
        %1404 = vrot.lane.b32.xlu0 %v801, 96
        %v1405 = vpop.permute.xlu0 %1404
        %1406 = vrot.lane.b32.xlu0 %v803, 96
        %v1407 = vpop.permute.xlu0 %1406
        %1408 = vrot.lane.b32.xlu0 %v854, 96
        %v1409 = vpop.permute.xlu0 %1408
        %1410 = vrot.lane.b32.xlu0 %v856, 96
        %v1411 = vpop.permute.xlu0 %1410
        %1412 = vrot.lane.b32.xlu0 %v859, 96
        %v1413 = vpop.permute.xlu0 %1412
        %1414 = vrot.lane.b32.xlu0 %v861, 96
        %v1415 = vpop.permute.xlu0 %1414
        %v1448 = vsel %vm331, %v518, %v873
        %v1449 = vsel %vm331, %v519, %v875
        %v1450 = vsel %vm331, %v521, %v877
        %v1451 = vsel %vm331, %v522, %v879
        %v1452 = vsel %vm331, %v524, %v881
        %v1453 = vsel %vm331, %v525, %v883
        %v1454 = vsel %vm331, %v527, %v885
        %v1455 = vsel %vm331, %v528, %v887
        %v1456 = vsel %vm331, %v530, %v889
        %v1457 = vsel %vm331, %v531, %v891
        %v1458 = vsel %vm331, %v533, %v893
        %v1459 = vsel %vm331, %v534, %v895
        %v1460 = vsel %vm331, %v536, %v897
        %v1461 = vsel %vm331, %v537, %v899
        %v1462 = vsel %vm331, %v539, %v901
        %v1463 = vsel %vm331, %v540, %v903
        %v1464 = vsel %vm331, %v542, %v905
        %v1465 = vsel %vm331, %v543, %v907
        %v1466 = vsel %vm331, %v545, %v909
        %v1467 = vsel %vm331, %v546, %v911
        %v1468 = vsel %vm331, %v548, %v913
        %v1469 = vsel %vm331, %v549, %v915
        %v1470 = vsel %vm331, %v551, %v917
        %v1471 = vsel %vm331, %v552, %v919
        %v1472 = vsel %vm331, %v554, %v921
        %v1473 = vsel %vm331, %v555, %v923
        %v1474 = vsel %vm331, %v557, %v925
        %v1475 = vsel %vm331, %v558, %v927
        %v1476 = vsel %vm331, %v560, %v929
        %v1477 = vsel %vm331, %v561, %v931
        %v1478 = vsel %vm331, %v563, %v933
        %v1479 = vsel %vm331, %v564, %v935
        %vm1480 = vcmask 523264
        %v1481 = vsel %vm1480, %v1448, %v969
        %v1482 = vsel %vm1480, %v1449, %v971
        %v1483 = vsel %vm1480, %v1450, %v973
        %v1484 = vsel %vm1480, %v1451, %v975
        %v1485 = vsel %vm1480, %v1452, %v977
        %v1486 = vsel %vm1480, %v1453, %v979
        %v1487 = vsel %vm1480, %v1454, %v981
        %v1488 = vsel %vm1480, %v1455, %v983
        %v1489 = vsel %vm1480, %v1456, %v985
        %v1490 = vsel %vm1480, %v1457, %v987
        %v1491 = vsel %vm1480, %v1458, %v989
        %v1492 = vsel %vm1480, %v1459, %v991
        %v1493 = vsel %vm1480, %v1460, %v993
        %v1494 = vsel %vm1480, %v1461, %v995
        %v1495 = vsel %vm1480, %v1462, %v997
        %v1496 = vsel %vm1480, %v1463, %v999
        %v1497 = vsel %vm1480, %v1464, %v1001
        %v1498 = vsel %vm1480, %v1465, %v1003
        %v1499 = vsel %vm1480, %v1466, %v1005
        %v1500 = vsel %vm1480, %v1467, %v1007
        %v1501 = vsel %vm1480, %v1468, %v1009
        %v1502 = vsel %vm1480, %v1469, %v1011
        %v1503 = vsel %vm1480, %v1470, %v1013
        %v1504 = vsel %vm1480, %v1471, %v1015
        %v1505 = vsel %vm1480, %v1472, %v1017
        %v1506 = vsel %vm1480, %v1473, %v1019
        %v1507 = vsel %vm1480, %v1474, %v1021
        %v1508 = vsel %vm1480, %v1475, %v1023
        %v1509 = vsel %vm1480, %v1476, %v1025
        %v1510 = vsel %vm1480, %v1477, %v1027
        %v1511 = vsel %vm1480, %v1478, %v1029
        %v1512 = vsel %vm1480, %v1479, %v1031
        %vm1513 = vcmask 785408
        %v1514 = vsel %vm1513, %v1481, %v1065
        %v1515 = vsel %vm1513, %v1482, %v1067
        %v1516 = vsel %vm1513, %v1483, %v1069
        %v1517 = vsel %vm1513, %v1484, %v1071
        %v1518 = vsel %vm1513, %v1485, %v1073
        %v1519 = vsel %vm1513, %v1486, %v1075
        %v1520 = vsel %vm1513, %v1487, %v1077
        %v1521 = vsel %vm1513, %v1488, %v1079
        %v1522 = vsel %vm1513, %v1489, %v1081
        %v1523 = vsel %vm1513, %v1490, %v1083
        %v1524 = vsel %vm1513, %v1491, %v1085
        %v1525 = vsel %vm1513, %v1492, %v1087
        %v1526 = vsel %vm1513, %v1493, %v1089
        %v1527 = vsel %vm1513, %v1494, %v1091
        %v1528 = vsel %vm1513, %v1495, %v1093
        %v1529 = vsel %vm1513, %v1496, %v1095
        %v1530 = vsel %vm1513, %v1497, %v1097
        %v1531 = vsel %vm1513, %v1498, %v1099
        %v1532 = vsel %vm1513, %v1499, %v1101
        %v1533 = vsel %vm1513, %v1500, %v1103
        %v1534 = vsel %vm1513, %v1501, %v1105
        %v1535 = vsel %vm1513, %v1502, %v1107
        %v1536 = vsel %vm1513, %v1503, %v1109
        %v1537 = vsel %vm1513, %v1504, %v1111
        %v1538 = vsel %vm1513, %v1505, %v1113
        %v1539 = vsel %vm1513, %v1506, %v1115
        %v1540 = vsel %vm1513, %v1507, %v1117
        %v1541 = vsel %vm1513, %v1508, %v1119
        %v1542 = vsel %vm1513, %v1509, %v1121
        %v1543 = vsel %vm1513, %v1510, %v1123
        %v1544 = vsel %vm1513, %v1511, %v1125
        %v1545 = vsel %vm1513, %v1512, %v1127
        %v1546 = vsel %vm331, %v639, %v1161
        %v1547 = vsel %vm331, %v641, %v1163
        %v1548 = vsel %vm331, %v644, %v1165
        %v1549 = vsel %vm331, %v646, %v1167
        %v1550 = vsel %vm331, %v649, %v1169
        %v1551 = vsel %vm331, %v651, %v1171
        %v1552 = vsel %vm331, %v654, %v1173
        %v1553 = vsel %vm331, %v656, %v1175
        %v1554 = vsel %vm331, %v659, %v1177
        %v1555 = vsel %vm331, %v661, %v1179
        %v1556 = vsel %vm331, %v664, %v1181
        %v1557 = vsel %vm331, %v666, %v1183
        %v1558 = vsel %vm331, %v669, %v1185
        %v1559 = vsel %vm331, %v671, %v1187
        %v1560 = vsel %vm331, %v674, %v1189
        %v1561 = vsel %vm331, %v676, %v1191
        %v1562 = vsel %vm331, %v679, %v1193
        %v1563 = vsel %vm331, %v681, %v1195
        %v1564 = vsel %vm331, %v684, %v1197
        %v1565 = vsel %vm331, %v686, %v1199
        %v1566 = vsel %vm331, %v689, %v1201
        %v1567 = vsel %vm331, %v691, %v1203
        %v1568 = vsel %vm331, %v694, %v1205
        %v1569 = vsel %vm331, %v696, %v1207
        %v1570 = vsel %vm331, %v699, %v1209
        %v1571 = vsel %vm331, %v701, %v1211
        %v1572 = vsel %vm331, %v704, %v1213
        %v1573 = vsel %vm331, %v706, %v1215
        %v1574 = vsel %vm331, %v796, %v1217
        %v1575 = vsel %vm331, %v798, %v1219
        %v1576 = vsel %vm331, %v801, %v1221
        %v1577 = vsel %vm331, %v803, %v1223
        %v1578 = vsel %vm1480, %v1546, %v1257
        %v1579 = vsel %vm1480, %v1547, %v1259
        %v1580 = vsel %vm1480, %v1548, %v1261
        %v1581 = vsel %vm1480, %v1549, %v1263
        %v1582 = vsel %vm1480, %v1550, %v1265
        %v1583 = vsel %vm1480, %v1551, %v1267
        %v1584 = vsel %vm1480, %v1552, %v1269
        %v1585 = vsel %vm1480, %v1553, %v1271
        %v1586 = vsel %vm1480, %v1554, %v1273
        %v1587 = vsel %vm1480, %v1555, %v1275
        %v1588 = vsel %vm1480, %v1556, %v1277
        %v1589 = vsel %vm1480, %v1557, %v1279
        %v1590 = vsel %vm1480, %v1558, %v1281
        %v1591 = vsel %vm1480, %v1559, %v1283
        %v1592 = vsel %vm1480, %v1560, %v1285
        %v1593 = vsel %vm1480, %v1561, %v1287
        %v1594 = vsel %vm1480, %v1562, %v1289
        %v1595 = vsel %vm1480, %v1563, %v1291
        %v1596 = vsel %vm1480, %v1564, %v1293
        %v1597 = vsel %vm1480, %v1565, %v1295
        %v1598 = vsel %vm1480, %v1566, %v1297
        %v1599 = vsel %vm1480, %v1567, %v1299
        %v1600 = vsel %vm1480, %v1568, %v1301
        %v1601 = vsel %vm1480, %v1569, %v1303
        %v1602 = vsel %vm1480, %v1570, %v1305
        %v1603 = vsel %vm1480, %v1571, %v1307
        %v1604 = vsel %vm1480, %v1572, %v1309
        %v1605 = vsel %vm1480, %v1573, %v1311
        %v1606 = vsel %vm1480, %v1574, %v1313
        %v1607 = vsel %vm1480, %v1575, %v1315
        %v1608 = vsel %vm1480, %v1576, %v1317
        %v1609 = vsel %vm1480, %v1577, %v1319
        %v1610 = vsel %vm1513, %v1578, %v1353
        %v1611 = vsel %vm1513, %v1579, %v1355
        %v1612 = vsel %vm1513, %v1580, %v1357
        %v1613 = vsel %vm1513, %v1581, %v1359
        %v1614 = vsel %vm1513, %v1582, %v1361
        %v1615 = vsel %vm1513, %v1583, %v1363
        %v1616 = vsel %vm1513, %v1584, %v1365
        %v1617 = vsel %vm1513, %v1585, %v1367
        %v1618 = vsel %vm1513, %v1586, %v1369
        %v1619 = vsel %vm1513, %v1587, %v1371
        %v1620 = vsel %vm1513, %v1588, %v1373
        %v1621 = vsel %vm1513, %v1589, %v1375
        %v1622 = vsel %vm1513, %v1590, %v1377
        %v1623 = vsel %vm1513, %v1591, %v1379
        %v1624 = vsel %vm1513, %v1592, %v1381
        %v1625 = vsel %vm1513, %v1593, %v1383
        %v1626 = vsel %vm1513, %v1594, %v1385
        %v1627 = vsel %vm1513, %v1595, %v1387
        %v1628 = vsel %vm1513, %v1596, %v1389
        %v1629 = vsel %vm1513, %v1597, %v1391
        %v1630 = vsel %vm1513, %v1598, %v1393
        %v1631 = vsel %vm1513, %v1599, %v1395
        %v1632 = vsel %vm1513, %v1600, %v1397
        %v1633 = vsel %vm1513, %v1601, %v1399
        %v1634 = vsel %vm1513, %v1602, %v1401
        %v1635 = vsel %vm1513, %v1603, %v1403
        %v1636 = vsel %vm1513, %v1604, %v1405
        %v1637 = vsel %vm1513, %v1605, %v1407
        %v1638 = vsel %vm1513, %v1606, %v1409
        %v1639 = vsel %vm1513, %v1607, %v1411
        %v1640 = vsel %vm1513, %v1608, %v1413
        %v1641 = vsel %vm1513, %v1609, %v1415
        %v1642 = vld [vmem:[%s1] sm:$0xff]
        %v1643 = vld [vmem:[%s1 + $0x8] sm:$0xff]
        %v1644 = vld [vmem:[%s1 + $0x10] sm:$0xff]
        %v1645 = vld [vmem:[%s1 + $0x18] sm:$0xff]
        %v1646 = vld [vmem:[%s1 + $0x20] sm:$0xff]
        %v1647 = vld [vmem:[%s1 + $0x28] sm:$0xff]
        %v1648 = vld [vmem:[%s1 + $0x30] sm:$0xff]
        %v1649 = vld [vmem:[%s1 + $0x38] sm:$0xff]
        %v1650 = vld [vmem:[%s1 + $0x40] sm:$0xff]
        %v1651 = vld [vmem:[%s1 + $0x48] sm:$0xff]
        %v1652 = vld [vmem:[%s1 + $0x50] sm:$0xff]
        %v1653 = vld [vmem:[%s1 + $0x58] sm:$0xff]
        %v1654 = vld [vmem:[%s1 + $0x60] sm:$0xff]
        %v1655 = vld [vmem:[%s1 + $0x68] sm:$0xff]
        %v1656 = vld [vmem:[%s1 + $0x70] sm:$0xff]
        %v1657 = vld [vmem:[%s1 + $0x78] sm:$0xff]
        %v1658 = vld [vmem:[%s1 + $0x80] sm:$0xff]
        %v1659 = vld [vmem:[%s1 + $0x88] sm:$0xff]
        %v1660 = vld [vmem:[%s1 + $0x90] sm:$0xff]
        %v1661 = vld [vmem:[%s1 + $0x98] sm:$0xff]
        %v1662 = vld [vmem:[%s1 + $0xa0] sm:$0xff]
        %v1663 = vld [vmem:[%s1 + $0xa8] sm:$0xff]
        %v1664 = vld [vmem:[%s1 + $0xb0] sm:$0xff]
        %v1665 = vld [vmem:[%s1 + $0xb8] sm:$0xff]
        %v1666 = vld [vmem:[%s1 + $0xc0] sm:$0xff]
        %v1667 = vld [vmem:[%s1 + $0xc8] sm:$0xff]
        %v1668 = vld [vmem:[%s1 + $0xd0] sm:$0xff]
        %v1669 = vld [vmem:[%s1 + $0xd8] sm:$0xff]
        %v1670 = vld [vmem:[%s1 + $0xe0] sm:$0xff]
        %v1671 = vld [vmem:[%s1 + $0xe8] sm:$0xff]
        %v1672 = vld [vmem:[%s1 + $0xf0] sm:$0xff]
        %v1673 = vld [vmem:[%s1 + $0xf8] sm:$0xff]
        %v1674 = vld [vmem:[%s1 + $0x100] sm:$0xff]
        %v1675 = vld [vmem:[%s1 + $0x108] sm:$0xff]
        %v1676 = vld [vmem:[%s1 + $0x110] sm:$0xff]
        %v1677 = vld [vmem:[%s1 + $0x118] sm:$0xff]
        %v1678 = vld [vmem:[%s2] sm:$0x1]
        %v1680 = vlaneseq
        %v1681 = vshrl.u32 %v1680, 7
        %v1682 = vsub.s32 0, %v1681
        %v1683 = vrot.slane %v1678, %v1682
        %v1685 = vsel %vm331, %v730, 0
        %v1687 = vsel %vm331, %v732, 0
        %v1689 = vsel %vm331, %v735, 0
        %v1691 = vsel %vm331, %v737, 0
        %v1693 = vsel %vm331, %v740, 0
        %v1695 = vsel %vm331, %v742, 0
        %v1697 = vsel %vm331, %v745, 0
        %v1699 = vsel %vm331, %v747, 0
        %v1701 = vsel %vm331, %v750, 0
        %v1703 = vsel %vm331, %v752, 0
        %v1705 = vsel %vm331, %v755, 0
        %v1707 = vsel %vm331, %v757, 0
        %v1709 = vsel %vm331, %v760, 0
        %v1711 = vsel %vm331, %v762, 0
        %v1713 = vsel %vm331, %v765, 0
        %v1715 = vsel %vm331, %v767, 0
        %v1717 = vsel %vm331, %v770, 0
        %v1719 = vsel %vm331, %v772, 0
        %v1721 = vsel %vm331, %v775, 0
        %v1723 = vsel %vm331, %v777, 0
        %v1725 = vsel %vm331, %v780, 0
        %v1727 = vsel %vm331, %v782, 0
        %v1729 = vsel %vm331, %v785, 0
        %v1731 = vsel %vm331, %v787, 0
        %v1733 = vsel %vm331, %v838, 0
        %v1735 = vsel %vm331, %v840, 0
        %v1737 = vsel %vm331, %v843, 0
        %v1739 = vsel %vm331, %v845, 0
        %v1741 = vsel %vm331, %v864, 0
        %v1743 = vsel %vm331, %v866, 0
        %v1745 = vsel %vm331, %v869, 0
        %v1747 = vsel %vm331, %v871, 0
        %1749 = vmatprep.subr.mxu0 0.0
        %1750 = vmatpush1.msra.mxu0 %v1657
        %1751 = vmatprep.subr.mxu0 0.0
        %1752 = vmatpush1.msra.mxu0 %v1656
        %1753 = vmatprep.subr.mxu0 0.0
        %1754 = vmatpush1.msra.mxu0 %v1655
        %1755 = vmatprep.subr.mxu0 0.0
        %1756 = vmatpush1.msra.mxu0 %v1654
        %1757 = vmatprep.subr.mxu0 0.0
        %1758 = vmatpush1.msra.mxu0 %v1653
        %1759 = vmatprep.subr.mxu0 0.0
        %1760 = vmatpush1.msra.mxu0 %v1652
        %1761 = vmatprep.subr.mxu0 0.0
        %1762 = vmatpush1.msra.mxu0 %v1651
        %1763 = vmatprep.subr.mxu0 0.0
        %1764 = vmatpush1.msra.mxu0 %v1650
        %1765 = vmatprep.subr.mxu0 0.0
        %1766 = vmatpush1.msra.mxu0 %v1649
        %1767 = vmatprep.subr.mxu0 0.0
        %1768 = vmatpush1.msra.mxu0 %v1648
        %1769 = vmatprep.subr.mxu0 0.0
        %1770 = vmatpush1.msra.mxu0 %v1647
        %1771 = vmatprep.subr.mxu0 0.0
        %1772 = vmatpush1.msra.mxu0 %v1646
        %1773 = vmatprep.subr.mxu0 0.0
        %1774 = vmatpush1.msra.mxu0 %v1645
        %1775 = vmatprep.subr.mxu0 0.0
        %1776 = vmatpush1.msra.mxu0 %v1644
        %1777 = vmatprep.subr.mxu0 0.0
        %1778 = vmatpush1.msra.mxu0 %v1643
        %1779 = vmatprep.subr.mxu0 0.0
        %1780 = vmatpush1.msra.mxu0 %v1642
        %1781 = vmatprep.subr.mxu0 0.0
        %1782 = vmatpush2.msra.mxu0 %v1673
        %1783 = vmatprep.subr.mxu0 0.0
        %1784 = vmatpush2.msra.mxu0 %v1672
        %1785 = vmatprep.subr.mxu0 0.0
        %1786 = vmatpush2.msra.mxu0 %v1671
        %1787 = vmatprep.subr.mxu0 0.0
        %1788 = vmatpush2.msra.mxu0 %v1670
        %1789 = vmatprep.subr.mxu0 0.0
        %1790 = vmatpush2.msra.mxu0 %v1669
        %1791 = vmatprep.subr.mxu0 0.0
        %1792 = vmatpush2.msra.mxu0 %v1668
        %1793 = vmatprep.subr.mxu0 0.0
        %1794 = vmatpush2.msra.mxu0 %v1667
        %1795 = vmatprep.subr.mxu0 0.0
        %1796 = vmatpush2.msra.mxu0 %v1666
        %1797 = vmatprep.subr.mxu0 0.0
        %1798 = vmatpush2.msra.mxu0 %v1665
        %1799 = vmatprep.subr.mxu0 0.0
        %1800 = vmatpush2.msra.mxu0 %v1664
        %1801 = vmatprep.subr.mxu0 0.0
        %1802 = vmatpush2.msra.mxu0 %v1663
        %1803 = vmatprep.subr.mxu0 0.0
        %1804 = vmatpush2.msra.mxu0 %v1662
        %1805 = vmatprep.subr.mxu0 0.0
        %1806 = vmatpush2.msra.mxu0 %v1661
        %1807 = vmatprep.subr.mxu0 0.0
        %1808 = vmatpush2.msra.mxu0 %v1660
        %1809 = vmatprep.subr.mxu0 0.0
        %1810 = vmatpush2.msra.mxu0 %v1659
        %1811 = vmatprep.subr.mxu0 0.0
        %1812 = vmatpush2.msra.mxu0 %v1658
        %1813 = vmatprep.mubr.f32.mxu0 %v1610
        %1814 = vmatmul.mubr.f32.gmra.mxu0 %v1514
        %v1815 = vpop.f32.mrf.mxu0
        %v1816 = vadd.f32 %v1683, %v1815
        %v1817 = vpop.f32.mrf.mxu0
        %1818 = vmatprep.mubr.f32.mxu0 %v1611
        %1819 = vmatmul.mubr.f32.gmra.mxu0 %v1515
        %v1820 = vpop.f32.mrf.mxu0
        %v1821 = vadd.f32 %v1683, %v1820
        %v1822 = vpop.f32.mrf.mxu0
        %1823 = vmatprep.mubr.f32.mxu0 %v1612
        %1824 = vmatmul.mubr.f32.gmra.mxu0 %v1516
        %v1825 = vpop.f32.mrf.mxu0
        %v1826 = vadd.f32 %v1683, %v1825
        %v1827 = vpop.f32.mrf.mxu0
        %1828 = vmatprep.mubr.f32.mxu0 %v1613
        %1829 = vmatmul.mubr.f32.gmra.mxu0 %v1517
        %v1830 = vpop.f32.mrf.mxu0
        %v1831 = vadd.f32 %v1683, %v1830
        %v1832 = vpop.f32.mrf.mxu0
        %1833 = vmatprep.mubr.f32.mxu0 %v1614
        %1834 = vmatmul.mubr.f32.gmra.mxu0 %v1518
        %v1835 = vpop.f32.mrf.mxu0
        %v1836 = vadd.f32 %v1683, %v1835
        %v1837 = vpop.f32.mrf.mxu0
        %1838 = vmatprep.mubr.f32.mxu0 %v1615
        %1839 = vmatmul.mubr.f32.gmra.mxu0 %v1519
        %v1840 = vpop.f32.mrf.mxu0
        %v1841 = vadd.f32 %v1683, %v1840
        %v1842 = vpop.f32.mrf.mxu0
        %1843 = vmatprep.mubr.f32.mxu0 %v1616
        %1844 = vmatmul.mubr.f32.gmra.mxu0 %v1520
        %v1845 = vpop.f32.mrf.mxu0
        %v1846 = vadd.f32 %v1683, %v1845
        %v1847 = vpop.f32.mrf.mxu0
        %1848 = vmatprep.mubr.f32.mxu0 %v1617
        %1849 = vmatmul.mubr.f32.gmra.mxu0 %v1521
        %v1850 = vpop.f32.mrf.mxu0
        %v1851 = vadd.f32 %v1683, %v1850
        %v1852 = vpop.f32.mrf.mxu0
        %1853 = vmatprep.mubr.f32.mxu0 %v1618
        %1854 = vmatmul.mubr.f32.gmra.mxu0 %v1522
        %v1855 = vpop.f32.mrf.mxu0
        %v1856 = vadd.f32 %v1683, %v1855
        %v1857 = vpop.f32.mrf.mxu0
        %1858 = vmatprep.mubr.f32.mxu0 %v1619
        %1859 = vmatmul.mubr.f32.gmra.mxu0 %v1523
        %v1860 = vpop.f32.mrf.mxu0
        %v1861 = vadd.f32 %v1683, %v1860
        %v1862 = vpop.f32.mrf.mxu0
        %1863 = vmatprep.mubr.f32.mxu0 %v1620
        %1864 = vmatmul.mubr.f32.gmra.mxu0 %v1524
        %v1865 = vpop.f32.mrf.mxu0
        %v1866 = vadd.f32 %v1683, %v1865
        %v1867 = vpop.f32.mrf.mxu0
        %1868 = vmatprep.mubr.f32.mxu0 %v1621
        %1869 = vmatmul.mubr.f32.gmra.mxu0 %v1525
        %v1870 = vpop.f32.mrf.mxu0
        %v1871 = vadd.f32 %v1683, %v1870
        %v1872 = vpop.f32.mrf.mxu0
        %1873 = vmatprep.mubr.f32.mxu0 %v1622
        %1874 = vmatmul.mubr.f32.gmra.mxu0 %v1526
        %v1875 = vpop.f32.mrf.mxu0
        %v1876 = vadd.f32 %v1683, %v1875
        %v1877 = vpop.f32.mrf.mxu0
        %1878 = vmatprep.mubr.f32.mxu0 %v1623
        %1879 = vmatmul.mubr.f32.gmra.mxu0 %v1527
        %v1880 = vpop.f32.mrf.mxu0
        %v1881 = vadd.f32 %v1683, %v1880
        %v1882 = vpop.f32.mrf.mxu0
        %1883 = vmatprep.mubr.f32.mxu0 %v1624
        %1884 = vmatmul.mubr.f32.gmra.mxu0 %v1528
        %v1885 = vpop.f32.mrf.mxu0
        %v1886 = vadd.f32 %v1683, %v1885
        %v1887 = vpop.f32.mrf.mxu0
        %1888 = vmatprep.mubr.f32.mxu0 %v1625
        %1889 = vmatmul.mubr.f32.gmra.mxu0 %v1529
        %v1890 = vpop.f32.mrf.mxu0
        %v1891 = vadd.f32 %v1683, %v1890
        %v1892 = vpop.f32.mrf.mxu0
        %1893 = vmatprep.mubr.f32.mxu0 %v1626
        %1894 = vmatmul.mubr.f32.gmra.mxu0 %v1530
        %v1895 = vpop.f32.mrf.mxu0
        %v1896 = vadd.f32 %v1683, %v1895
        %v1897 = vpop.f32.mrf.mxu0
        %1898 = vmatprep.mubr.f32.mxu0 %v1627
        %1899 = vmatmul.mubr.f32.gmra.mxu0 %v1531
        %v1900 = vpop.f32.mrf.mxu0
        %v1901 = vadd.f32 %v1683, %v1900
        %v1902 = vpop.f32.mrf.mxu0
        %1903 = vmatprep.mubr.f32.mxu0 %v1628
        %1904 = vmatmul.mubr.f32.gmra.mxu0 %v1532
        %v1905 = vpop.f32.mrf.mxu0
        %v1906 = vadd.f32 %v1683, %v1905
        %v1907 = vpop.f32.mrf.mxu0
        %1908 = vmatprep.mubr.f32.mxu0 %v1629
        %1909 = vmatmul.mubr.f32.gmra.mxu0 %v1533
        %v1910 = vpop.f32.mrf.mxu0
        %v1911 = vadd.f32 %v1683, %v1910
        %v1912 = vpop.f32.mrf.mxu0
        %1913 = vmatprep.mubr.f32.mxu0 %v1630
        %1914 = vmatmul.mubr.f32.gmra.mxu0 %v1534
        %v1915 = vpop.f32.mrf.mxu0
        %v1916 = vadd.f32 %v1683, %v1915
        %v1917 = vpop.f32.mrf.mxu0
        %1918 = vmatprep.mubr.f32.mxu0 %v1631
        %1919 = vmatmul.mubr.f32.gmra.mxu0 %v1535
        %v1920 = vpop.f32.mrf.mxu0
        %v1921 = vadd.f32 %v1683, %v1920
        %v1922 = vpop.f32.mrf.mxu0
        %1923 = vmatprep.mubr.f32.mxu0 %v1632
        %1924 = vmatmul.mubr.f32.gmra.mxu0 %v1536
        %v1925 = vpop.f32.mrf.mxu0
        %v1926 = vadd.f32 %v1683, %v1925
        %v1927 = vpop.f32.mrf.mxu0
        %1928 = vmatprep.mubr.f32.mxu0 %v1633
        %1929 = vmatmul.mubr.f32.gmra.mxu0 %v1537
        %v1930 = vpop.f32.mrf.mxu0
        %v1931 = vadd.f32 %v1683, %v1930
        %v1932 = vpop.f32.mrf.mxu0
        %1933 = vmatprep.mubr.f32.mxu0 %v1634
        %1934 = vmatmul.mubr.f32.gmra.mxu0 %v1538
        %v1935 = vpop.f32.mrf.mxu0
        %v1936 = vadd.f32 %v1683, %v1935
        %v1937 = vpop.f32.mrf.mxu0
        %1938 = vmatprep.mubr.f32.mxu0 %v1635
        %1939 = vmatmul.mubr.f32.gmra.mxu0 %v1539
        %v1940 = vpop.f32.mrf.mxu0
        %v1941 = vadd.f32 %v1683, %v1940
        %v1942 = vpop.f32.mrf.mxu0
        %1943 = vmatprep.mubr.f32.mxu0 %v1636
        %1944 = vmatmul.mubr.f32.gmra.mxu0 %v1540
        %v1945 = vpop.f32.mrf.mxu0
        %v1946 = vadd.f32 %v1683, %v1945
        %v1947 = vpop.f32.mrf.mxu0
        %1948 = vmatprep.mubr.f32.mxu0 %v1637
        %1949 = vmatmul.mubr.f32.gmra.mxu0 %v1541
        %v1950 = vpop.f32.mrf.mxu0
        %v1951 = vadd.f32 %v1683, %v1950
        %v1952 = vpop.f32.mrf.mxu0
        %1953 = vmatprep.mubr.f32.mxu0 %v1638
        %1954 = vmatmul.mubr.f32.gmra.mxu0 %v1542
        %v1955 = vpop.f32.mrf.mxu0
        %v1956 = vadd.f32 %v1683, %v1955
        %v1957 = vpop.f32.mrf.mxu0
        %1958 = vmatprep.mubr.f32.mxu0 %v1639
        %1959 = vmatmul.mubr.f32.gmra.mxu0 %v1543
        %v1960 = vpop.f32.mrf.mxu0
        %v1961 = vadd.f32 %v1683, %v1960
        %v1962 = vpop.f32.mrf.mxu0
        %1963 = vmatprep.mubr.f32.mxu0 %v1640
        %1964 = vmatmul.mubr.f32.gmra.mxu0 %v1544
        %v1965 = vpop.f32.mrf.mxu0
        %v1966 = vadd.f32 %v1683, %v1965
        %v1967 = vpop.f32.mrf.mxu0
        %1968 = vmatprep.mubr.f32.mxu0 %v1641
        %1969 = vmatmul.mubr.f32.gmra.mxu0 %v1545
        %v1970 = vpop.f32.mrf.mxu0
        %v1971 = vadd.f32 %v1683, %v1970
        %v1972 = vpop.f32.mrf.mxu0
        %1973 = vdwg.mxu0
        %1974 = vmatprep.subr.mxu0 0.0
        %1975 = vmatpush1.msra.mxu0 0.0
        %1976 = vmatprep.subr.mxu0 0.0
        %1977 = vmatpush1.msra.mxu0 0.0
        %1978 = vmatprep.subr.mxu0 0.0
        %1979 = vmatpush1.msra.mxu0 0.0
        %1980 = vmatprep.subr.mxu0 0.0
        %1981 = vmatpush1.msra.mxu0 0.0
        %1982 = vmatprep.subr.mxu0 0.0
        %1983 = vmatpush1.msra.mxu0 0.0
        %1984 = vmatprep.subr.mxu0 0.0
        %1985 = vmatpush1.msra.mxu0 0.0
        %1986 = vmatprep.subr.mxu0 0.0
        %1987 = vmatpush1.msra.mxu0 0.0
        %1988 = vmatprep.subr.mxu0 0.0
        %1989 = vmatpush1.msra.mxu0 0.0
        %1990 = vmatprep.subr.mxu0 0.0
        %1991 = vmatpush1.msra.mxu0 0.0
        %1992 = vmatprep.subr.mxu0 0.0
        %1993 = vmatpush1.msra.mxu0 0.0
        %1994 = vmatprep.subr.mxu0 0.0
        %1995 = vmatpush1.msra.mxu0 0.0
        %1996 = vmatprep.subr.mxu0 0.0
        %1997 = vmatpush1.msra.mxu0 0.0
        %1998 = vmatprep.subr.mxu0 0.0
        %1999 = vmatpush1.msra.mxu0 %v1677
        %2000 = vmatprep.subr.mxu0 0.0
        %2001 = vmatpush1.msra.mxu0 %v1676
        %2002 = vmatprep.subr.mxu0 0.0
        %2003 = vmatpush1.msra.mxu0 %v1675
        %2004 = vmatprep.subr.mxu0 0.0
        %2005 = vmatpush1.msra.mxu0 %v1674
        %2006 = vmatprep.subr.mxu0 0.0
        %2007 = vmatpush2.msra.mxu0 0.0
        %2008 = vmatprep.subr.mxu0 0.0
        %2009 = vmatpush2.msra.mxu0 0.0
        %2010 = vmatprep.subr.mxu0 0.0
        %2011 = vmatpush2.msra.mxu0 0.0
        %2012 = vmatprep.subr.mxu0 0.0
        %2013 = vmatpush2.msra.mxu0 0.0
        %2014 = vmatprep.subr.mxu0 0.0
        %2015 = vmatpush2.msra.mxu0 0.0
        %2016 = vmatprep.subr.mxu0 0.0
        %2017 = vmatpush2.msra.mxu0 0.0
        %2018 = vmatprep.subr.mxu0 0.0
        %2019 = vmatpush2.msra.mxu0 0.0
        %2020 = vmatprep.subr.mxu0 0.0
        %2021 = vmatpush2.msra.mxu0 0.0
        %2022 = vmatprep.subr.mxu0 0.0
        %2023 = vmatpush2.msra.mxu0 0.0
        %2024 = vmatprep.subr.mxu0 0.0
        %2025 = vmatpush2.msra.mxu0 0.0
        %2026 = vmatprep.subr.mxu0 0.0
        %2027 = vmatpush2.msra.mxu0 0.0
        %2028 = vmatprep.subr.mxu0 0.0
        %2029 = vmatpush2.msra.mxu0 0.0
        %2030 = vmatprep.subr.mxu0 0.0
        %2031 = vmatpush2.msra.mxu0 0.0
        %2032 = vmatprep.subr.mxu0 0.0
        %2033 = vmatpush2.msra.mxu0 0.0
        %2034 = vmatprep.subr.mxu0 0.0
        %2035 = vmatpush2.msra.mxu0 0.0
        %2036 = vmatprep.subr.mxu0 0.0
        %2037 = vmatpush2.msra.mxu0 0.0
        %2038 = vmatprep.mubr.f32.mxu0 0.0
        %2039 = vmatmul.mubr.f32.gmra.mxu0 %v1685
        %v2040 = vpop.f32.mrf.mxu0
        %v2041 = vadd.f32 %v1816, %v2040
        %v2042 = vpop.f32.mrf.mxu0
        %2043 = vmatprep.mubr.f32.mxu0 0.0
        %2044 = vmatmul.mubr.f32.gmra.mxu0 %v1687
        %v2045 = vpop.f32.mrf.mxu0
        %v2046 = vadd.f32 %v1821, %v2045
        %v2047 = vpop.f32.mrf.mxu0
        %2048 = vmatprep.mubr.f32.mxu0 0.0
        %2049 = vmatmul.mubr.f32.gmra.mxu0 %v1689
        %v2050 = vpop.f32.mrf.mxu0
        %v2051 = vadd.f32 %v1826, %v2050
        %v2052 = vpop.f32.mrf.mxu0
        %2053 = vmatprep.mubr.f32.mxu0 0.0
        %2054 = vmatmul.mubr.f32.gmra.mxu0 %v1691
        %v2055 = vpop.f32.mrf.mxu0
        %v2056 = vadd.f32 %v1831, %v2055
        %v2057 = vpop.f32.mrf.mxu0
        %2058 = vmatprep.mubr.f32.mxu0 0.0
        %2059 = vmatmul.mubr.f32.gmra.mxu0 %v1693
        %v2060 = vpop.f32.mrf.mxu0
        %v2061 = vadd.f32 %v1836, %v2060
        %v2062 = vpop.f32.mrf.mxu0
        %2063 = vmatprep.mubr.f32.mxu0 0.0
        %2064 = vmatmul.mubr.f32.gmra.mxu0 %v1695
        %v2065 = vpop.f32.mrf.mxu0
        %v2066 = vadd.f32 %v1841, %v2065
        %v2067 = vpop.f32.mrf.mxu0
        %2068 = vmatprep.mubr.f32.mxu0 0.0
        %2069 = vmatmul.mubr.f32.gmra.mxu0 %v1697
        %v2070 = vpop.f32.mrf.mxu0
        %v2071 = vadd.f32 %v1846, %v2070
        %v2072 = vpop.f32.mrf.mxu0
        %2073 = vmatprep.mubr.f32.mxu0 0.0
        %2074 = vmatmul.mubr.f32.gmra.mxu0 %v1699
        %v2075 = vpop.f32.mrf.mxu0
        %v2076 = vadd.f32 %v1851, %v2075
        %v2077 = vpop.f32.mrf.mxu0
        %2078 = vmatprep.mubr.f32.mxu0 0.0
        %2079 = vmatmul.mubr.f32.gmra.mxu0 %v1701
        %v2080 = vpop.f32.mrf.mxu0
        %v2081 = vadd.f32 %v1856, %v2080
        %v2082 = vpop.f32.mrf.mxu0
        %2083 = vmatprep.mubr.f32.mxu0 0.0
        %2084 = vmatmul.mubr.f32.gmra.mxu0 %v1703
        %v2085 = vpop.f32.mrf.mxu0
        %v2086 = vadd.f32 %v1861, %v2085
        %v2087 = vpop.f32.mrf.mxu0
        %2088 = vmatprep.mubr.f32.mxu0 0.0
        %2089 = vmatmul.mubr.f32.gmra.mxu0 %v1705
        %v2090 = vpop.f32.mrf.mxu0
        %v2091 = vadd.f32 %v1866, %v2090
        %v2092 = vpop.f32.mrf.mxu0
        %2093 = vmatprep.mubr.f32.mxu0 0.0
        %2094 = vmatmul.mubr.f32.gmra.mxu0 %v1707
        %v2095 = vpop.f32.mrf.mxu0
        %v2096 = vadd.f32 %v1871, %v2095
        %v2097 = vpop.f32.mrf.mxu0
        %2098 = vmatprep.mubr.f32.mxu0 0.0
        %2099 = vmatmul.mubr.f32.gmra.mxu0 %v1709
        %v2100 = vpop.f32.mrf.mxu0
        %v2101 = vadd.f32 %v1876, %v2100
        %v2102 = vpop.f32.mrf.mxu0
        %2103 = vmatprep.mubr.f32.mxu0 0.0
        %2104 = vmatmul.mubr.f32.gmra.mxu0 %v1711
        %v2105 = vpop.f32.mrf.mxu0
        %v2106 = vadd.f32 %v1881, %v2105
        %v2107 = vpop.f32.mrf.mxu0
        %2108 = vmatprep.mubr.f32.mxu0 0.0
        %2109 = vmatmul.mubr.f32.gmra.mxu0 %v1713
        %v2110 = vpop.f32.mrf.mxu0
        %v2111 = vadd.f32 %v1886, %v2110
        %v2112 = vpop.f32.mrf.mxu0
        %2113 = vmatprep.mubr.f32.mxu0 0.0
        %2114 = vmatmul.mubr.f32.gmra.mxu0 %v1715
        %v2115 = vpop.f32.mrf.mxu0
        %v2116 = vadd.f32 %v1891, %v2115
        %v2117 = vpop.f32.mrf.mxu0
        %2118 = vmatprep.mubr.f32.mxu0 0.0
        %2119 = vmatmul.mubr.f32.gmra.mxu0 %v1717
        %v2120 = vpop.f32.mrf.mxu0
        %v2121 = vadd.f32 %v1896, %v2120
        %v2122 = vpop.f32.mrf.mxu0
        %2123 = vmatprep.mubr.f32.mxu0 0.0
        %2124 = vmatmul.mubr.f32.gmra.mxu0 %v1719
        %v2125 = vpop.f32.mrf.mxu0
        %v2126 = vadd.f32 %v1901, %v2125
        %v2127 = vpop.f32.mrf.mxu0
        %2128 = vmatprep.mubr.f32.mxu0 0.0
        %2129 = vmatmul.mubr.f32.gmra.mxu0 %v1721
        %v2130 = vpop.f32.mrf.mxu0
        %v2131 = vadd.f32 %v1906, %v2130
        %v2132 = vpop.f32.mrf.mxu0
        %2133 = vmatprep.mubr.f32.mxu0 0.0
        %2134 = vmatmul.mubr.f32.gmra.mxu0 %v1723
        %v2135 = vpop.f32.mrf.mxu0
        %v2136 = vadd.f32 %v1911, %v2135
        %v2137 = vpop.f32.mrf.mxu0
        %2138 = vmatprep.mubr.f32.mxu0 0.0
        %2139 = vmatmul.mubr.f32.gmra.mxu0 %v1725
        %v2140 = vpop.f32.mrf.mxu0
        %v2141 = vadd.f32 %v1916, %v2140
        %v2142 = vpop.f32.mrf.mxu0
        %2143 = vmatprep.mubr.f32.mxu0 0.0
        %2144 = vmatmul.mubr.f32.gmra.mxu0 %v1727
        %v2145 = vpop.f32.mrf.mxu0
        %v2146 = vadd.f32 %v1921, %v2145
        %v2147 = vpop.f32.mrf.mxu0
        %2148 = vmatprep.mubr.f32.mxu0 0.0
        %2149 = vmatmul.mubr.f32.gmra.mxu0 %v1729
        %v2150 = vpop.f32.mrf.mxu0
        %v2151 = vadd.f32 %v1926, %v2150
        %v2152 = vpop.f32.mrf.mxu0
        %2153 = vmatprep.mubr.f32.mxu0 0.0
        %2154 = vmatmul.mubr.f32.gmra.mxu0 %v1731
        %v2155 = vpop.f32.mrf.mxu0
        %v2156 = vadd.f32 %v1931, %v2155
        %v2157 = vpop.f32.mrf.mxu0
        %2158 = vmatprep.mubr.f32.mxu0 0.0
        %2159 = vmatmul.mubr.f32.gmra.mxu0 %v1733
        %v2160 = vpop.f32.mrf.mxu0
        %v2161 = vadd.f32 %v1936, %v2160
        %v2162 = vpop.f32.mrf.mxu0
        %2163 = vmatprep.mubr.f32.mxu0 0.0
        %2164 = vmatmul.mubr.f32.gmra.mxu0 %v1735
        %v2165 = vpop.f32.mrf.mxu0
        %v2166 = vadd.f32 %v1941, %v2165
        %v2167 = vpop.f32.mrf.mxu0
        %2168 = vmatprep.mubr.f32.mxu0 0.0
        %2169 = vmatmul.mubr.f32.gmra.mxu0 %v1737
        %v2170 = vpop.f32.mrf.mxu0
        %v2171 = vadd.f32 %v1946, %v2170
        %v2172 = vpop.f32.mrf.mxu0
        %2173 = vmatprep.mubr.f32.mxu0 0.0
        %2174 = vmatmul.mubr.f32.gmra.mxu0 %v1739
        %v2175 = vpop.f32.mrf.mxu0
        %v2176 = vadd.f32 %v1951, %v2175
        %v2177 = vpop.f32.mrf.mxu0
        %2178 = vmatprep.mubr.f32.mxu0 0.0
        %2179 = vmatmul.mubr.f32.gmra.mxu0 %v1741
        %v2180 = vpop.f32.mrf.mxu0
        %v2181 = vadd.f32 %v1956, %v2180
        %v2182 = vpop.f32.mrf.mxu0
        %2183 = vmatprep.mubr.f32.mxu0 0.0
        %2184 = vmatmul.mubr.f32.gmra.mxu0 %v1743
        %v2185 = vpop.f32.mrf.mxu0
        %v2186 = vadd.f32 %v1961, %v2185
        %v2187 = vpop.f32.mrf.mxu0
        %2188 = vmatprep.mubr.f32.mxu0 0.0
        %2189 = vmatmul.mubr.f32.gmra.mxu0 %v1745
        %v2190 = vpop.f32.mrf.mxu0
        %v2191 = vadd.f32 %v1966, %v2190
        %v2192 = vpop.f32.mrf.mxu0
        %2193 = vmatprep.mubr.f32.mxu0 0.0
        %2194 = vmatmul.mubr.f32.gmra.mxu0 %v1747
        %v2195 = vpop.f32.mrf.mxu0
        %v2196 = vadd.f32 %v1971, %v2195
        %v2197 = vpop.f32.mrf.mxu0
        %2198 = vdwg.mxu0
        %v2199 = vmax.f32 %v2041, 0.0
        %v2200 = vmax.f32 %v2046, 0.0
        %v2201 = vmax.f32 %v2051, 0.0
        %v2202 = vmax.f32 %v2056, 0.0
        %v2203 = vmax.f32 %v2061, 0.0
        %v2204 = vmax.f32 %v2066, 0.0
        %v2205 = vmax.f32 %v2071, 0.0
        %v2206 = vmax.f32 %v2076, 0.0
        %v2207 = vmax.f32 %v2081, 0.0
        %v2208 = vmax.f32 %v2086, 0.0
        %v2209 = vmax.f32 %v2091, 0.0
        %v2210 = vmax.f32 %v2096, 0.0
        %v2211 = vmax.f32 %v2101, 0.0
        %v2212 = vmax.f32 %v2106, 0.0
        %v2213 = vmax.f32 %v2111, 0.0
        %v2214 = vmax.f32 %v2116, 0.0
        %v2215 = vmax.f32 %v2121, 0.0
        %v2216 = vmax.f32 %v2126, 0.0
        %v2217 = vmax.f32 %v2131, 0.0
        %v2218 = vmax.f32 %v2136, 0.0
        %v2219 = vmax.f32 %v2141, 0.0
        %v2220 = vmax.f32 %v2146, 0.0
        %v2221 = vmax.f32 %v2151, 0.0
        %v2222 = vmax.f32 %v2156, 0.0
        %v2223 = vmax.f32 %v2161, 0.0
        %v2224 = vmax.f32 %v2166, 0.0
        %v2225 = vmax.f32 %v2171, 0.0
        %v2226 = vmax.f32 %v2176, 0.0
        %v2227 = vmax.f32 %v2181, 0.0
        %v2228 = vmax.f32 %v2186, 0.0
        %v2229 = vmax.f32 %v2191, 0.0
        %v2230 = vmax.f32 %v2196, 0.0
        %s2231 = scalar_lea.vmem [#allocation3], 48
        %2232 = vst.msk [vmem:[%s2231 + $0x2] sm:$0xff] %vm331, %v2199
        %2233 = vst.msk [vmem:[%s2231 + $0xa] sm:$0xff] %vm331, %v2200
        %2234 = vst.msk [vmem:[%s2231 + $0x1a] sm:$0xff] %vm331, %v2201
        %2235 = vst.msk [vmem:[%s2231 + $0x22] sm:$0xff] %vm331, %v2202
        %2236 = vst.msk [vmem:[%s2231 + $0x32] sm:$0xff] %vm331, %v2203
        %2237 = vst.msk [vmem:[%s2231 + $0x3a] sm:$0xff] %vm331, %v2204
        %2238 = vst.msk [vmem:[%s2231 + $0x4a] sm:$0xff] %vm331, %v2205
        %2239 = vst.msk [vmem:[%s2231 + $0x52] sm:$0xff] %vm331, %v2206
        %2240 = vst.msk [vmem:[%s2231 + $0x62] sm:$0xff] %vm331, %v2207
        %2241 = vst.msk [vmem:[%s2231 + $0x6a] sm:$0xff] %vm331, %v2208
        %2242 = vst.msk [vmem:[%s2231 + $0x7a] sm:$0xff] %vm331, %v2209
        %2243 = vst.msk [vmem:[%s2231 + $0x82] sm:$0xff] %vm331, %v2210
        %2244 = vst.msk [vmem:[%s2231 + $0x92] sm:$0xff] %vm331, %v2211
        %2245 = vst.msk [vmem:[%s2231 + $0x9a] sm:$0xff] %vm331, %v2212
        %2246 = vst.msk [vmem:[%s2231 + $0xaa] sm:$0xff] %vm331, %v2213
        %2247 = vst.msk [vmem:[%s2231 + $0xb2] sm:$0xff] %vm331, %v2214
        %2248 = vst.msk [vmem:[%s2231 + $0xc2] sm:$0xff] %vm331, %v2215
        %2249 = vst.msk [vmem:[%s2231 + $0xca] sm:$0xff] %vm331, %v2216
        %2250 = vst.msk [vmem:[%s2231 + $0xda] sm:$0xff] %vm331, %v2217
        %2251 = vst.msk [vmem:[%s2231 + $0xe2] sm:$0xff] %vm331, %v2218
        %2252 = vst.msk [vmem:[%s2231 + $0xf2] sm:$0xff] %vm331, %v2219
        %2253 = vst.msk [vmem:[%s2231 + $0xfa] sm:$0xff] %vm331, %v2220
        %2254 = vst.msk [vmem:[%s2231 + $0x10a] sm:$0xff] %vm331, %v2221
        %2255 = vst.msk [vmem:[%s2231 + $0x112] sm:$0xff] %vm331, %v2222
        %2256 = vst.msk [vmem:[%s2231 + $0x122] sm:$0xff] %vm331, %v2223
        %2257 = vst.msk [vmem:[%s2231 + $0x12a] sm:$0xff] %vm331, %v2224
        %2258 = vst.msk [vmem:[%s2231 + $0x13a] sm:$0xff] %vm331, %v2225
        %2259 = vst.msk [vmem:[%s2231 + $0x142] sm:$0xff] %vm331, %v2226
        %2260 = vst.msk [vmem:[%s2231 + $0x152] sm:$0xff] %vm331, %v2227
        %2261 = vst.msk [vmem:[%s2231 + $0x15a] sm:$0xff] %vm331, %v2228
        %2262 = vst.msk [vmem:[%s2231 + $0x16a] sm:$0xff] %vm331, %v2229
        %2263 = vst.msk [vmem:[%s2231 + $0x172] sm:$0xff] %vm331, %v2230
        %v2264 = vld [vmem:[#allocation3] sm:$0xff]
        %v2265 = vld [vmem:[#allocation3 + $0x8] sm:$0xff]
        %v2266 = vld [vmem:[#allocation3 + $0x10] sm:$0xf]
        %v2267 = vld [vmem:[#allocation3 + $0x18] sm:$0xff]
        %v2268 = vld [vmem:[#allocation3 + $0x20] sm:$0xff]
        %v2269 = vld [vmem:[#allocation3 + $0x28] sm:$0xf]
        %v2270 = vld [vmem:[#allocation3 + $0x30] sm:$0xff]
        %v2271 = vld [vmem:[#allocation3 + $0x38] sm:$0xff]
        %v2272 = vld [vmem:[#allocation3 + $0x40] sm:$0xf]
        %v2273 = vld [vmem:[#allocation3 + $0x48] sm:$0xff]
        %v2274 = vld [vmem:[#allocation3 + $0x50] sm:$0xff]
        %v2275 = vld [vmem:[#allocation3 + $0x58] sm:$0xf]
        %v2276 = vld [vmem:[#allocation3 + $0x60] sm:$0xff]
        %v2277 = vld [vmem:[#allocation3 + $0x68] sm:$0xff]
        %v2278 = vld [vmem:[#allocation3 + $0x70] sm:$0xf]
        %v2279 = vld [vmem:[#allocation3 + $0x78] sm:$0xff]
        %v2280 = vld [vmem:[#allocation3 + $0x80] sm:$0xff]
        %v2281 = vld [vmem:[#allocation3 + $0x88] sm:$0xf]
        %v2282 = vld [vmem:[#allocation3 + $0x90] sm:$0xff]
        %v2283 = vld [vmem:[#allocation3 + $0x98] sm:$0xff]
        %v2284 = vld [vmem:[#allocation3 + $0xa0] sm:$0xf]
        %v2285 = vld [vmem:[#allocation3 + $0xa8] sm:$0xff]
        %v2286 = vld [vmem:[#allocation3 + $0xb0] sm:$0xff]
        %v2287 = vld [vmem:[#allocation3 + $0xb8] sm:$0xf]
        %v2288 = vld [vmem:[#allocation3 + $0xc0] sm:$0xff]
        %v2289 = vld [vmem:[#allocation3 + $0xc8] sm:$0xff]
        %v2290 = vld [vmem:[#allocation3 + $0xd0] sm:$0xf]
        %v2291 = vld [vmem:[#allocation3 + $0xd8] sm:$0xff]
        %v2292 = vld [vmem:[#allocation3 + $0xe0] sm:$0xff]
        %v2293 = vld [vmem:[#allocation3 + $0xe8] sm:$0xf]
        %v2294 = vld [vmem:[#allocation3 + $0xf0] sm:$0xff]
        %v2295 = vld [vmem:[#allocation3 + $0xf8] sm:$0xff]
        %v2296 = vld [vmem:[#allocation3 + $0x100] sm:$0xf]
        %v2297 = vld [vmem:[#allocation3 + $0x108] sm:$0xff]
        %v2298 = vld [vmem:[#allocation3 + $0x110] sm:$0xff]
        %v2299 = vld [vmem:[#allocation3 + $0x118] sm:$0xf]
        %v2300 = vld [vmem:[#allocation3 + $0x120] sm:$0xff]
        %v2301 = vld [vmem:[#allocation3 + $0x128] sm:$0xff]
        %v2302 = vld [vmem:[#allocation3 + $0x130] sm:$0xf]
        %v2303 = vld [vmem:[#allocation3 + $0x138] sm:$0xff]
        %v2304 = vld [vmem:[#allocation3 + $0x140] sm:$0xff]
        %v2305 = vld [vmem:[#allocation3 + $0x148] sm:$0xf]
        %v2306 = vld [vmem:[#allocation3 + $0x150] sm:$0xff]
        %v2307 = vld [vmem:[#allocation3 + $0x158] sm:$0xff]
        %v2308 = vld [vmem:[#allocation3 + $0x160] sm:$0xf]
        %v2309 = vld [vmem:[#allocation3 + $0x168] sm:$0xff]
        %v2310 = vld [vmem:[#allocation3 + $0x170] sm:$0xff]
        %v2311 = vld [vmem:[#allocation3 + $0x178] sm:$0xf]
        %v2312 = vld [vmem:[#allocation3 + $0x180] sm:$0xff]
        %v2313 = vld [vmem:[#allocation3 + $0x188] sm:$0xff]
        %v2314 = vld [vmem:[#allocation3 + $0x190] sm:$0xf]
        %v2315 = vld [vmem:[#allocation3 + $0x198] sm:$0xff]
        %v2316 = vld [vmem:[#allocation3 + $0x1a0] sm:$0xff]
        %v2317 = vld [vmem:[#allocation3 + $0x1a8] sm:$0xf]
        %v2318 = vld [vmem:[#allocation3 + $0x1b0] sm:$0xff]
        %v2319 = vld [vmem:[#allocation3 + $0x1b8] sm:$0xff]
        %v2320 = vld [vmem:[#allocation3 + $0x1c0] sm:$0xf]
        %v2321 = vld [vmem:[#allocation3 + $0x1c8] sm:$0xff]
        %v2322 = vld [vmem:[#allocation3 + $0x1d0] sm:$0xff]
        %v2323 = vld [vmem:[#allocation3 + $0x1d8] sm:$0xf]
        %v2372 = vrot.slane %v2264, 2
        %v2373 = vrot.slane %v2265, 2
        %v2374 = vsel %vm626, %v2372, %v2373
        %v2375 = vrot.slane %v2266, 2
        %v2376 = vsel %vm626, %v2373, %v2375
        %v2377 = vrot.slane %v2267, 2
        %v2378 = vrot.slane %v2268, 2
        %v2379 = vsel %vm626, %v2377, %v2378
        %v2380 = vrot.slane %v2269, 2
        %v2381 = vsel %vm626, %v2378, %v2380
        %v2382 = vrot.slane %v2270, 2
        %v2383 = vrot.slane %v2271, 2
        %v2384 = vsel %vm626, %v2382, %v2383
        %v2385 = vrot.slane %v2272, 2
        %v2386 = vsel %vm626, %v2383, %v2385
        %v2387 = vrot.slane %v2273, 2
        %v2388 = vrot.slane %v2274, 2
        %v2389 = vsel %vm626, %v2387, %v2388
        %v2390 = vrot.slane %v2275, 2
        %v2391 = vsel %vm626, %v2388, %v2390
        %v2392 = vrot.slane %v2276, 2
        %v2393 = vrot.slane %v2277, 2
        %v2394 = vsel %vm626, %v2392, %v2393
        %v2395 = vrot.slane %v2278, 2
        %v2396 = vsel %vm626, %v2393, %v2395
        %v2397 = vrot.slane %v2279, 2
        %v2398 = vrot.slane %v2280, 2
        %v2399 = vsel %vm626, %v2397, %v2398
        %v2400 = vrot.slane %v2281, 2
        %v2401 = vsel %vm626, %v2398, %v2400
        %v2402 = vrot.slane %v2282, 2
        %v2403 = vrot.slane %v2283, 2
        %v2404 = vsel %vm626, %v2402, %v2403
        %v2405 = vrot.slane %v2284, 2
        %v2406 = vsel %vm626, %v2403, %v2405
        %v2407 = vrot.slane %v2285, 2
        %v2408 = vrot.slane %v2286, 2
        %v2409 = vsel %vm626, %v2407, %v2408
        %v2410 = vrot.slane %v2287, 2
        %v2411 = vsel %vm626, %v2408, %v2410
        %v2412 = vrot.slane %v2288, 2
        %v2413 = vrot.slane %v2289, 2
        %v2414 = vsel %vm626, %v2412, %v2413
        %v2415 = vrot.slane %v2290, 2
        %v2416 = vsel %vm626, %v2413, %v2415
        %v2417 = vrot.slane %v2291, 2
        %v2418 = vrot.slane %v2292, 2
        %v2419 = vsel %vm626, %v2417, %v2418
        %v2420 = vrot.slane %v2293, 2
        %v2421 = vsel %vm626, %v2418, %v2420
        %v2422 = vrot.slane %v2294, 2
        %v2423 = vrot.slane %v2295, 2
        %v2424 = vsel %vm626, %v2422, %v2423
        %v2425 = vrot.slane %v2296, 2
        %v2426 = vsel %vm626, %v2423, %v2425
        %v2427 = vrot.slane %v2297, 2
        %v2428 = vrot.slane %v2298, 2
        %v2429 = vsel %vm626, %v2427, %v2428
        %v2430 = vrot.slane %v2299, 2
        %v2431 = vsel %vm626, %v2428, %v2430
        %v2432 = vrot.slane %v2300, 2
        %v2433 = vrot.slane %v2301, 2
        %v2434 = vsel %vm626, %v2432, %v2433
        %v2435 = vrot.slane %v2302, 2
        %v2436 = vsel %vm626, %v2433, %v2435
        %v2437 = vrot.slane %v2303, 2
        %v2438 = vrot.slane %v2304, 2
        %v2439 = vsel %vm626, %v2437, %v2438
        %v2440 = vrot.slane %v2305, 2
        %v2441 = vsel %vm626, %v2438, %v2440
        %v2442 = vrot.slane %v2306, 2
        %v2443 = vrot.slane %v2307, 2
        %v2444 = vsel %vm626, %v2442, %v2443
        %v2445 = vrot.slane %v2308, 2
        %v2446 = vsel %vm626, %v2443, %v2445
        %v2447 = vrot.slane %v2309, 2
        %v2448 = vrot.slane %v2310, 2
        %v2449 = vsel %vm626, %v2447, %v2448
        %v2450 = vrot.slane %v2311, 2
        %v2451 = vsel %vm626, %v2448, %v2450
        %v2452 = vrot.slane %v2264, 4
        %v2453 = vrot.slane %v2265, 4
        %v2454 = vsel %vm707, %v2452, %v2453
        %v2455 = vrot.slane %v2266, 4
        %v2456 = vsel %vm707, %v2453, %v2455
        %v2457 = vrot.slane %v2267, 4
        %v2458 = vrot.slane %v2268, 4
        %v2459 = vsel %vm707, %v2457, %v2458
        %v2460 = vrot.slane %v2269, 4
        %v2461 = vsel %vm707, %v2458, %v2460
        %v2462 = vrot.slane %v2270, 4
        %v2463 = vrot.slane %v2271, 4
        %v2464 = vsel %vm707, %v2462, %v2463
        %v2465 = vrot.slane %v2272, 4
        %v2466 = vsel %vm707, %v2463, %v2465
        %v2467 = vrot.slane %v2273, 4
        %v2468 = vrot.slane %v2274, 4
        %v2469 = vsel %vm707, %v2467, %v2468
        %v2470 = vrot.slane %v2275, 4
        %v2471 = vsel %vm707, %v2468, %v2470
        %v2472 = vrot.slane %v2276, 4
        %v2473 = vrot.slane %v2277, 4
        %v2474 = vsel %vm707, %v2472, %v2473
        %v2475 = vrot.slane %v2278, 4
        %v2476 = vsel %vm707, %v2473, %v2475
        %v2477 = vrot.slane %v2279, 4
        %v2478 = vrot.slane %v2280, 4
        %v2479 = vsel %vm707, %v2477, %v2478
        %v2480 = vrot.slane %v2281, 4
        %v2481 = vsel %vm707, %v2478, %v2480
        %v2482 = vrot.slane %v2282, 4
        %v2483 = vrot.slane %v2283, 4
        %v2484 = vsel %vm707, %v2482, %v2483
        %v2485 = vrot.slane %v2284, 4
        %v2486 = vsel %vm707, %v2483, %v2485
        %v2487 = vrot.slane %v2285, 4
        %v2488 = vrot.slane %v2286, 4
        %v2489 = vsel %vm707, %v2487, %v2488
        %v2490 = vrot.slane %v2287, 4
        %v2491 = vsel %vm707, %v2488, %v2490
        %v2492 = vrot.slane %v2288, 4
        %v2493 = vrot.slane %v2289, 4
        %v2494 = vsel %vm707, %v2492, %v2493
        %v2495 = vrot.slane %v2290, 4
        %v2496 = vsel %vm707, %v2493, %v2495
        %v2497 = vrot.slane %v2291, 4
        %v2498 = vrot.slane %v2292, 4
        %v2499 = vsel %vm707, %v2497, %v2498
        %v2500 = vrot.slane %v2293, 4
        %v2501 = vsel %vm707, %v2498, %v2500
        %v2502 = vrot.slane %v2294, 4
        %v2503 = vrot.slane %v2295, 4
        %v2504 = vsel %vm707, %v2502, %v2503
        %v2505 = vrot.slane %v2296, 4
        %v2506 = vsel %vm707, %v2503, %v2505
        %v2507 = vrot.slane %v2297, 4
        %v2508 = vrot.slane %v2298, 4
        %v2509 = vsel %vm707, %v2507, %v2508
        %v2510 = vrot.slane %v2299, 4
        %v2511 = vsel %vm707, %v2508, %v2510
        %v2512 = vrot.slane %v2300, 4
        %v2513 = vrot.slane %v2301, 4
        %v2514 = vsel %vm707, %v2512, %v2513
        %v2515 = vrot.slane %v2302, 4
        %v2516 = vsel %vm707, %v2513, %v2515
        %v2517 = vrot.slane %v2303, 4
        %v2518 = vrot.slane %v2304, 4
        %v2519 = vsel %vm707, %v2517, %v2518
        %v2520 = vrot.slane %v2305, 4
        %v2521 = vsel %vm707, %v2518, %v2520
        %v2522 = vrot.slane %v2306, 4
        %v2523 = vrot.slane %v2307, 4
        %v2524 = vsel %vm707, %v2522, %v2523
        %v2525 = vrot.slane %v2308, 4
        %v2526 = vsel %vm707, %v2523, %v2525
        %v2527 = vrot.slane %v2309, 4
        %v2528 = vrot.slane %v2310, 4
        %v2529 = vsel %vm707, %v2527, %v2528
        %v2530 = vrot.slane %v2311, 4
        %v2531 = vsel %vm707, %v2528, %v2530
        %v2538 = vrot.slane %v2312, 2
        %v2539 = vrot.slane %v2313, 2
        %v2540 = vsel %vm626, %v2538, %v2539
        %v2541 = vrot.slane %v2314, 2
        %v2542 = vsel %vm626, %v2539, %v2541
        %v2543 = vrot.slane %v2315, 2
        %v2544 = vrot.slane %v2316, 2
        %v2545 = vsel %vm626, %v2543, %v2544
        %v2546 = vrot.slane %v2317, 2
        %v2547 = vsel %vm626, %v2544, %v2546
        %v2580 = vrot.slane %v2312, 4
        %v2581 = vrot.slane %v2313, 4
        %v2582 = vsel %vm707, %v2580, %v2581
        %v2583 = vrot.slane %v2314, 4
        %v2584 = vsel %vm707, %v2581, %v2583
        %v2585 = vrot.slane %v2315, 4
        %v2586 = vrot.slane %v2316, 4
        %v2587 = vsel %vm707, %v2585, %v2586
        %v2588 = vrot.slane %v2317, 4
        %v2589 = vsel %vm707, %v2586, %v2588
        %v2596 = vrot.slane %v2318, 2
        %v2597 = vrot.slane %v2319, 2
        %v2598 = vsel %vm626, %v2596, %v2597
        %v2599 = vrot.slane %v2320, 2
        %v2600 = vsel %vm626, %v2597, %v2599
        %v2601 = vrot.slane %v2321, 2
        %v2602 = vrot.slane %v2322, 2
        %v2603 = vsel %vm626, %v2601, %v2602
        %v2604 = vrot.slane %v2323, 2
        %v2605 = vsel %vm626, %v2602, %v2604
        %v2606 = vrot.slane %v2318, 4
        %v2607 = vrot.slane %v2319, 4
        %v2608 = vsel %vm707, %v2606, %v2607
        %v2609 = vrot.slane %v2320, 4
        %v2610 = vsel %vm707, %v2607, %v2609
        %v2611 = vrot.slane %v2321, 4
        %v2612 = vrot.slane %v2322, 4
        %v2613 = vsel %vm707, %v2611, %v2612
        %v2614 = vrot.slane %v2323, 4
        %v2615 = vsel %vm707, %v2612, %v2614
        %2616 = vrot.lane.b32.xlu0 %v2374, 32
        %v2617 = vpop.permute.xlu0 %2616
        %2618 = vrot.lane.b32.xlu0 %v2376, 32
        %v2619 = vpop.permute.xlu0 %2618
        %2620 = vrot.lane.b32.xlu0 %v2379, 32
        %v2621 = vpop.permute.xlu0 %2620
        %2622 = vrot.lane.b32.xlu0 %v2381, 32
        %v2623 = vpop.permute.xlu0 %2622
        %2624 = vrot.lane.b32.xlu0 %v2384, 32
        %v2625 = vpop.permute.xlu0 %2624
        %2626 = vrot.lane.b32.xlu0 %v2386, 32
        %v2627 = vpop.permute.xlu0 %2626
        %2628 = vrot.lane.b32.xlu0 %v2389, 32
        %v2629 = vpop.permute.xlu0 %2628
        %2630 = vrot.lane.b32.xlu0 %v2391, 32
        %v2631 = vpop.permute.xlu0 %2630
        %2632 = vrot.lane.b32.xlu0 %v2394, 32
        %v2633 = vpop.permute.xlu0 %2632
        %2634 = vrot.lane.b32.xlu0 %v2396, 32
        %v2635 = vpop.permute.xlu0 %2634
        %2636 = vrot.lane.b32.xlu0 %v2399, 32
        %v2637 = vpop.permute.xlu0 %2636
        %2638 = vrot.lane.b32.xlu0 %v2401, 32
        %v2639 = vpop.permute.xlu0 %2638
        %2640 = vrot.lane.b32.xlu0 %v2404, 32
        %v2641 = vpop.permute.xlu0 %2640
        %2642 = vrot.lane.b32.xlu0 %v2406, 32
        %v2643 = vpop.permute.xlu0 %2642
        %2644 = vrot.lane.b32.xlu0 %v2409, 32
        %v2645 = vpop.permute.xlu0 %2644
        %2646 = vrot.lane.b32.xlu0 %v2411, 32
        %v2647 = vpop.permute.xlu0 %2646
        %2648 = vrot.lane.b32.xlu0 %v2414, 32
        %v2649 = vpop.permute.xlu0 %2648
        %2650 = vrot.lane.b32.xlu0 %v2416, 32
        %v2651 = vpop.permute.xlu0 %2650
        %2652 = vrot.lane.b32.xlu0 %v2419, 32
        %v2653 = vpop.permute.xlu0 %2652
        %2654 = vrot.lane.b32.xlu0 %v2421, 32
        %v2655 = vpop.permute.xlu0 %2654
        %2656 = vrot.lane.b32.xlu0 %v2424, 32
        %v2657 = vpop.permute.xlu0 %2656
        %2658 = vrot.lane.b32.xlu0 %v2426, 32
        %v2659 = vpop.permute.xlu0 %2658
        %2660 = vrot.lane.b32.xlu0 %v2429, 32
        %v2661 = vpop.permute.xlu0 %2660
        %2662 = vrot.lane.b32.xlu0 %v2431, 32
        %v2663 = vpop.permute.xlu0 %2662
        %2664 = vrot.lane.b32.xlu0 %v2434, 32
        %v2665 = vpop.permute.xlu0 %2664
        %2666 = vrot.lane.b32.xlu0 %v2436, 32
        %v2667 = vpop.permute.xlu0 %2666
        %2668 = vrot.lane.b32.xlu0 %v2439, 32
        %v2669 = vpop.permute.xlu0 %2668
        %2670 = vrot.lane.b32.xlu0 %v2441, 32
        %v2671 = vpop.permute.xlu0 %2670
        %2672 = vrot.lane.b32.xlu0 %v2444, 32
        %v2673 = vpop.permute.xlu0 %2672
        %2674 = vrot.lane.b32.xlu0 %v2446, 32
        %v2675 = vpop.permute.xlu0 %2674
        %2676 = vrot.lane.b32.xlu0 %v2449, 32
        %v2677 = vpop.permute.xlu0 %2676
        %2678 = vrot.lane.b32.xlu0 %v2451, 32
        %v2679 = vpop.permute.xlu0 %2678
        %2712 = vrot.lane.b32.xlu0 %v2454, 64
        %v2713 = vpop.permute.xlu0 %2712
        %2714 = vrot.lane.b32.xlu0 %v2456, 64
        %v2715 = vpop.permute.xlu0 %2714
        %2716 = vrot.lane.b32.xlu0 %v2459, 64
        %v2717 = vpop.permute.xlu0 %2716
        %2718 = vrot.lane.b32.xlu0 %v2461, 64
        %v2719 = vpop.permute.xlu0 %2718
        %2720 = vrot.lane.b32.xlu0 %v2464, 64
        %v2721 = vpop.permute.xlu0 %2720
        %2722 = vrot.lane.b32.xlu0 %v2466, 64
        %v2723 = vpop.permute.xlu0 %2722
        %2724 = vrot.lane.b32.xlu0 %v2469, 64
        %v2725 = vpop.permute.xlu0 %2724
        %2726 = vrot.lane.b32.xlu0 %v2471, 64
        %v2727 = vpop.permute.xlu0 %2726
        %2728 = vrot.lane.b32.xlu0 %v2474, 64
        %v2729 = vpop.permute.xlu0 %2728
        %2730 = vrot.lane.b32.xlu0 %v2476, 64
        %v2731 = vpop.permute.xlu0 %2730
        %2732 = vrot.lane.b32.xlu0 %v2479, 64
        %v2733 = vpop.permute.xlu0 %2732
        %2734 = vrot.lane.b32.xlu0 %v2481, 64
        %v2735 = vpop.permute.xlu0 %2734
        %2736 = vrot.lane.b32.xlu0 %v2484, 64
        %v2737 = vpop.permute.xlu0 %2736
        %2738 = vrot.lane.b32.xlu0 %v2486, 64
        %v2739 = vpop.permute.xlu0 %2738
        %2740 = vrot.lane.b32.xlu0 %v2489, 64
        %v2741 = vpop.permute.xlu0 %2740
        %2742 = vrot.lane.b32.xlu0 %v2491, 64
        %v2743 = vpop.permute.xlu0 %2742
        %2744 = vrot.lane.b32.xlu0 %v2494, 64
        %v2745 = vpop.permute.xlu0 %2744
        %2746 = vrot.lane.b32.xlu0 %v2496, 64
        %v2747 = vpop.permute.xlu0 %2746
        %2748 = vrot.lane.b32.xlu0 %v2499, 64
        %v2749 = vpop.permute.xlu0 %2748
        %2750 = vrot.lane.b32.xlu0 %v2501, 64
        %v2751 = vpop.permute.xlu0 %2750
        %2752 = vrot.lane.b32.xlu0 %v2504, 64
        %v2753 = vpop.permute.xlu0 %2752
        %2754 = vrot.lane.b32.xlu0 %v2506, 64
        %v2755 = vpop.permute.xlu0 %2754
        %2756 = vrot.lane.b32.xlu0 %v2509, 64
        %v2757 = vpop.permute.xlu0 %2756
        %2758 = vrot.lane.b32.xlu0 %v2511, 64
        %v2759 = vpop.permute.xlu0 %2758
        %2760 = vrot.lane.b32.xlu0 %v2514, 64
        %v2761 = vpop.permute.xlu0 %2760
        %2762 = vrot.lane.b32.xlu0 %v2516, 64
        %v2763 = vpop.permute.xlu0 %2762
        %2764 = vrot.lane.b32.xlu0 %v2519, 64
        %v2765 = vpop.permute.xlu0 %2764
        %2766 = vrot.lane.b32.xlu0 %v2521, 64
        %v2767 = vpop.permute.xlu0 %2766
        %2768 = vrot.lane.b32.xlu0 %v2524, 64
        %v2769 = vpop.permute.xlu0 %2768
        %2770 = vrot.lane.b32.xlu0 %v2526, 64
        %v2771 = vpop.permute.xlu0 %2770
        %2772 = vrot.lane.b32.xlu0 %v2529, 64
        %v2773 = vpop.permute.xlu0 %2772
        %2774 = vrot.lane.b32.xlu0 %v2531, 64
        %v2775 = vpop.permute.xlu0 %2774
        %2808 = vrot.lane.b32.xlu0 %v2270, 96
        %v2809 = vpop.permute.xlu0 %2808
        %2810 = vrot.lane.b32.xlu0 %v2271, 96
        %v2811 = vpop.permute.xlu0 %2810
        %2812 = vrot.lane.b32.xlu0 %v2273, 96
        %v2813 = vpop.permute.xlu0 %2812
        %2814 = vrot.lane.b32.xlu0 %v2274, 96
        %v2815 = vpop.permute.xlu0 %2814
        %2816 = vrot.lane.b32.xlu0 %v2276, 96
        %v2817 = vpop.permute.xlu0 %2816
        %2818 = vrot.lane.b32.xlu0 %v2277, 96
        %v2819 = vpop.permute.xlu0 %2818
        %2820 = vrot.lane.b32.xlu0 %v2279, 96
        %v2821 = vpop.permute.xlu0 %2820
        %2822 = vrot.lane.b32.xlu0 %v2280, 96
        %v2823 = vpop.permute.xlu0 %2822
        %2824 = vrot.lane.b32.xlu0 %v2282, 96
        %v2825 = vpop.permute.xlu0 %2824
        %2826 = vrot.lane.b32.xlu0 %v2283, 96
        %v2827 = vpop.permute.xlu0 %2826
        %2828 = vrot.lane.b32.xlu0 %v2285, 96
        %v2829 = vpop.permute.xlu0 %2828
        %2830 = vrot.lane.b32.xlu0 %v2286, 96
        %v2831 = vpop.permute.xlu0 %2830
        %2832 = vrot.lane.b32.xlu0 %v2288, 96
        %v2833 = vpop.permute.xlu0 %2832
        %2834 = vrot.lane.b32.xlu0 %v2289, 96
        %v2835 = vpop.permute.xlu0 %2834
        %2836 = vrot.lane.b32.xlu0 %v2291, 96
        %v2837 = vpop.permute.xlu0 %2836
        %2838 = vrot.lane.b32.xlu0 %v2292, 96
        %v2839 = vpop.permute.xlu0 %2838
        %2840 = vrot.lane.b32.xlu0 %v2294, 96
        %v2841 = vpop.permute.xlu0 %2840
        %2842 = vrot.lane.b32.xlu0 %v2295, 96
        %v2843 = vpop.permute.xlu0 %2842
        %2844 = vrot.lane.b32.xlu0 %v2297, 96
        %v2845 = vpop.permute.xlu0 %2844
        %2846 = vrot.lane.b32.xlu0 %v2298, 96
        %v2847 = vpop.permute.xlu0 %2846
        %2848 = vrot.lane.b32.xlu0 %v2300, 96
        %v2849 = vpop.permute.xlu0 %2848
        %2850 = vrot.lane.b32.xlu0 %v2301, 96
        %v2851 = vpop.permute.xlu0 %2850
        %2852 = vrot.lane.b32.xlu0 %v2303, 96
        %v2853 = vpop.permute.xlu0 %2852
        %2854 = vrot.lane.b32.xlu0 %v2304, 96
        %v2855 = vpop.permute.xlu0 %2854
        %2856 = vrot.lane.b32.xlu0 %v2306, 96
        %v2857 = vpop.permute.xlu0 %2856
        %2858 = vrot.lane.b32.xlu0 %v2307, 96
        %v2859 = vpop.permute.xlu0 %2858
        %2860 = vrot.lane.b32.xlu0 %v2309, 96
        %v2861 = vpop.permute.xlu0 %2860
        %2862 = vrot.lane.b32.xlu0 %v2310, 96
        %v2863 = vpop.permute.xlu0 %2862
        %2864 = vrot.lane.b32.xlu0 %v2312, 96
        %v2865 = vpop.permute.xlu0 %2864
        %2866 = vrot.lane.b32.xlu0 %v2313, 96
        %v2867 = vpop.permute.xlu0 %2866
        %2868 = vrot.lane.b32.xlu0 %v2315, 96
        %v2869 = vpop.permute.xlu0 %2868
        %2870 = vrot.lane.b32.xlu0 %v2316, 96
        %v2871 = vpop.permute.xlu0 %2870
        %2904 = vrot.lane.b32.xlu0 %v2464, 32
        %v2905 = vpop.permute.xlu0 %2904
        %2906 = vrot.lane.b32.xlu0 %v2466, 32
        %v2907 = vpop.permute.xlu0 %2906
        %2908 = vrot.lane.b32.xlu0 %v2469, 32
        %v2909 = vpop.permute.xlu0 %2908
        %2910 = vrot.lane.b32.xlu0 %v2471, 32
        %v2911 = vpop.permute.xlu0 %2910
        %2912 = vrot.lane.b32.xlu0 %v2474, 32
        %v2913 = vpop.permute.xlu0 %2912
        %2914 = vrot.lane.b32.xlu0 %v2476, 32
        %v2915 = vpop.permute.xlu0 %2914
        %2916 = vrot.lane.b32.xlu0 %v2479, 32
        %v2917 = vpop.permute.xlu0 %2916
        %2918 = vrot.lane.b32.xlu0 %v2481, 32
        %v2919 = vpop.permute.xlu0 %2918
        %2920 = vrot.lane.b32.xlu0 %v2484, 32
        %v2921 = vpop.permute.xlu0 %2920
        %2922 = vrot.lane.b32.xlu0 %v2486, 32
        %v2923 = vpop.permute.xlu0 %2922
        %2924 = vrot.lane.b32.xlu0 %v2489, 32
        %v2925 = vpop.permute.xlu0 %2924
        %2926 = vrot.lane.b32.xlu0 %v2491, 32
        %v2927 = vpop.permute.xlu0 %2926
        %2928 = vrot.lane.b32.xlu0 %v2494, 32
        %v2929 = vpop.permute.xlu0 %2928
        %2930 = vrot.lane.b32.xlu0 %v2496, 32
        %v2931 = vpop.permute.xlu0 %2930
        %2932 = vrot.lane.b32.xlu0 %v2499, 32
        %v2933 = vpop.permute.xlu0 %2932
        %2934 = vrot.lane.b32.xlu0 %v2501, 32
        %v2935 = vpop.permute.xlu0 %2934
        %2936 = vrot.lane.b32.xlu0 %v2504, 32
        %v2937 = vpop.permute.xlu0 %2936
        %2938 = vrot.lane.b32.xlu0 %v2506, 32
        %v2939 = vpop.permute.xlu0 %2938
        %2940 = vrot.lane.b32.xlu0 %v2509, 32
        %v2941 = vpop.permute.xlu0 %2940
        %2942 = vrot.lane.b32.xlu0 %v2511, 32
        %v2943 = vpop.permute.xlu0 %2942
        %2944 = vrot.lane.b32.xlu0 %v2514, 32
        %v2945 = vpop.permute.xlu0 %2944
        %2946 = vrot.lane.b32.xlu0 %v2516, 32
        %v2947 = vpop.permute.xlu0 %2946
        %2948 = vrot.lane.b32.xlu0 %v2519, 32
        %v2949 = vpop.permute.xlu0 %2948
        %2950 = vrot.lane.b32.xlu0 %v2521, 32
        %v2951 = vpop.permute.xlu0 %2950
        %2952 = vrot.lane.b32.xlu0 %v2524, 32
        %v2953 = vpop.permute.xlu0 %2952
        %2954 = vrot.lane.b32.xlu0 %v2526, 32
        %v2955 = vpop.permute.xlu0 %2954
        %2956 = vrot.lane.b32.xlu0 %v2529, 32
        %v2957 = vpop.permute.xlu0 %2956
        %2958 = vrot.lane.b32.xlu0 %v2531, 32
        %v2959 = vpop.permute.xlu0 %2958
        %2960 = vrot.lane.b32.xlu0 %v2582, 32
        %v2961 = vpop.permute.xlu0 %2960
        %2962 = vrot.lane.b32.xlu0 %v2584, 32
        %v2963 = vpop.permute.xlu0 %2962
        %2964 = vrot.lane.b32.xlu0 %v2587, 32
        %v2965 = vpop.permute.xlu0 %2964
        %2966 = vrot.lane.b32.xlu0 %v2589, 32
        %v2967 = vpop.permute.xlu0 %2966
        %3000 = vrot.lane.b32.xlu0 %v2276, 64
        %v3001 = vpop.permute.xlu0 %3000
        %3002 = vrot.lane.b32.xlu0 %v2277, 64
        %v3003 = vpop.permute.xlu0 %3002
        %3004 = vrot.lane.b32.xlu0 %v2279, 64
        %v3005 = vpop.permute.xlu0 %3004
        %3006 = vrot.lane.b32.xlu0 %v2280, 64
        %v3007 = vpop.permute.xlu0 %3006
        %3008 = vrot.lane.b32.xlu0 %v2282, 64
        %v3009 = vpop.permute.xlu0 %3008
        %3010 = vrot.lane.b32.xlu0 %v2283, 64
        %v3011 = vpop.permute.xlu0 %3010
        %3012 = vrot.lane.b32.xlu0 %v2285, 64
        %v3013 = vpop.permute.xlu0 %3012
        %3014 = vrot.lane.b32.xlu0 %v2286, 64
        %v3015 = vpop.permute.xlu0 %3014
        %3016 = vrot.lane.b32.xlu0 %v2288, 64
        %v3017 = vpop.permute.xlu0 %3016
        %3018 = vrot.lane.b32.xlu0 %v2289, 64
        %v3019 = vpop.permute.xlu0 %3018
        %3020 = vrot.lane.b32.xlu0 %v2291, 64
        %v3021 = vpop.permute.xlu0 %3020
        %3022 = vrot.lane.b32.xlu0 %v2292, 64
        %v3023 = vpop.permute.xlu0 %3022
        %3024 = vrot.lane.b32.xlu0 %v2294, 64
        %v3025 = vpop.permute.xlu0 %3024
        %3026 = vrot.lane.b32.xlu0 %v2295, 64
        %v3027 = vpop.permute.xlu0 %3026
        %3028 = vrot.lane.b32.xlu0 %v2297, 64
        %v3029 = vpop.permute.xlu0 %3028
        %3030 = vrot.lane.b32.xlu0 %v2298, 64
        %v3031 = vpop.permute.xlu0 %3030
        %3032 = vrot.lane.b32.xlu0 %v2300, 64
        %v3033 = vpop.permute.xlu0 %3032
        %3034 = vrot.lane.b32.xlu0 %v2301, 64
        %v3035 = vpop.permute.xlu0 %3034
        %3036 = vrot.lane.b32.xlu0 %v2303, 64
        %v3037 = vpop.permute.xlu0 %3036
        %3038 = vrot.lane.b32.xlu0 %v2304, 64
        %v3039 = vpop.permute.xlu0 %3038
        %3040 = vrot.lane.b32.xlu0 %v2306, 64
        %v3041 = vpop.permute.xlu0 %3040
        %3042 = vrot.lane.b32.xlu0 %v2307, 64
        %v3043 = vpop.permute.xlu0 %3042
        %3044 = vrot.lane.b32.xlu0 %v2309, 64
        %v3045 = vpop.permute.xlu0 %3044
        %3046 = vrot.lane.b32.xlu0 %v2310, 64
        %v3047 = vpop.permute.xlu0 %3046
        %3048 = vrot.lane.b32.xlu0 %v2312, 64
        %v3049 = vpop.permute.xlu0 %3048
        %3050 = vrot.lane.b32.xlu0 %v2313, 64
        %v3051 = vpop.permute.xlu0 %3050
        %3052 = vrot.lane.b32.xlu0 %v2315, 64
        %v3053 = vpop.permute.xlu0 %3052
        %3054 = vrot.lane.b32.xlu0 %v2316, 64
        %v3055 = vpop.permute.xlu0 %3054
        %3056 = vrot.lane.b32.xlu0 %v2318, 64
        %v3057 = vpop.permute.xlu0 %3056
        %3058 = vrot.lane.b32.xlu0 %v2319, 64
        %v3059 = vpop.permute.xlu0 %3058
        %3060 = vrot.lane.b32.xlu0 %v2321, 64
        %v3061 = vpop.permute.xlu0 %3060
        %3062 = vrot.lane.b32.xlu0 %v2322, 64
        %v3063 = vpop.permute.xlu0 %3062
        %3096 = vrot.lane.b32.xlu0 %v2394, 96
        %v3097 = vpop.permute.xlu0 %3096
        %3098 = vrot.lane.b32.xlu0 %v2396, 96
        %v3099 = vpop.permute.xlu0 %3098
        %3100 = vrot.lane.b32.xlu0 %v2399, 96
        %v3101 = vpop.permute.xlu0 %3100
        %3102 = vrot.lane.b32.xlu0 %v2401, 96
        %v3103 = vpop.permute.xlu0 %3102
        %3104 = vrot.lane.b32.xlu0 %v2404, 96
        %v3105 = vpop.permute.xlu0 %3104
        %3106 = vrot.lane.b32.xlu0 %v2406, 96
        %v3107 = vpop.permute.xlu0 %3106
        %3108 = vrot.lane.b32.xlu0 %v2409, 96
        %v3109 = vpop.permute.xlu0 %3108
        %3110 = vrot.lane.b32.xlu0 %v2411, 96
        %v3111 = vpop.permute.xlu0 %3110
        %3112 = vrot.lane.b32.xlu0 %v2414, 96
        %v3113 = vpop.permute.xlu0 %3112
        %3114 = vrot.lane.b32.xlu0 %v2416, 96
        %v3115 = vpop.permute.xlu0 %3114
        %3116 = vrot.lane.b32.xlu0 %v2419, 96
        %v3117 = vpop.permute.xlu0 %3116
        %3118 = vrot.lane.b32.xlu0 %v2421, 96
        %v3119 = vpop.permute.xlu0 %3118
        %3120 = vrot.lane.b32.xlu0 %v2424, 96
        %v3121 = vpop.permute.xlu0 %3120
        %3122 = vrot.lane.b32.xlu0 %v2426, 96
        %v3123 = vpop.permute.xlu0 %3122
        %3124 = vrot.lane.b32.xlu0 %v2429, 96
        %v3125 = vpop.permute.xlu0 %3124
        %3126 = vrot.lane.b32.xlu0 %v2431, 96
        %v3127 = vpop.permute.xlu0 %3126
        %3128 = vrot.lane.b32.xlu0 %v2434, 96
        %v3129 = vpop.permute.xlu0 %3128
        %3130 = vrot.lane.b32.xlu0 %v2436, 96
        %v3131 = vpop.permute.xlu0 %3130
        %3132 = vrot.lane.b32.xlu0 %v2439, 96
        %v3133 = vpop.permute.xlu0 %3132
        %3134 = vrot.lane.b32.xlu0 %v2441, 96
        %v3135 = vpop.permute.xlu0 %3134
        %3136 = vrot.lane.b32.xlu0 %v2444, 96
        %v3137 = vpop.permute.xlu0 %3136
        %3138 = vrot.lane.b32.xlu0 %v2446, 96
        %v3139 = vpop.permute.xlu0 %3138
        %3140 = vrot.lane.b32.xlu0 %v2449, 96
        %v3141 = vpop.permute.xlu0 %3140
        %3142 = vrot.lane.b32.xlu0 %v2451, 96
        %v3143 = vpop.permute.xlu0 %3142
        %3144 = vrot.lane.b32.xlu0 %v2540, 96
        %v3145 = vpop.permute.xlu0 %3144
        %3146 = vrot.lane.b32.xlu0 %v2542, 96
        %v3147 = vpop.permute.xlu0 %3146
        %3148 = vrot.lane.b32.xlu0 %v2545, 96
        %v3149 = vpop.permute.xlu0 %3148
        %3150 = vrot.lane.b32.xlu0 %v2547, 96
        %v3151 = vpop.permute.xlu0 %3150
        %3152 = vrot.lane.b32.xlu0 %v2598, 96
        %v3153 = vpop.permute.xlu0 %3152
        %3154 = vrot.lane.b32.xlu0 %v2600, 96
        %v3155 = vpop.permute.xlu0 %3154
        %3156 = vrot.lane.b32.xlu0 %v2603, 96
        %v3157 = vpop.permute.xlu0 %3156
        %3158 = vrot.lane.b32.xlu0 %v2605, 96
        %v3159 = vpop.permute.xlu0 %3158
        %v3192 = vsel %vm331, %v2264, %v2617
        %v3193 = vsel %vm331, %v2265, %v2619
        %v3194 = vsel %vm331, %v2267, %v2621
        %v3195 = vsel %vm331, %v2268, %v2623
        %v3196 = vsel %vm331, %v2270, %v2625
        %v3197 = vsel %vm331, %v2271, %v2627
        %v3198 = vsel %vm331, %v2273, %v2629
        %v3199 = vsel %vm331, %v2274, %v2631
        %v3200 = vsel %vm331, %v2276, %v2633
        %v3201 = vsel %vm331, %v2277, %v2635
        %v3202 = vsel %vm331, %v2279, %v2637
        %v3203 = vsel %vm331, %v2280, %v2639
        %v3204 = vsel %vm331, %v2282, %v2641
        %v3205 = vsel %vm331, %v2283, %v2643
        %v3206 = vsel %vm331, %v2285, %v2645
        %v3207 = vsel %vm331, %v2286, %v2647
        %v3208 = vsel %vm331, %v2288, %v2649
        %v3209 = vsel %vm331, %v2289, %v2651
        %v3210 = vsel %vm331, %v2291, %v2653
        %v3211 = vsel %vm331, %v2292, %v2655
        %v3212 = vsel %vm331, %v2294, %v2657
        %v3213 = vsel %vm331, %v2295, %v2659
        %v3214 = vsel %vm331, %v2297, %v2661
        %v3215 = vsel %vm331, %v2298, %v2663
        %v3216 = vsel %vm331, %v2300, %v2665
        %v3217 = vsel %vm331, %v2301, %v2667
        %v3218 = vsel %vm331, %v2303, %v2669
        %v3219 = vsel %vm331, %v2304, %v2671
        %v3220 = vsel %vm331, %v2306, %v2673
        %v3221 = vsel %vm331, %v2307, %v2675
        %v3222 = vsel %vm331, %v2309, %v2677
        %v3223 = vsel %vm331, %v2310, %v2679
        %v3224 = vsel %vm1480, %v3192, %v2713
        %v3225 = vsel %vm1480, %v3193, %v2715
        %v3226 = vsel %vm1480, %v3194, %v2717
        %v3227 = vsel %vm1480, %v3195, %v2719
        %v3228 = vsel %vm1480, %v3196, %v2721
        %v3229 = vsel %vm1480, %v3197, %v2723
        %v3230 = vsel %vm1480, %v3198, %v2725
        %v3231 = vsel %vm1480, %v3199, %v2727
        %v3232 = vsel %vm1480, %v3200, %v2729
        %v3233 = vsel %vm1480, %v3201, %v2731
        %v3234 = vsel %vm1480, %v3202, %v2733
        %v3235 = vsel %vm1480, %v3203, %v2735
        %v3236 = vsel %vm1480, %v3204, %v2737
        %v3237 = vsel %vm1480, %v3205, %v2739
        %v3238 = vsel %vm1480, %v3206, %v2741
        %v3239 = vsel %vm1480, %v3207, %v2743
        %v3240 = vsel %vm1480, %v3208, %v2745
        %v3241 = vsel %vm1480, %v3209, %v2747
        %v3242 = vsel %vm1480, %v3210, %v2749
        %v3243 = vsel %vm1480, %v3211, %v2751
        %v3244 = vsel %vm1480, %v3212, %v2753
        %v3245 = vsel %vm1480, %v3213, %v2755
        %v3246 = vsel %vm1480, %v3214, %v2757
        %v3247 = vsel %vm1480, %v3215, %v2759
        %v3248 = vsel %vm1480, %v3216, %v2761
        %v3249 = vsel %vm1480, %v3217, %v2763
        %v3250 = vsel %vm1480, %v3218, %v2765
        %v3251 = vsel %vm1480, %v3219, %v2767
        %v3252 = vsel %vm1480, %v3220, %v2769
        %v3253 = vsel %vm1480, %v3221, %v2771
        %v3254 = vsel %vm1480, %v3222, %v2773
        %v3255 = vsel %vm1480, %v3223, %v2775
        %v3256 = vsel %vm1513, %v3224, %v2809
        %v3257 = vsel %vm1513, %v3225, %v2811
        %v3258 = vsel %vm1513, %v3226, %v2813
        %v3259 = vsel %vm1513, %v3227, %v2815
        %v3260 = vsel %vm1513, %v3228, %v2817
        %v3261 = vsel %vm1513, %v3229, %v2819
        %v3262 = vsel %vm1513, %v3230, %v2821
        %v3263 = vsel %vm1513, %v3231, %v2823
        %v3264 = vsel %vm1513, %v3232, %v2825
        %v3265 = vsel %vm1513, %v3233, %v2827
        %v3266 = vsel %vm1513, %v3234, %v2829
        %v3267 = vsel %vm1513, %v3235, %v2831
        %v3268 = vsel %vm1513, %v3236, %v2833
        %v3269 = vsel %vm1513, %v3237, %v2835
        %v3270 = vsel %vm1513, %v3238, %v2837
        %v3271 = vsel %vm1513, %v3239, %v2839
        %v3272 = vsel %vm1513, %v3240, %v2841
        %v3273 = vsel %vm1513, %v3241, %v2843
        %v3274 = vsel %vm1513, %v3242, %v2845
        %v3275 = vsel %vm1513, %v3243, %v2847
        %v3276 = vsel %vm1513, %v3244, %v2849
        %v3277 = vsel %vm1513, %v3245, %v2851
        %v3278 = vsel %vm1513, %v3246, %v2853
        %v3279 = vsel %vm1513, %v3247, %v2855
        %v3280 = vsel %vm1513, %v3248, %v2857
        %v3281 = vsel %vm1513, %v3249, %v2859
        %v3282 = vsel %vm1513, %v3250, %v2861
        %v3283 = vsel %vm1513, %v3251, %v2863
        %v3284 = vsel %vm1513, %v3252, %v2865
        %v3285 = vsel %vm1513, %v3253, %v2867
        %v3286 = vsel %vm1513, %v3254, %v2869
        %v3287 = vsel %vm1513, %v3255, %v2871
        %v3288 = vsel %vm331, %v2384, %v2905
        %v3289 = vsel %vm331, %v2386, %v2907
        %v3290 = vsel %vm331, %v2389, %v2909
        %v3291 = vsel %vm331, %v2391, %v2911
        %v3292 = vsel %vm331, %v2394, %v2913
        %v3293 = vsel %vm331, %v2396, %v2915
        %v3294 = vsel %vm331, %v2399, %v2917
        %v3295 = vsel %vm331, %v2401, %v2919
        %v3296 = vsel %vm331, %v2404, %v2921
        %v3297 = vsel %vm331, %v2406, %v2923
        %v3298 = vsel %vm331, %v2409, %v2925
        %v3299 = vsel %vm331, %v2411, %v2927
        %v3300 = vsel %vm331, %v2414, %v2929
        %v3301 = vsel %vm331, %v2416, %v2931
        %v3302 = vsel %vm331, %v2419, %v2933
        %v3303 = vsel %vm331, %v2421, %v2935
        %v3304 = vsel %vm331, %v2424, %v2937
        %v3305 = vsel %vm331, %v2426, %v2939
        %v3306 = vsel %vm331, %v2429, %v2941
        %v3307 = vsel %vm331, %v2431, %v2943
        %v3308 = vsel %vm331, %v2434, %v2945
        %v3309 = vsel %vm331, %v2436, %v2947
        %v3310 = vsel %vm331, %v2439, %v2949
        %v3311 = vsel %vm331, %v2441, %v2951
        %v3312 = vsel %vm331, %v2444, %v2953
        %v3313 = vsel %vm331, %v2446, %v2955
        %v3314 = vsel %vm331, %v2449, %v2957
        %v3315 = vsel %vm331, %v2451, %v2959
        %v3316 = vsel %vm331, %v2540, %v2961
        %v3317 = vsel %vm331, %v2542, %v2963
        %v3318 = vsel %vm331, %v2545, %v2965
        %v3319 = vsel %vm331, %v2547, %v2967
        %v3320 = vsel %vm1480, %v3288, %v3001
        %v3321 = vsel %vm1480, %v3289, %v3003
        %v3322 = vsel %vm1480, %v3290, %v3005
        %v3323 = vsel %vm1480, %v3291, %v3007
        %v3324 = vsel %vm1480, %v3292, %v3009
        %v3325 = vsel %vm1480, %v3293, %v3011
        %v3326 = vsel %vm1480, %v3294, %v3013
        %v3327 = vsel %vm1480, %v3295, %v3015
        %v3328 = vsel %vm1480, %v3296, %v3017
        %v3329 = vsel %vm1480, %v3297, %v3019
        %v3330 = vsel %vm1480, %v3298, %v3021
        %v3331 = vsel %vm1480, %v3299, %v3023
        %v3332 = vsel %vm1480, %v3300, %v3025
        %v3333 = vsel %vm1480, %v3301, %v3027
        %v3334 = vsel %vm1480, %v3302, %v3029
        %v3335 = vsel %vm1480, %v3303, %v3031
        %v3336 = vsel %vm1480, %v3304, %v3033
        %v3337 = vsel %vm1480, %v3305, %v3035
        %v3338 = vsel %vm1480, %v3306, %v3037
        %v3339 = vsel %vm1480, %v3307, %v3039
        %v3340 = vsel %vm1480, %v3308, %v3041
        %v3341 = vsel %vm1480, %v3309, %v3043
        %v3342 = vsel %vm1480, %v3310, %v3045
        %v3343 = vsel %vm1480, %v3311, %v3047
        %v3344 = vsel %vm1480, %v3312, %v3049
        %v3345 = vsel %vm1480, %v3313, %v3051
        %v3346 = vsel %vm1480, %v3314, %v3053
        %v3347 = vsel %vm1480, %v3315, %v3055
        %v3348 = vsel %vm1480, %v3316, %v3057
        %v3349 = vsel %vm1480, %v3317, %v3059
        %v3350 = vsel %vm1480, %v3318, %v3061
        %v3351 = vsel %vm1480, %v3319, %v3063
        %v3352 = vsel %vm1513, %v3320, %v3097
        %v3353 = vsel %vm1513, %v3321, %v3099
        %v3354 = vsel %vm1513, %v3322, %v3101
        %v3355 = vsel %vm1513, %v3323, %v3103
        %v3356 = vsel %vm1513, %v3324, %v3105
        %v3357 = vsel %vm1513, %v3325, %v3107
        %v3358 = vsel %vm1513, %v3326, %v3109
        %v3359 = vsel %vm1513, %v3327, %v3111
        %v3360 = vsel %vm1513, %v3328, %v3113
        %v3361 = vsel %vm1513, %v3329, %v3115
        %v3362 = vsel %vm1513, %v3330, %v3117
        %v3363 = vsel %vm1513, %v3331, %v3119
        %v3364 = vsel %vm1513, %v3332, %v3121
        %v3365 = vsel %vm1513, %v3333, %v3123
        %v3366 = vsel %vm1513, %v3334, %v3125
        %v3367 = vsel %vm1513, %v3335, %v3127
        %v3368 = vsel %vm1513, %v3336, %v3129
        %v3369 = vsel %vm1513, %v3337, %v3131
        %v3370 = vsel %vm1513, %v3338, %v3133
        %v3371 = vsel %vm1513, %v3339, %v3135
        %v3372 = vsel %vm1513, %v3340, %v3137
        %v3373 = vsel %vm1513, %v3341, %v3139
        %v3374 = vsel %vm1513, %v3342, %v3141
        %v3375 = vsel %vm1513, %v3343, %v3143
        %v3376 = vsel %vm1513, %v3344, %v3145
        %v3377 = vsel %vm1513, %v3345, %v3147
        %v3378 = vsel %vm1513, %v3346, %v3149
        %v3379 = vsel %vm1513, %v3347, %v3151
        %v3380 = vsel %vm1513, %v3348, %v3153
        %v3381 = vsel %vm1513, %v3349, %v3155
        %v3382 = vsel %vm1513, %v3350, %v3157
        %v3383 = vsel %vm1513, %v3351, %v3159
        %v3384 = vld [vmem:[%s3] sm:$0xff]
        %v3385 = vld [vmem:[%s3 + $0x8] sm:$0xff]
        %v3386 = vld [vmem:[%s3 + $0x10] sm:$0xff]
        %v3387 = vld [vmem:[%s3 + $0x18] sm:$0xff]
        %v3388 = vld [vmem:[%s3 + $0x20] sm:$0xff]
        %v3389 = vld [vmem:[%s3 + $0x28] sm:$0xff]
        %v3390 = vld [vmem:[%s3 + $0x30] sm:$0xff]
        %v3391 = vld [vmem:[%s3 + $0x38] sm:$0xff]
        %v3392 = vld [vmem:[%s3 + $0x40] sm:$0xff]
        %v3393 = vld [vmem:[%s3 + $0x48] sm:$0xff]
        %v3394 = vld [vmem:[%s3 + $0x50] sm:$0xff]
        %v3395 = vld [vmem:[%s3 + $0x58] sm:$0xff]
        %v3396 = vld [vmem:[%s3 + $0x60] sm:$0xff]
        %v3397 = vld [vmem:[%s3 + $0x68] sm:$0xff]
        %v3398 = vld [vmem:[%s3 + $0x70] sm:$0xff]
        %v3399 = vld [vmem:[%s3 + $0x78] sm:$0xff]
        %v3400 = vld [vmem:[%s3 + $0x80] sm:$0xff]
        %v3401 = vld [vmem:[%s3 + $0x88] sm:$0xff]
        %v3402 = vld [vmem:[%s3 + $0x90] sm:$0xff]
        %v3403 = vld [vmem:[%s3 + $0x98] sm:$0xff]
        %v3404 = vld [vmem:[%s3 + $0xa0] sm:$0xff]
        %v3405 = vld [vmem:[%s3 + $0xa8] sm:$0xff]
        %v3406 = vld [vmem:[%s3 + $0xb0] sm:$0xff]
        %v3407 = vld [vmem:[%s3 + $0xb8] sm:$0xff]
        %v3408 = vld [vmem:[%s3 + $0xc0] sm:$0xff]
        %v3409 = vld [vmem:[%s3 + $0xc8] sm:$0xff]
        %v3410 = vld [vmem:[%s3 + $0xd0] sm:$0xff]
        %v3411 = vld [vmem:[%s3 + $0xd8] sm:$0xff]
        %v3412 = vld [vmem:[%s3 + $0xe0] sm:$0xff]
        %v3413 = vld [vmem:[%s3 + $0xe8] sm:$0xff]
        %v3414 = vld [vmem:[%s3 + $0xf0] sm:$0xff]
        %v3415 = vld [vmem:[%s3 + $0xf8] sm:$0xff]
        %v3416 = vld [vmem:[%s3 + $0x100] sm:$0xff]
        %v3417 = vld [vmem:[%s3 + $0x108] sm:$0xff]
        %v3418 = vld [vmem:[%s3 + $0x110] sm:$0xff]
        %v3419 = vld [vmem:[%s3 + $0x118] sm:$0xff]
        %v3420 = vld [vmem:[%s4] sm:$0x1]
        %v3422 = vlaneseq
        %v3423 = vshrl.u32 %v3422, 7
        %v3424 = vsub.s32 0, %v3423
        %v3425 = vrot.slane %v3420, %v3424
        %v3427 = vsel %vm331, %v2474, 0
        %v3429 = vsel %vm331, %v2476, 0
        %v3431 = vsel %vm331, %v2479, 0
        %v3433 = vsel %vm331, %v2481, 0
        %v3435 = vsel %vm331, %v2484, 0
        %v3437 = vsel %vm331, %v2486, 0
        %v3439 = vsel %vm331, %v2489, 0
        %v3441 = vsel %vm331, %v2491, 0
        %v3443 = vsel %vm331, %v2494, 0
        %v3445 = vsel %vm331, %v2496, 0
        %v3447 = vsel %vm331, %v2499, 0
        %v3449 = vsel %vm331, %v2501, 0
        %v3451 = vsel %vm331, %v2504, 0
        %v3453 = vsel %vm331, %v2506, 0
        %v3455 = vsel %vm331, %v2509, 0
        %v3457 = vsel %vm331, %v2511, 0
        %v3459 = vsel %vm331, %v2514, 0
        %v3461 = vsel %vm331, %v2516, 0
        %v3463 = vsel %vm331, %v2519, 0
        %v3465 = vsel %vm331, %v2521, 0
        %v3467 = vsel %vm331, %v2524, 0
        %v3469 = vsel %vm331, %v2526, 0
        %v3471 = vsel %vm331, %v2529, 0
        %v3473 = vsel %vm331, %v2531, 0
        %v3475 = vsel %vm331, %v2582, 0
        %v3477 = vsel %vm331, %v2584, 0
        %v3479 = vsel %vm331, %v2587, 0
        %v3481 = vsel %vm331, %v2589, 0
        %v3483 = vsel %vm331, %v2608, 0
        %v3485 = vsel %vm331, %v2610, 0
        %v3487 = vsel %vm331, %v2613, 0
        %v3489 = vsel %vm331, %v2615, 0
        %3491 = vmatprep.subr.mxu0 0.0
        %3492 = vmatpush1.msra.mxu0 %v3399
        %3493 = vmatprep.subr.mxu0 0.0
        %3494 = vmatpush1.msra.mxu0 %v3398
        %3495 = vmatprep.subr.mxu0 0.0
        %3496 = vmatpush1.msra.mxu0 %v3397
        %3497 = vmatprep.subr.mxu0 0.0
        %3498 = vmatpush1.msra.mxu0 %v3396
        %3499 = vmatprep.subr.mxu0 0.0
        %3500 = vmatpush1.msra.mxu0 %v3395
        %3501 = vmatprep.subr.mxu0 0.0
        %3502 = vmatpush1.msra.mxu0 %v3394
        %3503 = vmatprep.subr.mxu0 0.0
        %3504 = vmatpush1.msra.mxu0 %v3393
        %3505 = vmatprep.subr.mxu0 0.0
        %3506 = vmatpush1.msra.mxu0 %v3392
        %3507 = vmatprep.subr.mxu0 0.0
        %3508 = vmatpush1.msra.mxu0 %v3391
        %3509 = vmatprep.subr.mxu0 0.0
        %3510 = vmatpush1.msra.mxu0 %v3390
        %3511 = vmatprep.subr.mxu0 0.0
        %3512 = vmatpush1.msra.mxu0 %v3389
        %3513 = vmatprep.subr.mxu0 0.0
        %3514 = vmatpush1.msra.mxu0 %v3388
        %3515 = vmatprep.subr.mxu0 0.0
        %3516 = vmatpush1.msra.mxu0 %v3387
        %3517 = vmatprep.subr.mxu0 0.0
        %3518 = vmatpush1.msra.mxu0 %v3386
        %3519 = vmatprep.subr.mxu0 0.0
        %3520 = vmatpush1.msra.mxu0 %v3385
        %3521 = vmatprep.subr.mxu0 0.0
        %3522 = vmatpush1.msra.mxu0 %v3384
        %3523 = vmatprep.subr.mxu0 0.0
        %3524 = vmatpush2.msra.mxu0 %v3415
        %3525 = vmatprep.subr.mxu0 0.0
        %3526 = vmatpush2.msra.mxu0 %v3414
        %3527 = vmatprep.subr.mxu0 0.0
        %3528 = vmatpush2.msra.mxu0 %v3413
        %3529 = vmatprep.subr.mxu0 0.0
        %3530 = vmatpush2.msra.mxu0 %v3412
        %3531 = vmatprep.subr.mxu0 0.0
        %3532 = vmatpush2.msra.mxu0 %v3411
        %3533 = vmatprep.subr.mxu0 0.0
        %3534 = vmatpush2.msra.mxu0 %v3410
        %3535 = vmatprep.subr.mxu0 0.0
        %3536 = vmatpush2.msra.mxu0 %v3409
        %3537 = vmatprep.subr.mxu0 0.0
        %3538 = vmatpush2.msra.mxu0 %v3408
        %3539 = vmatprep.subr.mxu0 0.0
        %3540 = vmatpush2.msra.mxu0 %v3407
        %3541 = vmatprep.subr.mxu0 0.0
        %3542 = vmatpush2.msra.mxu0 %v3406
        %3543 = vmatprep.subr.mxu0 0.0
        %3544 = vmatpush2.msra.mxu0 %v3405
        %3545 = vmatprep.subr.mxu0 0.0
        %3546 = vmatpush2.msra.mxu0 %v3404
        %3547 = vmatprep.subr.mxu0 0.0
        %3548 = vmatpush2.msra.mxu0 %v3403
        %3549 = vmatprep.subr.mxu0 0.0
        %3550 = vmatpush2.msra.mxu0 %v3402
        %3551 = vmatprep.subr.mxu0 0.0
        %3552 = vmatpush2.msra.mxu0 %v3401
        %3553 = vmatprep.subr.mxu0 0.0
        %3554 = vmatpush2.msra.mxu0 %v3400
        %3555 = vmatprep.mubr.f32.mxu0 %v3352
        %3556 = vmatmul.mubr.f32.gmra.mxu0 %v3256
        %v3557 = vpop.f32.mrf.mxu0
        %v3558 = vadd.f32 %v3425, %v3557
        %v3559 = vpop.f32.mrf.mxu0
        %3560 = vmatprep.mubr.f32.mxu0 %v3353
        %3561 = vmatmul.mubr.f32.gmra.mxu0 %v3257
        %v3562 = vpop.f32.mrf.mxu0
        %v3563 = vadd.f32 %v3425, %v3562
        %v3564 = vpop.f32.mrf.mxu0
        %3565 = vmatprep.mubr.f32.mxu0 %v3354
        %3566 = vmatmul.mubr.f32.gmra.mxu0 %v3258
        %v3567 = vpop.f32.mrf.mxu0
        %v3568 = vadd.f32 %v3425, %v3567
        %v3569 = vpop.f32.mrf.mxu0
        %3570 = vmatprep.mubr.f32.mxu0 %v3355
        %3571 = vmatmul.mubr.f32.gmra.mxu0 %v3259
        %v3572 = vpop.f32.mrf.mxu0
        %v3573 = vadd.f32 %v3425, %v3572
        %v3574 = vpop.f32.mrf.mxu0
        %3575 = vmatprep.mubr.f32.mxu0 %v3356
        %3576 = vmatmul.mubr.f32.gmra.mxu0 %v3260
        %v3577 = vpop.f32.mrf.mxu0
        %v3578 = vadd.f32 %v3425, %v3577
        %v3579 = vpop.f32.mrf.mxu0
        %3580 = vmatprep.mubr.f32.mxu0 %v3357
        %3581 = vmatmul.mubr.f32.gmra.mxu0 %v3261
        %v3582 = vpop.f32.mrf.mxu0
        %v3583 = vadd.f32 %v3425, %v3582
        %v3584 = vpop.f32.mrf.mxu0
        %3585 = vmatprep.mubr.f32.mxu0 %v3358
        %3586 = vmatmul.mubr.f32.gmra.mxu0 %v3262
        %v3587 = vpop.f32.mrf.mxu0
        %v3588 = vadd.f32 %v3425, %v3587
        %v3589 = vpop.f32.mrf.mxu0
        %3590 = vmatprep.mubr.f32.mxu0 %v3359
        %3591 = vmatmul.mubr.f32.gmra.mxu0 %v3263
        %v3592 = vpop.f32.mrf.mxu0
        %v3593 = vadd.f32 %v3425, %v3592
        %v3594 = vpop.f32.mrf.mxu0
        %3595 = vmatprep.mubr.f32.mxu0 %v3360
        %3596 = vmatmul.mubr.f32.gmra.mxu0 %v3264
        %v3597 = vpop.f32.mrf.mxu0
        %v3598 = vadd.f32 %v3425, %v3597
        %v3599 = vpop.f32.mrf.mxu0
        %3600 = vmatprep.mubr.f32.mxu0 %v3361
        %3601 = vmatmul.mubr.f32.gmra.mxu0 %v3265
        %v3602 = vpop.f32.mrf.mxu0
        %v3603 = vadd.f32 %v3425, %v3602
        %v3604 = vpop.f32.mrf.mxu0
        %3605 = vmatprep.mubr.f32.mxu0 %v3362
        %3606 = vmatmul.mubr.f32.gmra.mxu0 %v3266
        %v3607 = vpop.f32.mrf.mxu0
        %v3608 = vadd.f32 %v3425, %v3607
        %v3609 = vpop.f32.mrf.mxu0
        %3610 = vmatprep.mubr.f32.mxu0 %v3363
        %3611 = vmatmul.mubr.f32.gmra.mxu0 %v3267
        %v3612 = vpop.f32.mrf.mxu0
        %v3613 = vadd.f32 %v3425, %v3612
        %v3614 = vpop.f32.mrf.mxu0
        %3615 = vmatprep.mubr.f32.mxu0 %v3364
        %3616 = vmatmul.mubr.f32.gmra.mxu0 %v3268
        %v3617 = vpop.f32.mrf.mxu0
        %v3618 = vadd.f32 %v3425, %v3617
        %v3619 = vpop.f32.mrf.mxu0
        %3620 = vmatprep.mubr.f32.mxu0 %v3365
        %3621 = vmatmul.mubr.f32.gmra.mxu0 %v3269
        %v3622 = vpop.f32.mrf.mxu0
        %v3623 = vadd.f32 %v3425, %v3622
        %v3624 = vpop.f32.mrf.mxu0
        %3625 = vmatprep.mubr.f32.mxu0 %v3366
        %3626 = vmatmul.mubr.f32.gmra.mxu0 %v3270
        %v3627 = vpop.f32.mrf.mxu0
        %v3628 = vadd.f32 %v3425, %v3627
        %v3629 = vpop.f32.mrf.mxu0
        %3630 = vmatprep.mubr.f32.mxu0 %v3367
        %3631 = vmatmul.mubr.f32.gmra.mxu0 %v3271
        %v3632 = vpop.f32.mrf.mxu0
        %v3633 = vadd.f32 %v3425, %v3632
        %v3634 = vpop.f32.mrf.mxu0
        %3635 = vmatprep.mubr.f32.mxu0 %v3368
        %3636 = vmatmul.mubr.f32.gmra.mxu0 %v3272
        %v3637 = vpop.f32.mrf.mxu0
        %v3638 = vadd.f32 %v3425, %v3637
        %v3639 = vpop.f32.mrf.mxu0
        %3640 = vmatprep.mubr.f32.mxu0 %v3369
        %3641 = vmatmul.mubr.f32.gmra.mxu0 %v3273
        %v3642 = vpop.f32.mrf.mxu0
        %v3643 = vadd.f32 %v3425, %v3642
        %v3644 = vpop.f32.mrf.mxu0
        %3645 = vmatprep.mubr.f32.mxu0 %v3370
        %3646 = vmatmul.mubr.f32.gmra.mxu0 %v3274
        %v3647 = vpop.f32.mrf.mxu0
        %v3648 = vadd.f32 %v3425, %v3647
        %v3649 = vpop.f32.mrf.mxu0
        %3650 = vmatprep.mubr.f32.mxu0 %v3371
        %3651 = vmatmul.mubr.f32.gmra.mxu0 %v3275
        %v3652 = vpop.f32.mrf.mxu0
        %v3653 = vadd.f32 %v3425, %v3652
        %v3654 = vpop.f32.mrf.mxu0
        %3655 = vmatprep.mubr.f32.mxu0 %v3372
        %3656 = vmatmul.mubr.f32.gmra.mxu0 %v3276
        %v3657 = vpop.f32.mrf.mxu0
        %v3658 = vadd.f32 %v3425, %v3657
        %v3659 = vpop.f32.mrf.mxu0
        %3660 = vmatprep.mubr.f32.mxu0 %v3373
        %3661 = vmatmul.mubr.f32.gmra.mxu0 %v3277
        %v3662 = vpop.f32.mrf.mxu0
        %v3663 = vadd.f32 %v3425, %v3662
        %v3664 = vpop.f32.mrf.mxu0
        %3665 = vmatprep.mubr.f32.mxu0 %v3374
        %3666 = vmatmul.mubr.f32.gmra.mxu0 %v3278
        %v3667 = vpop.f32.mrf.mxu0
        %v3668 = vadd.f32 %v3425, %v3667
        %v3669 = vpop.f32.mrf.mxu0
        %3670 = vmatprep.mubr.f32.mxu0 %v3375
        %3671 = vmatmul.mubr.f32.gmra.mxu0 %v3279
        %v3672 = vpop.f32.mrf.mxu0
        %v3673 = vadd.f32 %v3425, %v3672
        %v3674 = vpop.f32.mrf.mxu0
        %3675 = vmatprep.mubr.f32.mxu0 %v3376
        %3676 = vmatmul.mubr.f32.gmra.mxu0 %v3280
        %v3677 = vpop.f32.mrf.mxu0
        %v3678 = vadd.f32 %v3425, %v3677
        %v3679 = vpop.f32.mrf.mxu0
        %3680 = vmatprep.mubr.f32.mxu0 %v3377
        %3681 = vmatmul.mubr.f32.gmra.mxu0 %v3281
        %v3682 = vpop.f32.mrf.mxu0
        %v3683 = vadd.f32 %v3425, %v3682
        %v3684 = vpop.f32.mrf.mxu0
        %3685 = vmatprep.mubr.f32.mxu0 %v3378
        %3686 = vmatmul.mubr.f32.gmra.mxu0 %v3282
        %v3687 = vpop.f32.mrf.mxu0
        %v3688 = vadd.f32 %v3425, %v3687
        %v3689 = vpop.f32.mrf.mxu0
        %3690 = vmatprep.mubr.f32.mxu0 %v3379
        %3691 = vmatmul.mubr.f32.gmra.mxu0 %v3283
        %v3692 = vpop.f32.mrf.mxu0
        %v3693 = vadd.f32 %v3425, %v3692
        %v3694 = vpop.f32.mrf.mxu0
        %3695 = vmatprep.mubr.f32.mxu0 %v3380
        %3696 = vmatmul.mubr.f32.gmra.mxu0 %v3284
        %v3697 = vpop.f32.mrf.mxu0
        %v3698 = vadd.f32 %v3425, %v3697
        %v3699 = vpop.f32.mrf.mxu0
        %3700 = vmatprep.mubr.f32.mxu0 %v3381
        %3701 = vmatmul.mubr.f32.gmra.mxu0 %v3285
        %v3702 = vpop.f32.mrf.mxu0
        %v3703 = vadd.f32 %v3425, %v3702
        %v3704 = vpop.f32.mrf.mxu0
        %3705 = vmatprep.mubr.f32.mxu0 %v3382
        %3706 = vmatmul.mubr.f32.gmra.mxu0 %v3286
        %v3707 = vpop.f32.mrf.mxu0
        %v3708 = vadd.f32 %v3425, %v3707
        %v3709 = vpop.f32.mrf.mxu0
        %3710 = vmatprep.mubr.f32.mxu0 %v3383
        %3711 = vmatmul.mubr.f32.gmra.mxu0 %v3287
        %v3712 = vpop.f32.mrf.mxu0
        %v3713 = vadd.f32 %v3425, %v3712
        %v3714 = vpop.f32.mrf.mxu0
        %3715 = vdwg.mxu0
        %3716 = vmatprep.subr.mxu0 0.0
        %3717 = vmatpush1.msra.mxu0 0.0
        %3718 = vmatprep.subr.mxu0 0.0
        %3719 = vmatpush1.msra.mxu0 0.0
        %3720 = vmatprep.subr.mxu0 0.0
        %3721 = vmatpush1.msra.mxu0 0.0
        %3722 = vmatprep.subr.mxu0 0.0
        %3723 = vmatpush1.msra.mxu0 0.0
        %3724 = vmatprep.subr.mxu0 0.0
        %3725 = vmatpush1.msra.mxu0 0.0
        %3726 = vmatprep.subr.mxu0 0.0
        %3727 = vmatpush1.msra.mxu0 0.0
        %3728 = vmatprep.subr.mxu0 0.0
        %3729 = vmatpush1.msra.mxu0 0.0
        %3730 = vmatprep.subr.mxu0 0.0
        %3731 = vmatpush1.msra.mxu0 0.0
        %3732 = vmatprep.subr.mxu0 0.0
        %3733 = vmatpush1.msra.mxu0 0.0
        %3734 = vmatprep.subr.mxu0 0.0
        %3735 = vmatpush1.msra.mxu0 0.0
        %3736 = vmatprep.subr.mxu0 0.0
        %3737 = vmatpush1.msra.mxu0 0.0
        %3738 = vmatprep.subr.mxu0 0.0
        %3739 = vmatpush1.msra.mxu0 0.0
        %3740 = vmatprep.subr.mxu0 0.0
        %3741 = vmatpush1.msra.mxu0 %v3419
        %3742 = vmatprep.subr.mxu0 0.0
        %3743 = vmatpush1.msra.mxu0 %v3418
        %3744 = vmatprep.subr.mxu0 0.0
        %3745 = vmatpush1.msra.mxu0 %v3417
        %3746 = vmatprep.subr.mxu0 0.0
        %3747 = vmatpush1.msra.mxu0 %v3416
        %3748 = vmatprep.subr.mxu0 0.0
        %3749 = vmatpush2.msra.mxu0 0.0
        %3750 = vmatprep.subr.mxu0 0.0
        %3751 = vmatpush2.msra.mxu0 0.0
        %3752 = vmatprep.subr.mxu0 0.0
        %3753 = vmatpush2.msra.mxu0 0.0
        %3754 = vmatprep.subr.mxu0 0.0
        %3755 = vmatpush2.msra.mxu0 0.0
        %3756 = vmatprep.subr.mxu0 0.0
        %3757 = vmatpush2.msra.mxu0 0.0
        %3758 = vmatprep.subr.mxu0 0.0
        %3759 = vmatpush2.msra.mxu0 0.0
        %3760 = vmatprep.subr.mxu0 0.0
        %3761 = vmatpush2.msra.mxu0 0.0
        %3762 = vmatprep.subr.mxu0 0.0
        %3763 = vmatpush2.msra.mxu0 0.0
        %3764 = vmatprep.subr.mxu0 0.0
        %3765 = vmatpush2.msra.mxu0 0.0
        %3766 = vmatprep.subr.mxu0 0.0
        %3767 = vmatpush2.msra.mxu0 0.0
        %3768 = vmatprep.subr.mxu0 0.0
        %3769 = vmatpush2.msra.mxu0 0.0
        %3770 = vmatprep.subr.mxu0 0.0
        %3771 = vmatpush2.msra.mxu0 0.0
        %3772 = vmatprep.subr.mxu0 0.0
        %3773 = vmatpush2.msra.mxu0 0.0
        %3774 = vmatprep.subr.mxu0 0.0
        %3775 = vmatpush2.msra.mxu0 0.0
        %3776 = vmatprep.subr.mxu0 0.0
        %3777 = vmatpush2.msra.mxu0 0.0
        %3778 = vmatprep.subr.mxu0 0.0
        %3779 = vmatpush2.msra.mxu0 0.0
        %3780 = vmatprep.mubr.f32.mxu0 0.0
        %3781 = vmatmul.mubr.f32.gmra.mxu0 %v3427
        %v3782 = vpop.f32.mrf.mxu0
        %v3783 = vadd.f32 %v3558, %v3782
        %v3784 = vpop.f32.mrf.mxu0
        %3785 = vmatprep.mubr.f32.mxu0 0.0
        %3786 = vmatmul.mubr.f32.gmra.mxu0 %v3429
        %v3787 = vpop.f32.mrf.mxu0
        %v3788 = vadd.f32 %v3563, %v3787
        %v3789 = vpop.f32.mrf.mxu0
        %3790 = vmatprep.mubr.f32.mxu0 0.0
        %3791 = vmatmul.mubr.f32.gmra.mxu0 %v3431
        %v3792 = vpop.f32.mrf.mxu0
        %v3793 = vadd.f32 %v3568, %v3792
        %v3794 = vpop.f32.mrf.mxu0
        %3795 = vmatprep.mubr.f32.mxu0 0.0
        %3796 = vmatmul.mubr.f32.gmra.mxu0 %v3433
        %v3797 = vpop.f32.mrf.mxu0
        %v3798 = vadd.f32 %v3573, %v3797
        %v3799 = vpop.f32.mrf.mxu0
        %3800 = vmatprep.mubr.f32.mxu0 0.0
        %3801 = vmatmul.mubr.f32.gmra.mxu0 %v3435
        %v3802 = vpop.f32.mrf.mxu0
        %v3803 = vadd.f32 %v3578, %v3802
        %v3804 = vpop.f32.mrf.mxu0
        %3805 = vmatprep.mubr.f32.mxu0 0.0
        %3806 = vmatmul.mubr.f32.gmra.mxu0 %v3437
        %v3807 = vpop.f32.mrf.mxu0
        %v3808 = vadd.f32 %v3583, %v3807
        %v3809 = vpop.f32.mrf.mxu0
        %3810 = vmatprep.mubr.f32.mxu0 0.0
        %3811 = vmatmul.mubr.f32.gmra.mxu0 %v3439
        %v3812 = vpop.f32.mrf.mxu0
        %v3813 = vadd.f32 %v3588, %v3812
        %v3814 = vpop.f32.mrf.mxu0
        %3815 = vmatprep.mubr.f32.mxu0 0.0
        %3816 = vmatmul.mubr.f32.gmra.mxu0 %v3441
        %v3817 = vpop.f32.mrf.mxu0
        %v3818 = vadd.f32 %v3593, %v3817
        %v3819 = vpop.f32.mrf.mxu0
        %3820 = vmatprep.mubr.f32.mxu0 0.0
        %3821 = vmatmul.mubr.f32.gmra.mxu0 %v3443
        %v3822 = vpop.f32.mrf.mxu0
        %v3823 = vadd.f32 %v3598, %v3822
        %v3824 = vpop.f32.mrf.mxu0
        %3825 = vmatprep.mubr.f32.mxu0 0.0
        %3826 = vmatmul.mubr.f32.gmra.mxu0 %v3445
        %v3827 = vpop.f32.mrf.mxu0
        %v3828 = vadd.f32 %v3603, %v3827
        %v3829 = vpop.f32.mrf.mxu0
        %3830 = vmatprep.mubr.f32.mxu0 0.0
        %3831 = vmatmul.mubr.f32.gmra.mxu0 %v3447
        %v3832 = vpop.f32.mrf.mxu0
        %v3833 = vadd.f32 %v3608, %v3832
        %v3834 = vpop.f32.mrf.mxu0
        %3835 = vmatprep.mubr.f32.mxu0 0.0
        %3836 = vmatmul.mubr.f32.gmra.mxu0 %v3449
        %v3837 = vpop.f32.mrf.mxu0
        %v3838 = vadd.f32 %v3613, %v3837
        %v3839 = vpop.f32.mrf.mxu0
        %3840 = vmatprep.mubr.f32.mxu0 0.0
        %3841 = vmatmul.mubr.f32.gmra.mxu0 %v3451
        %v3842 = vpop.f32.mrf.mxu0
        %v3843 = vadd.f32 %v3618, %v3842
        %v3844 = vpop.f32.mrf.mxu0
        %3845 = vmatprep.mubr.f32.mxu0 0.0
        %3846 = vmatmul.mubr.f32.gmra.mxu0 %v3453
        %v3847 = vpop.f32.mrf.mxu0
        %v3848 = vadd.f32 %v3623, %v3847
        %v3849 = vpop.f32.mrf.mxu0
        %3850 = vmatprep.mubr.f32.mxu0 0.0
        %3851 = vmatmul.mubr.f32.gmra.mxu0 %v3455
        %v3852 = vpop.f32.mrf.mxu0
        %v3853 = vadd.f32 %v3628, %v3852
        %v3854 = vpop.f32.mrf.mxu0
        %3855 = vmatprep.mubr.f32.mxu0 0.0
        %3856 = vmatmul.mubr.f32.gmra.mxu0 %v3457
        %v3857 = vpop.f32.mrf.mxu0
        %v3858 = vadd.f32 %v3633, %v3857
        %v3859 = vpop.f32.mrf.mxu0
        %3860 = vmatprep.mubr.f32.mxu0 0.0
        %3861 = vmatmul.mubr.f32.gmra.mxu0 %v3459
        %v3862 = vpop.f32.mrf.mxu0
        %v3863 = vadd.f32 %v3638, %v3862
        %v3864 = vpop.f32.mrf.mxu0
        %3865 = vmatprep.mubr.f32.mxu0 0.0
        %3866 = vmatmul.mubr.f32.gmra.mxu0 %v3461
        %v3867 = vpop.f32.mrf.mxu0
        %v3868 = vadd.f32 %v3643, %v3867
        %v3869 = vpop.f32.mrf.mxu0
        %3870 = vmatprep.mubr.f32.mxu0 0.0
        %3871 = vmatmul.mubr.f32.gmra.mxu0 %v3463
        %v3872 = vpop.f32.mrf.mxu0
        %v3873 = vadd.f32 %v3648, %v3872
        %v3874 = vpop.f32.mrf.mxu0
        %3875 = vmatprep.mubr.f32.mxu0 0.0
        %3876 = vmatmul.mubr.f32.gmra.mxu0 %v3465
        %v3877 = vpop.f32.mrf.mxu0
        %v3878 = vadd.f32 %v3653, %v3877
        %v3879 = vpop.f32.mrf.mxu0
        %3880 = vmatprep.mubr.f32.mxu0 0.0
        %3881 = vmatmul.mubr.f32.gmra.mxu0 %v3467
        %v3882 = vpop.f32.mrf.mxu0
        %v3883 = vadd.f32 %v3658, %v3882
        %v3884 = vpop.f32.mrf.mxu0
        %3885 = vmatprep.mubr.f32.mxu0 0.0
        %3886 = vmatmul.mubr.f32.gmra.mxu0 %v3469
        %v3887 = vpop.f32.mrf.mxu0
        %v3888 = vadd.f32 %v3663, %v3887
        %v3889 = vpop.f32.mrf.mxu0
        %3890 = vmatprep.mubr.f32.mxu0 0.0
        %3891 = vmatmul.mubr.f32.gmra.mxu0 %v3471
        %v3892 = vpop.f32.mrf.mxu0
        %v3893 = vadd.f32 %v3668, %v3892
        %v3894 = vpop.f32.mrf.mxu0
        %3895 = vmatprep.mubr.f32.mxu0 0.0
        %3896 = vmatmul.mubr.f32.gmra.mxu0 %v3473
        %v3897 = vpop.f32.mrf.mxu0
        %v3898 = vadd.f32 %v3673, %v3897
        %v3899 = vpop.f32.mrf.mxu0
        %3900 = vmatprep.mubr.f32.mxu0 0.0
        %3901 = vmatmul.mubr.f32.gmra.mxu0 %v3475
        %v3902 = vpop.f32.mrf.mxu0
        %v3903 = vadd.f32 %v3678, %v3902
        %v3904 = vpop.f32.mrf.mxu0
        %3905 = vmatprep.mubr.f32.mxu0 0.0
        %3906 = vmatmul.mubr.f32.gmra.mxu0 %v3477
        %v3907 = vpop.f32.mrf.mxu0
        %v3908 = vadd.f32 %v3683, %v3907
        %v3909 = vpop.f32.mrf.mxu0
        %3910 = vmatprep.mubr.f32.mxu0 0.0
        %3911 = vmatmul.mubr.f32.gmra.mxu0 %v3479
        %v3912 = vpop.f32.mrf.mxu0
        %v3913 = vadd.f32 %v3688, %v3912
        %v3914 = vpop.f32.mrf.mxu0
        %3915 = vmatprep.mubr.f32.mxu0 0.0
        %3916 = vmatmul.mubr.f32.gmra.mxu0 %v3481
        %v3917 = vpop.f32.mrf.mxu0
        %v3918 = vadd.f32 %v3693, %v3917
        %v3919 = vpop.f32.mrf.mxu0
        %3920 = vmatprep.mubr.f32.mxu0 0.0
        %3921 = vmatmul.mubr.f32.gmra.mxu0 %v3483
        %v3922 = vpop.f32.mrf.mxu0
        %v3923 = vadd.f32 %v3698, %v3922
        %v3924 = vpop.f32.mrf.mxu0
        %3925 = vmatprep.mubr.f32.mxu0 0.0
        %3926 = vmatmul.mubr.f32.gmra.mxu0 %v3485
        %v3927 = vpop.f32.mrf.mxu0
        %v3928 = vadd.f32 %v3703, %v3927
        %v3929 = vpop.f32.mrf.mxu0
        %3930 = vmatprep.mubr.f32.mxu0 0.0
        %3931 = vmatmul.mubr.f32.gmra.mxu0 %v3487
        %v3932 = vpop.f32.mrf.mxu0
        %v3933 = vadd.f32 %v3708, %v3932
        %v3934 = vpop.f32.mrf.mxu0
        %3935 = vmatprep.mubr.f32.mxu0 0.0
        %3936 = vmatmul.mubr.f32.gmra.mxu0 %v3489
        %v3937 = vpop.f32.mrf.mxu0
        %v3938 = vadd.f32 %v3713, %v3937
        %v3939 = vpop.f32.mrf.mxu0
        %3940 = vdwg.mxu0
        %v3941 = vsel %vm331, %v3783, 0.0
        %v3942 = vsel %vm331, %v3788, 0.0
        %v3943 = vadd.f32 %v3941, %v3942
        %v3944 = vsel %vm331, %v3793, 0.0
        %v3945 = vadd.f32 %v3943, %v3944
        %v3946 = vsel %vm331, %v3798, 0.0
        %v3947 = vadd.f32 %v3945, %v3946
        %v3948 = vsel %vm331, %v3803, 0.0
        %v3949 = vadd.f32 %v3947, %v3948
        %v3950 = vsel %vm331, %v3808, 0.0
        %v3951 = vadd.f32 %v3949, %v3950
        %v3952 = vsel %vm331, %v3813, 0.0
        %v3953 = vadd.f32 %v3951, %v3952
        %v3954 = vsel %vm331, %v3818, 0.0
        %v3955 = vadd.f32 %v3953, %v3954
        %v3956 = vsel %vm331, %v3823, 0.0
        %v3957 = vadd.f32 %v3955, %v3956
        %v3958 = vsel %vm331, %v3828, 0.0
        %v3959 = vadd.f32 %v3957, %v3958
        %v3960 = vsel %vm331, %v3833, 0.0
        %v3961 = vadd.f32 %v3959, %v3960
        %v3962 = vsel %vm331, %v3838, 0.0
        %v3963 = vadd.f32 %v3961, %v3962
        %v3964 = vsel %vm331, %v3843, 0.0
        %v3965 = vadd.f32 %v3963, %v3964
        %v3966 = vsel %vm331, %v3848, 0.0
        %v3967 = vadd.f32 %v3965, %v3966
        %v3968 = vsel %vm331, %v3853, 0.0
        %v3969 = vadd.f32 %v3967, %v3968
        %v3970 = vsel %vm331, %v3858, 0.0
        %v3971 = vadd.f32 %v3969, %v3970
        %v3972 = vsel %vm331, %v3863, 0.0
        %v3973 = vadd.f32 %v3971, %v3972
        %v3974 = vsel %vm331, %v3868, 0.0
        %v3975 = vadd.f32 %v3973, %v3974
        %v3976 = vsel %vm331, %v3873, 0.0
        %v3977 = vadd.f32 %v3975, %v3976
        %v3978 = vsel %vm331, %v3878, 0.0
        %v3979 = vadd.f32 %v3977, %v3978
        %v3980 = vsel %vm331, %v3883, 0.0
        %v3981 = vadd.f32 %v3979, %v3980
        %v3982 = vsel %vm331, %v3888, 0.0
        %v3983 = vadd.f32 %v3981, %v3982
        %v3984 = vsel %vm331, %v3893, 0.0
        %v3985 = vadd.f32 %v3983, %v3984
        %v3986 = vsel %vm331, %v3898, 0.0
        %v3987 = vadd.f32 %v3985, %v3986
        %v3988 = vsel %vm331, %v3903, 0.0
        %v3989 = vadd.f32 %v3987, %v3988
        %v3990 = vsel %vm331, %v3908, 0.0
        %v3991 = vadd.f32 %v3989, %v3990
        %v3992 = vsel %vm331, %v3913, 0.0
        %v3993 = vadd.f32 %v3991, %v3992
        %v3994 = vsel %vm331, %v3918, 0.0
        %v3995 = vadd.f32 %v3993, %v3994
        %v3996 = vsel %vm331, %v3923, 0.0
        %v3997 = vadd.f32 %v3995, %v3996
        %v3998 = vsel %vm331, %v3928, 0.0
        %v3999 = vadd.f32 %v3997, %v3998
        %v4000 = vsel %vm331, %v3933, 0.0
        %v4001 = vadd.f32 %v3999, %v4000
        %v4002 = vsel %vm331, %v3938, 0.0
        %v4003 = vadd.f32 %v4001, %v4002
        %v4004 = vrot.slane %v4003, 4
        %v4005 = vadd.f32 %v4003, %v4004
        %v4006 = vrot.slane %v4005, 2
        %v4007 = vadd.f32 %v4005, %v4006
        %v4008 = vrot.slane %v4007, 1
        %v4009 = vadd.f32 %v4007, %v4008
        %v4010 = vmul.f32 %v4009, 0.00390625
        %v4011 = vld [vmem:[%s5] sm:$0xf]
        %v4012 = vmul.f32 %v4011, %v4010
        %v4013 = vsel %vm334, %v4012, 0.0
        %4014 = vadd.xlane.f32.xlu0 %v4013
        %v4015 = vpop.xlane.xlu0 %4014
        %v4016 = vld [vmem:[%s6] sm:$0xf]
        %v4017 = vadd.f32 %v4015, %v4016
        %v4018 = vmax.f32 %v4017, 0.0
        %v4019 = vld [vmem:[%s7] sm:$0xf]
        %4021 = vset.pattern.permute.xlu0 0
        %4022 = vperm.xlu0 %4021, %v4018
        %v4023 = vpop.permute.xlu0 %4022
        %v4025 = vmul.f32 %v4019, %v4023
        %v4026 = vsel %vm334, %v4025, 0.0
        %v4027 = vrot.slane %v4026, 4
        %v4028 = vadd.f32 %v4026, %v4027
        %v4029 = vrot.slane %v4028, 2
        %v4030 = vadd.f32 %v4028, %v4029
        %v4031 = vrot.slane %v4030, 1
        %v4032 = vadd.f32 %v4030, %v4031
        %v4033 = vld [vmem:[%s8] sm:$0x1]
        %v4034 = vadd.f32 %v4032, %v4033
        %v4035 = vxor.u32 %v4034, 2147483648
        %v4036 = vmul.f32 %v4035, 1.442695
        %v4037 = vpow.pop %v4036
        %v4038 = vadd.f32 %v4037, 1.0
        %v4039 = vrcp.pop %v4038
        %v4040 = vmul.f32 1.0, %v4039
        %v4041 = vlaneseq
        %v4042 = vshrl.u32 %v4041, 7
        %v4043 = vsub.s32 0, %v4042
        %v4044 = vrot.slane %v4040, %v4043
        %v4045 = vmul.f32 %v3783, %v4044
        %v4046 = vmul.f32 %v3788, %v4044
        %v4047 = vmul.f32 %v3793, %v4044
        %v4048 = vmul.f32 %v3798, %v4044
        %v4049 = vmul.f32 %v3803, %v4044
        %v4050 = vmul.f32 %v3808, %v4044
        %v4051 = vmul.f32 %v3813, %v4044
        %v4052 = vmul.f32 %v3818, %v4044
        %v4053 = vmul.f32 %v3823, %v4044
        %v4054 = vmul.f32 %v3828, %v4044
        %v4055 = vmul.f32 %v3833, %v4044
        %v4056 = vmul.f32 %v3838, %v4044
        %v4057 = vmul.f32 %v3843, %v4044
        %v4058 = vmul.f32 %v3848, %v4044
        %v4059 = vmul.f32 %v3853, %v4044
        %v4060 = vmul.f32 %v3858, %v4044
        %v4061 = vmul.f32 %v3863, %v4044
        %v4062 = vmul.f32 %v3868, %v4044
        %v4063 = vmul.f32 %v3873, %v4044
        %v4064 = vmul.f32 %v3878, %v4044
        %v4065 = vmul.f32 %v3883, %v4044
        %v4066 = vmul.f32 %v3888, %v4044
        %v4067 = vmul.f32 %v3893, %v4044
        %v4068 = vmul.f32 %v3898, %v4044
        %v4069 = vmul.f32 %v3903, %v4044
        %v4070 = vmul.f32 %v3908, %v4044
        %v4071 = vmul.f32 %v3913, %v4044
        %v4072 = vmul.f32 %v3918, %v4044
        %v4073 = vmul.f32 %v3923, %v4044
        %v4074 = vmul.f32 %v3928, %v4044
        %v4075 = vmul.f32 %v3933, %v4044
        %v4076 = vmul.f32 %v3938, %v4044
        %v4077 = vadd.f32 %v4045, %v453
        %v4078 = vadd.f32 %v4046, %v454
        %v4079 = vadd.f32 %v4047, %v455
        %v4080 = vadd.f32 %v4048, %v456
        %v4081 = vadd.f32 %v4049, %v457
        %v4082 = vadd.f32 %v4050, %v458
        %v4083 = vadd.f32 %v4051, %v459
        %v4084 = vadd.f32 %v4052, %v460
        %v4085 = vadd.f32 %v4053, %v461
        %v4086 = vadd.f32 %v4054, %v462
        %v4087 = vadd.f32 %v4055, %v463
        %v4088 = vadd.f32 %v4056, %v464
        %v4089 = vadd.f32 %v4057, %v465
        %v4090 = vadd.f32 %v4058, %v466
        %v4091 = vadd.f32 %v4059, %v467
        %v4092 = vadd.f32 %v4060, %v468
        %v4093 = vadd.f32 %v4061, %v469
        %v4094 = vadd.f32 %v4062, %v470
        %v4095 = vadd.f32 %v4063, %v471
        %v4096 = vadd.f32 %v4064, %v472
        %v4097 = vadd.f32 %v4065, %v473
        %v4098 = vadd.f32 %v4066, %v474
        %v4099 = vadd.f32 %v4067, %v475
        %v4100 = vadd.f32 %v4068, %v476
        %v4101 = vadd.f32 %v4069, %v477
        %v4102 = vadd.f32 %v4070, %v478
        %v4103 = vadd.f32 %v4071, %v479
        %v4104 = vadd.f32 %v4072, %v480
        %v4105 = vadd.f32 %v4073, %v481
        %v4106 = vadd.f32 %v4074, %v482
        %v4107 = vadd.f32 %v4075, %v483
        %v4108 = vadd.f32 %v4076, %v484
        %4109 = vst.msk [vmem:[%s325] sm:$0xff] %vm331, %v4077
        %4110 = vst.msk [vmem:[%s325 + $0x8] sm:$0xff] %vm331, %v4078
        %4111 = vst.msk [vmem:[%s325 + $0x10] sm:$0xff] %vm331, %v4079
        %4112 = vst.msk [vmem:[%s325 + $0x18] sm:$0xff] %vm331, %v4080
        %4113 = vst.msk [vmem:[%s325 + $0x20] sm:$0xff] %vm331, %v4081
        %4114 = vst.msk [vmem:[%s325 + $0x28] sm:$0xff] %vm331, %v4082
        %4115 = vst.msk [vmem:[%s325 + $0x30] sm:$0xff] %vm331, %v4083
        %4116 = vst.msk [vmem:[%s325 + $0x38] sm:$0xff] %vm331, %v4084
        %4117 = vst.msk [vmem:[%s325 + $0x40] sm:$0xff] %vm331, %v4085
        %4118 = vst.msk [vmem:[%s325 + $0x48] sm:$0xff] %vm331, %v4086
        %4119 = vst.msk [vmem:[%s325 + $0x50] sm:$0xff] %vm331, %v4087
        %4120 = vst.msk [vmem:[%s325 + $0x58] sm:$0xff] %vm331, %v4088
        %4121 = vst.msk [vmem:[%s325 + $0x60] sm:$0xff] %vm331, %v4089
        %4122 = vst.msk [vmem:[%s325 + $0x68] sm:$0xff] %vm331, %v4090
        %4123 = vst.msk [vmem:[%s325 + $0x70] sm:$0xff] %vm331, %v4091
        %4124 = vst.msk [vmem:[%s325 + $0x78] sm:$0xff] %vm331, %v4092
        %4125 = vst.msk [vmem:[%s325 + $0x80] sm:$0xff] %vm331, %v4093
        %4126 = vst.msk [vmem:[%s325 + $0x88] sm:$0xff] %vm331, %v4094
        %4127 = vst.msk [vmem:[%s325 + $0x90] sm:$0xff] %vm331, %v4095
        %4128 = vst.msk [vmem:[%s325 + $0x98] sm:$0xff] %vm331, %v4096
        %4129 = vst.msk [vmem:[%s325 + $0xa0] sm:$0xff] %vm331, %v4097
        %4130 = vst.msk [vmem:[%s325 + $0xa8] sm:$0xff] %vm331, %v4098
        %4131 = vst.msk [vmem:[%s325 + $0xb0] sm:$0xff] %vm331, %v4099
        %4132 = vst.msk [vmem:[%s325 + $0xb8] sm:$0xff] %vm331, %v4100
        %4133 = vst.msk [vmem:[%s325 + $0xc0] sm:$0xff] %vm331, %v4101
        %4134 = vst.msk [vmem:[%s325 + $0xc8] sm:$0xff] %vm331, %v4102
        %4135 = vst.msk [vmem:[%s325 + $0xd0] sm:$0xff] %vm331, %v4103
        %4136 = vst.msk [vmem:[%s325 + $0xd8] sm:$0xff] %vm331, %v4104
        %4137 = vst.msk [vmem:[%s325 + $0xe0] sm:$0xff] %vm331, %v4105
        %4138 = vst.msk [vmem:[%s325 + $0xe8] sm:$0xff] %vm331, %v4106
        %4139 = vst.msk [vmem:[%s325 + $0xf0] sm:$0xff] %vm331, %v4107
        %4140 = vst.msk [vmem:[%s325 + $0xf8] sm:$0xff] %vm331, %v4108
        %s4141 = sand.u32 %s225, 1
        %s4142 = scalar_lea.sflag [#allocation5], %s4141
        %s4143 = sand.u32 %s225, 1
        %s4144 = smul.addr %s4143, 256
        %s4145 = scalar_lea.vmem [#allocation4], %s4144
        // Predicated region
        $region57: #{tpu_custom_call.1} parent=55 // pred_check
          %p4146 = pneg %p235
        $region58: #{tpu_custom_call.1} parent=55 // pred_check_branch
          %4148 = sbr.rel (%p4146) target = $region60
        $region59: #{tpu_custom_call.1} parent=55 // pred_region
          %s4150 = ssub.s32 4096, 4096
          %4151 = vsyncadd %s4142, %s4150
          %s4152 = smul.addr %s23, 32
          %s4153 = smul.addr %s4152, 128
          %s4154 = scalar_lea.hbm %s9, %s4153
          %s4155 = sshll.u32 %s4145, 4
          %s4156 = int_to_ptr.vmem [resolvable:$true] %s4155
          %4161 = dma.vmem_to_hbm [thread:$0]  %s4156, 4096, %s4154, %s4142, 128, 128, 8
        $region60: #{tpu_custom_call.1} parent=55 // pred_fallthru
          _
      $region56: #{tpu_custom_call.1} parent=5 // pred_fallthru
        _
      %p4162 = scmp.le.s32.totalorder 2, %s18
      // Predicated region
      $region61: #{tpu_custom_call.1} parent=5 // pred_check
        %p4163 = pneg %p4162
      $region62: #{tpu_custom_call.1} parent=5 // pred_check_branch
        %4165 = sbr.rel (%p4163) target = $region64
      $region63: #{tpu_custom_call.1} parent=5 // pred_region
        %s4166 = ssub.s32 %s18, 2
        // Predicated region
        $region65: #{tpu_custom_call.1} parent=63 // pred_check
          %p4167 = pneg %p241
        $region66: #{tpu_custom_call.1} parent=63 // pred_check_branch
          %4169 = sbr.rel (%p4167) target = $region68
        $region67: #{tpu_custom_call.1} parent=63 // pred_region
          %s4170 = sand.u32 %s226, 1
          %s4171 = scalar_lea.sflag [#allocation5], %s4170
          %s4172 = sand.u32 %s226, 1
          %s4173 = smul.addr %s4172, 256
          %s4174 = scalar_lea.vmem [#allocation4], %s4173
          %4175 = dma.done %s4171, 4096
        $region68: #{tpu_custom_call.1} parent=63 // pred_fallthru
          _
      $region64: #{tpu_custom_call.1} parent=5 // pred_fallthru
        _
    $region6: #{tpu_custom_call.1} parent=1 // loop_footer
      %s22 = sadd.s32 1, %s18
    $region7: #{tpu_custom_call.1} parent=1 // loop_footer_branch
      %17 = sbr.rel target = $region3
    $region8: #{tpu_custom_call.1} parent=1 // loop_exit
      _
    %4176 = vsyncpa [#allocation5], 1
    %s4177 = scalar_lea.sflag [#allocation5], 1
    %4178 = vsyncpa %s4177, 1

</llo_original>
